<compile_context>
chip_gen: v5e
topology: v5e:2x2
jax: 0.10.0
libtpu: 0.0.40
codegen_flags: <defaults>
</compile_context>

<pallas_src>
import functools
import math

import jax
import jax.numpy as jnp
from jax.experimental import pallas as pl
from jax.experimental.pallas import tpu as pltpu


# ------------------------------ fused Pallas kernel ---------------------------

def _fused_model_kernel(
    x_ref, mask_ref,
    enc_w, enc_b,
    a1_wqkv, a1_bqkv, a1_wo, a1_bo,
    a2_wqkv, a2_bqkv, a2_wo, a2_bo,
    n1_g, n1_b, n2_g, n2_b, n3_g, n3_b, n4_g, n4_b,
    ff1_w, ff1_b, ff2_w, ff2_b,
    out_w, out_b,
    o_ref,
    *, n_heads, d_head,
):
    f32 = jnp.float32

    def linear(t, w_ref, b_ref, relu=False):
        y = jnp.dot(t, w_ref[...], preferred_element_type=f32) + b_ref[...]
        return jnp.maximum(y, 0.0) if relu else y

    def layernorm(t, g_ref, b_ref):
        m = jnp.mean(t, axis=-1, keepdims=True)
        v = jnp.mean((t - m) ** 2, axis=-1, keepdims=True)  # biased var (torch LayerNorm)
        return (t - m) * jax.lax.rsqrt(v + 1e-5) * g_ref[...] + b_ref[...]

    scale = 1.0 / math.sqrt(d_head)
    mask_add = mask_ref[...]                     # [S, S] additive mask (0 / -1e9), loaded once

    def mha(t, wqkv_ref, bqkv_ref, wo_ref, bo_ref):
        # t: [S, D].  wqkv_ref: [3H, D, Dh] (q heads, k heads, v heads),
        # bqkv_ref: [3H, 1, Dh], wo_ref: [H, Dh, D], bo_ref: [1, D].
        acc = None
        for h in range(n_heads):                 # static unroll (H is small)
            q_h = jnp.dot(t, wqkv_ref[h], preferred_element_type=f32) + bqkv_ref[h]
            k_h = jnp.dot(t, wqkv_ref[n_heads + h], preferred_element_type=f32) + bqkv_ref[n_heads + h]
            v_h = jnp.dot(t, wqkv_ref[2 * n_heads + h], preferred_element_type=f32) + bqkv_ref[2 * n_heads + h]
            s = jnp.dot(q_h, k_h.T, preferred_element_type=f32) * scale + mask_add
            s = s - jnp.max(s, axis=-1, keepdims=True)
            e = jnp.exp(s)
            p = e / jnp.sum(e, axis=-1, keepdims=True)
            o_h = jnp.dot(p, v_h, preferred_element_type=f32)
            # per-head output-projection contribution (sum over heads == concat(heads) @ W_out)
            c = jnp.dot(o_h, wo_ref[h], preferred_element_type=f32)
            acc = c if acc is None else acc + c
        return acc + bo_ref[...]

    x = linear(x_ref[...], enc_w, enc_b)                                        # enc
    x = x + mha(layernorm(x, n1_g, n1_b), a1_wqkv, a1_bqkv, a1_wo, a1_bo)       # att1 (dropout1 = id)
    x = x + mha(layernorm(x, n2_g, n2_b), a2_wqkv, a2_bqkv, a2_wo, a2_bo)       # att2 (dropout2 = id)
    x3 = layernorm(x, n3_g, n3_b)
    x = x + linear(linear(x3, ff1_w, ff1_b, relu=True), ff2_w, ff2_b)           # FF  (dropout3 = id)
    x = layernorm(x, n4_g, n4_b)
    o_ref[...] = linear(x, out_w, out_b).astype(o_ref.dtype)                    # out


# ------------------------------ Pallas wrapper ---------------------------------

def _split_heads_w(w, H, Dh):
    # [Din, D] -> [H, Din, Dh];  [h] == w[:, h*Dh:(h+1)*Dh]
    din = w.shape[0]
    return w.reshape(din, H, Dh).transpose(1, 0, 2)


def _split_heads_b(b, H, Dh):
    # [1, D] -> [H, 1, Dh]
    return b.reshape(1, H, Dh).transpose(1, 0, 2)


def _pack_attention(p, H, Dh):
    wq, bq = p["query"]
    wk, bk = p["key"]
    wv, bv = p["value"]
    w_heads = jnp.concatenate([_split_heads_w(wq, H, Dh),
                               _split_heads_w(wk, H, Dh),
                               _split_heads_w(wv, H, Dh)], axis=0)   # [3H, D, Dh]
    b_heads = jnp.concatenate([_split_heads_b(bq, H, Dh),
                               _split_heads_b(bk, H, Dh),
                               _split_heads_b(bv, H, Dh)], axis=0)   # [3H, 1, Dh]
    wo, bo = p["out"]
    wo_heads = wo.reshape(H, Dh, wo.shape[1])                        # [H, Dh, D]
    return w_heads, b_heads, wo_heads, bo


@functools.partial(jax.jit, static_argnums=(3,))
def model_forward_pallas(params, x, mask, n_heads):
    S, B, Doh = x.shape
    D = params["enc"][0].shape[1]
    H = n_heads
    Dh = D // H
    dec = params["dec"]

    x2d = x.reshape(S * B, Doh)
    mask_add = jnp.where(mask == 0, jnp.float32(-1e9), jnp.float32(0.0))

    a1 = _pack_attention(dec["att1"], H, Dh)
    a2 = _pack_attention(dec["att2"], H, Dh)

    inputs = (x2d, mask_add,
              params["enc"][0], params["enc"][1],
              *a1, *a2,
              *dec["norm1"], *dec["norm2"], *dec["norm3"], *dec["norm4"],
              *dec["ff1"], *dec["ff2"],
              *params["out"])

    def _bcast_spec(arr):
        if arr.ndim == 2:
            return pl.BlockSpec(arr.shape, lambda b: (0, 0))
        return pl.BlockSpec(arr.shape, lambda b: (0, 0, 0))

    in_specs = ([pl.BlockSpec((S, Doh), lambda b: (b, 0)),     # activation row block
                 pl.BlockSpec((S, S), lambda b: (0, 0))]       # additive mask (shared)
                + [_bcast_spec(a) for a in inputs[2:]])        # all weights (shared, fetched once)

    kernel = functools.partial(_fused_model_kernel, n_heads=H, d_head=Dh)

    out2d = pl.pallas_call(
        kernel,
        out_shape=jax.ShapeDtypeStruct((S * B, Doh), jnp.float32),
        grid=(B,),
        in_specs=in_specs,
        out_specs=pl.BlockSpec((S, Doh), lambda b: (b, 0)),
        compiler_params=pltpu.CompilerParams(dimension_semantics=("parallel",)),
    )(*inputs)
    return out2d.reshape(S, B, Doh)


# ------------------------------ pure-JAX reference ------------------------------

def model_forward_ref(params, x, mask, n_heads):
    S, B, Doh = x.shape
    D = params["enc"][0].shape[1]
    H = n_heads
    Dh = D // H
    dec = params["dec"]
    hp = jax.lax.Precision.HIGHEST

    def lin(t, w, b):
        return jnp.dot(t, w, precision=hp) + b

    def ln(t, g, b):
        m = jnp.mean(t, -1, keepdims=True)
        v = jnp.mean((t - m) ** 2, -1, keepdims=True)
        return (t - m) * jax.lax.rsqrt(v + 1e-5) * g + b

    def mha(p, t2):
        k = lin(t2, *p["key"])
        v = lin(t2, *p["value"])
        q = lin(t2, *p["query"])

        def heads(t):   # torch: .view(B, S, H, Dh).transpose(1, 2) on [S,B,D]-contiguous data
            return t.reshape(B, S, H, Dh).transpose(0, 2, 1, 3)

        qh, kh, vh = heads(q), heads(k), heads(v)
        scores = jnp.einsum("bhqd,bhkd->bhqk", qh, kh, precision=hp) / math.sqrt(Dh)
        scores = jnp.where(mask[None, None] == 0, -1.0e9, scores)
        attn = jax.nn.softmax(scores, axis=-1)
        o = jnp.einsum("bhqk,bhkd->bhqd", attn, vh, precision=hp)
        o = o.transpose(0, 2, 1, 3).reshape(S * B, D)   # .transpose(1,2).contiguous().view(S,B,D)
        return lin(o, *p["out"])

    h = lin(x.reshape(S * B, Doh), *params["enc"])
    h = h + mha(dec["att1"], ln(h, *dec["norm1"]))
    h = h + mha(dec["att2"], ln(h, *dec["norm2"]))
    h3 = ln(h, *dec["norm3"])
    h = h + lin(jnp.maximum(lin(h3, *dec["ff1"]), 0.0), *dec["ff2"])
    h = ln(h, *dec["norm4"])
    return lin(h, *params["out"]).reshape(S, B, Doh)


# ------------------------------ parameter init ----------------------------------

def _linear_params(key, din, dout):
    kw, kb = jax.random.split(key)
    bound = 1.0 / math.sqrt(din)
    w = jax.random.uniform(kw, (din, dout), jnp.float32, -bound, bound)   # stored as W^T
    b = jax.random.uniform(kb, (1, dout), jnp.float32, -bound, bound)
    return w, b


def _ln_params(d):
    return jnp.ones((1, d), jnp.float32), jnp.zeros((1, d), jnp.float32)


def _mha_params(key, d_model):
    ks = jax.random.split(key, 4)
    return dict(
        key=_linear_params(ks[0], d_model, d_model),
        value=_linear_params(ks[1], d_model, d_model),
        query=_linear_params(ks[2], d_model, d_model),
        out=_linear_params(ks[3], d_model, d_model),
    )


def init_params(key, n_heads, d_model, linear_layer_size, d_one_hot):
    ks = jax.random.split(key, 6)
    dec = dict(
        norm1=_ln_params(d_model), norm2=_ln_params(d_model),
        norm3=_ln_params(d_model), norm4=_ln_params(d_model),
        att1=_mha_params(ks[0], d_model),
        att2=_mha_params(ks[1], d_model),
        ff1=_linear_params(ks[2], d_model, linear_layer_size),
        ff2=_linear_params(ks[3], linear_layer_size, d_model),
    )
    return dict(
        enc=_linear_params(ks[4], d_one_hot, d_model),
        dec=dec,
        out=_linear_params(ks[5], d_model, d_one_hot),
    )


# ----------------------------------- main ----------------------------------------

if __name__ == "__main__":
    n_heads = 4
    d_model = 32
    linear_layer_size = 64
    d_one_hot = 16
    seq_len = 8
    batch = 2

    root = jax.random.PRNGKey(0)
    k_param, k_x = jax.random.split(root)
    params = init_params(k_param, n_heads, d_model, linear_layer_size, d_one_hot)

    x = jax.random.normal(k_x, (seq_len, batch, d_one_hot), jnp.float32)
    mask = jnp.tril(jnp.ones((seq_len, seq_len), jnp.float32))   # causal mask

    out = jax.block_until_ready(model_forward_pallas(params, x, mask, n_heads))
    ref = jax.block_until_ready(model_forward_ref(params, x, mask, n_heads))

    assert out.shape == (seq_len, batch, d_one_hot)
    err = float(jnp.max(jnp.abs(out - ref)))
    assert jnp.allclose(out, ref, rtol=1e-2, atol=1e-2), f"max abs err = {err}"
    print("KERNEL_OK")
</pallas_src>

<mosaic_0001>
module attributes {stable_mosaic.version = 11 : i64} {
  func.func @_fused_model_kernel(%arg0: i32, %arg1: memref<8x16xf32, #tpu.memory_space<vmem>>, %arg2: memref<8x8xf32, #tpu.memory_space<vmem>>, %arg3: memref<16x32xf32, #tpu.memory_space<vmem>>, %arg4: memref<1x32xf32, #tpu.memory_space<vmem>>, %arg5: memref<12x32x8xf32, #tpu.memory_space<vmem>>, %arg6: memref<12x1x8xf32, #tpu.memory_space<vmem>>, %arg7: memref<4x8x32xf32, #tpu.memory_space<vmem>>, %arg8: memref<1x32xf32, #tpu.memory_space<vmem>>, %arg9: memref<12x32x8xf32, #tpu.memory_space<vmem>>, %arg10: memref<12x1x8xf32, #tpu.memory_space<vmem>>, %arg11: memref<4x8x32xf32, #tpu.memory_space<vmem>>, %arg12: memref<1x32xf32, #tpu.memory_space<vmem>>, %arg13: memref<1x32xf32, #tpu.memory_space<vmem>>, %arg14: memref<1x32xf32, #tpu.memory_space<vmem>>, %arg15: memref<1x32xf32, #tpu.memory_space<vmem>>, %arg16: memref<1x32xf32, #tpu.memory_space<vmem>>, %arg17: memref<1x32xf32, #tpu.memory_space<vmem>>, %arg18: memref<1x32xf32, #tpu.memory_space<vmem>>, %arg19: memref<1x32xf32, #tpu.memory_space<vmem>>, %arg20: memref<1x32xf32, #tpu.memory_space<vmem>>, %arg21: memref<32x64xf32, #tpu.memory_space<vmem>>, %arg22: memref<1x64xf32, #tpu.memory_space<vmem>>, %arg23: memref<64x32xf32, #tpu.memory_space<vmem>>, %arg24: memref<1x32xf32, #tpu.memory_space<vmem>>, %arg25: memref<32x16xf32, #tpu.memory_space<vmem>>, %arg26: memref<1x16xf32, #tpu.memory_space<vmem>>, %arg27: memref<8x16xf32, #tpu.memory_space<vmem>>) attributes {dimension_semantics = [#tpu.dimension_semantics<parallel>], iteration_bounds = array<i64: 2>, scalar_prefetch = 0 : i64, scratch_operands = 0 : i64, tpu.core_type = #tpu.core_type<tc>, window_params = [{transform_indices = @transform_0, window_bounds = array<i64: 8, 16>}, {pipeline_mode = #tpu.pipeline_mode<synchronous>, transform_indices = @transform_1, window_bounds = array<i64: 8, 8>}, {pipeline_mode = #tpu.pipeline_mode<synchronous>, transform_indices = @transform_2, window_bounds = array<i64: 16, 32>}, {pipeline_mode = #tpu.pipeline_mode<synchronous>, transform_indices = @transform_3, window_bounds = array<i64: 1, 32>}, {pipeline_mode = #tpu.pipeline_mode<synchronous>, transform_indices = @transform_4, window_bounds = array<i64: 12, 32, 8>}, {pipeline_mode = #tpu.pipeline_mode<synchronous>, transform_indices = @transform_5, window_bounds = array<i64: 12, 1, 8>}, {pipeline_mode = #tpu.pipeline_mode<synchronous>, transform_indices = @transform_6, window_bounds = array<i64: 4, 8, 32>}, {pipeline_mode = #tpu.pipeline_mode<synchronous>, transform_indices = @transform_7, window_bounds = array<i64: 1, 32>}, {pipeline_mode = #tpu.pipeline_mode<synchronous>, transform_indices = @transform_8, window_bounds = array<i64: 12, 32, 8>}, {pipeline_mode = #tpu.pipeline_mode<synchronous>, transform_indices = @transform_9, window_bounds = array<i64: 12, 1, 8>}, {pipeline_mode = #tpu.pipeline_mode<synchronous>, transform_indices = @transform_10, window_bounds = array<i64: 4, 8, 32>}, {pipeline_mode = #tpu.pipeline_mode<synchronous>, transform_indices = @transform_11, window_bounds = array<i64: 1, 32>}, {pipeline_mode = #tpu.pipeline_mode<synchronous>, transform_indices = @transform_12, window_bounds = array<i64: 1, 32>}, {pipeline_mode = #tpu.pipeline_mode<synchronous>, transform_indices = @transform_13, window_bounds = array<i64: 1, 32>}, {pipeline_mode = #tpu.pipeline_mode<synchronous>, transform_indices = @transform_14, window_bounds = array<i64: 1, 32>}, {pipeline_mode = #tpu.pipeline_mode<synchronous>, transform_indices = @transform_15, window_bounds = array<i64: 1, 32>}, {pipeline_mode = #tpu.pipeline_mode<synchronous>, transform_indices = @transform_16, window_bounds = array<i64: 1, 32>}, {pipeline_mode = #tpu.pipeline_mode<synchronous>, transform_indices = @transform_17, window_bounds = array<i64: 1, 32>}, {pipeline_mode = #tpu.pipeline_mode<synchronous>, transform_indices = @transform_18, window_bounds = array<i64: 1, 32>}, {pipeline_mode = #tpu.pipeline_mode<synchronous>, transform_indices = @transform_19, window_bounds = array<i64: 1, 32>}, {pipeline_mode = #tpu.pipeline_mode<synchronous>, transform_indices = @transform_20, window_bounds = array<i64: 32, 64>}, {pipeline_mode = #tpu.pipeline_mode<synchronous>, transform_indices = @transform_21, window_bounds = array<i64: 1, 64>}, {pipeline_mode = #tpu.pipeline_mode<synchronous>, transform_indices = @transform_22, window_bounds = array<i64: 64, 32>}, {pipeline_mode = #tpu.pipeline_mode<synchronous>, transform_indices = @transform_23, window_bounds = array<i64: 1, 32>}, {pipeline_mode = #tpu.pipeline_mode<synchronous>, transform_indices = @transform_24, window_bounds = array<i64: 32, 16>}, {pipeline_mode = #tpu.pipeline_mode<synchronous>, transform_indices = @transform_25, window_bounds = array<i64: 1, 16>}, {transform_indices = @transform_26, window_bounds = array<i64: 8, 16>}]} {
    %c0 = arith.constant 0 : index
    %c0_0 = arith.constant 0 : index
    %0 = vector.load %arg2[%c0, %c0_0] : memref<8x8xf32, #tpu.memory_space<vmem>>, vector<8x8xf32>
    %c0_1 = arith.constant 0 : index
    %c0_2 = arith.constant 0 : index
    %1 = vector.load %arg1[%c0_1, %c0_2] : memref<8x16xf32, #tpu.memory_space<vmem>>, vector<8x16xf32>
    %c0_3 = arith.constant 0 : index
    %c0_4 = arith.constant 0 : index
    %2 = vector.load %arg3[%c0_3, %c0_4] : memref<16x32xf32, #tpu.memory_space<vmem>>, vector<16x32xf32>
    %cst = arith.constant dense<0.000000e+00> : vector<8x32xf32>
    %3 = tpu.matmul %1, %2, %cst {dimension_numbers = #tpu.dot_dimension_numbers<[1], [0], [0], [1], [0, 0, 1, 1], [], []>} : vector<8x16xf32>, vector<16x32xf32>, vector<8x32xf32> -> vector<8x32xf32>
    %c0_5 = arith.constant 0 : index
    %c0_6 = arith.constant 0 : index
    %4 = vector.load %arg4[%c0_5, %c0_6] : memref<1x32xf32, #tpu.memory_space<vmem>>, vector<1x32xf32>
    %5 = vector.broadcast %4 : vector<1x32xf32> to vector<8x32xf32>
    %6 = arith.addf %3, %5 : vector<8x32xf32>
    %cst_7 = arith.constant dense<0.000000e+00> : vector<8xf32>
    %7 = vector.multi_reduction <add>, %6, %cst_7 [1] : vector<8x32xf32> to vector<8xf32>
    %8 = vector.shape_cast %7 : vector<8xf32> to vector<8x1xf32>
    %cst_8 = arith.constant 3.200000e+01 : f32
    %9 = vector.broadcast %cst_8 : f32 to vector<8x1xf32>
    %10 = arith.divf %8, %9 : vector<8x1xf32>
    %11 = vector.broadcast %10 : vector<8x1xf32> to vector<8x32xf32>
    %12 = arith.subf %6, %11 : vector<8x32xf32>
    %13 = arith.mulf %12, %12 : vector<8x32xf32>
    %cst_9 = arith.constant dense<0.000000e+00> : vector<8xf32>
    %14 = vector.multi_reduction <add>, %13, %cst_9 [1] : vector<8x32xf32> to vector<8xf32>
    %15 = vector.shape_cast %14 : vector<8xf32> to vector<8x1xf32>
    %cst_10 = arith.constant 3.200000e+01 : f32
    %16 = vector.broadcast %cst_10 : f32 to vector<8x1xf32>
    %17 = arith.divf %15, %16 : vector<8x1xf32>
    %18 = vector.broadcast %10 : vector<8x1xf32> to vector<8x32xf32>
    %19 = arith.subf %6, %18 : vector<8x32xf32>
    %cst_11 = arith.constant 9.99999974E-6 : f32
    %20 = vector.broadcast %cst_11 : f32 to vector<8x1xf32>
    %21 = arith.addf %17, %20 : vector<8x1xf32>
    %22 = math.rsqrt %21 : vector<8x1xf32>
    %23 = vector.broadcast %22 : vector<8x1xf32> to vector<8x32xf32>
    %24 = arith.mulf %19, %23 : vector<8x32xf32>
    %c0_12 = arith.constant 0 : index
    %c0_13 = arith.constant 0 : index
    %25 = vector.load %arg13[%c0_12, %c0_13] : memref<1x32xf32, #tpu.memory_space<vmem>>, vector<1x32xf32>
    %26 = vector.broadcast %25 : vector<1x32xf32> to vector<8x32xf32>
    %27 = arith.mulf %24, %26 : vector<8x32xf32>
    %c0_14 = arith.constant 0 : index
    %c0_15 = arith.constant 0 : index
    %28 = vector.load %arg14[%c0_14, %c0_15] : memref<1x32xf32, #tpu.memory_space<vmem>>, vector<1x32xf32>
    %29 = vector.broadcast %28 : vector<1x32xf32> to vector<8x32xf32>
    %30 = arith.addf %27, %29 : vector<8x32xf32>
    %c0_16 = arith.constant 0 : index
    %c0_17 = arith.constant 0 : index
    %c0_18 = arith.constant 0 : index
    %31 = vector.load %arg5[%c0_16, %c0_17, %c0_18] : memref<12x32x8xf32, #tpu.memory_space<vmem>>, vector<1x32x8xf32>
    %32 = vector.shape_cast %31 : vector<1x32x8xf32> to vector<32x8xf32>
    %cst_19 = arith.constant dense<0.000000e+00> : vector<8x8xf32>
    %33 = tpu.matmul %30, %32, %cst_19 {dimension_numbers = #tpu.dot_dimension_numbers<[1], [0], [0], [1], [0, 0, 1, 1], [], []>} : vector<8x32xf32>, vector<32x8xf32>, vector<8x8xf32> -> vector<8x8xf32>
    %c0_20 = arith.constant 0 : index
    %c0_21 = arith.constant 0 : index
    %c0_22 = arith.constant 0 : index
    %34 = vector.load %arg6[%c0_20, %c0_21, %c0_22] : memref<12x1x8xf32, #tpu.memory_space<vmem>>, vector<1x1x8xf32>
    %35 = vector.shape_cast %34 : vector<1x1x8xf32> to vector<1x8xf32>
    %36 = vector.broadcast %35 : vector<1x8xf32> to vector<8x8xf32>
    %37 = arith.addf %33, %36 : vector<8x8xf32>
    %c4 = arith.constant 4 : index
    %c0_23 = arith.constant 0 : index
    %c0_24 = arith.constant 0 : index
    %38 = vector.load %arg5[%c4, %c0_23, %c0_24] : memref<12x32x8xf32, #tpu.memory_space<vmem>>, vector<1x32x8xf32>
    %39 = vector.shape_cast %38 : vector<1x32x8xf32> to vector<32x8xf32>
    %cst_25 = arith.constant dense<0.000000e+00> : vector<8x8xf32>
    %40 = tpu.matmul %30, %39, %cst_25 {dimension_numbers = #tpu.dot_dimension_numbers<[1], [0], [0], [1], [0, 0, 1, 1], [], []>} : vector<8x32xf32>, vector<32x8xf32>, vector<8x8xf32> -> vector<8x8xf32>
    %c4_26 = arith.constant 4 : index
    %c0_27 = arith.constant 0 : index
    %c0_28 = arith.constant 0 : index
    %41 = vector.load %arg6[%c4_26, %c0_27, %c0_28] : memref<12x1x8xf32, #tpu.memory_space<vmem>>, vector<1x1x8xf32>
    %42 = vector.shape_cast %41 : vector<1x1x8xf32> to vector<1x8xf32>
    %43 = vector.broadcast %42 : vector<1x8xf32> to vector<8x8xf32>
    %44 = arith.addf %40, %43 : vector<8x8xf32>
    %c8 = arith.constant 8 : index
    %c0_29 = arith.constant 0 : index
    %c0_30 = arith.constant 0 : index
    %45 = vector.load %arg5[%c8, %c0_29, %c0_30] : memref<12x32x8xf32, #tpu.memory_space<vmem>>, vector<1x32x8xf32>
    %46 = vector.shape_cast %45 : vector<1x32x8xf32> to vector<32x8xf32>
    %cst_31 = arith.constant dense<0.000000e+00> : vector<8x8xf32>
    %47 = tpu.matmul %30, %46, %cst_31 {dimension_numbers = #tpu.dot_dimension_numbers<[1], [0], [0], [1], [0, 0, 1, 1], [], []>} : vector<8x32xf32>, vector<32x8xf32>, vector<8x8xf32> -> vector<8x8xf32>
    %c8_32 = arith.constant 8 : index
    %c0_33 = arith.constant 0 : index
    %c0_34 = arith.constant 0 : index
    %48 = vector.load %arg6[%c8_32, %c0_33, %c0_34] : memref<12x1x8xf32, #tpu.memory_space<vmem>>, vector<1x1x8xf32>
    %49 = vector.shape_cast %48 : vector<1x1x8xf32> to vector<1x8xf32>
    %50 = vector.broadcast %49 : vector<1x8xf32> to vector<8x8xf32>
    %51 = arith.addf %47, %50 : vector<8x8xf32>
    %52 = tpu.transpose %44, [1, 0] : vector<8x8xf32> -> vector<8x8xf32>
    %cst_35 = arith.constant dense<0.000000e+00> : vector<8x8xf32>
    %53 = tpu.matmul %37, %52, %cst_35 {dimension_numbers = #tpu.dot_dimension_numbers<[1], [0], [0], [1], [0, 0, 1, 1], [], []>} : vector<8x8xf32>, vector<8x8xf32>, vector<8x8xf32> -> vector<8x8xf32>
    %cst_36 = arith.constant 0.353553385 : f32
    %54 = vector.broadcast %cst_36 : f32 to vector<8x8xf32>
    %55 = arith.mulf %53, %54 : vector<8x8xf32>
    %56 = arith.addf %55, %0 : vector<8x8xf32>
    %cst_37 = arith.constant dense<0xFF800000> : vector<8xf32>
    %57 = vector.multi_reduction <maximumf>, %56, %cst_37 [1] : vector<8x8xf32> to vector<8xf32>
    %58 = vector.shape_cast %57 : vector<8xf32> to vector<8x1xf32>
    %59 = vector.broadcast %58 : vector<8x1xf32> to vector<8x8xf32>
    %60 = arith.subf %56, %59 : vector<8x8xf32>
    %61 = math.exp %60 : vector<8x8xf32>
    %cst_38 = arith.constant dense<0.000000e+00> : vector<8xf32>
    %62 = vector.multi_reduction <add>, %61, %cst_38 [1] : vector<8x8xf32> to vector<8xf32>
    %63 = vector.shape_cast %62 : vector<8xf32> to vector<8x1xf32>
    %64 = vector.broadcast %63 : vector<8x1xf32> to vector<8x8xf32>
    %65 = arith.divf %61, %64 : vector<8x8xf32>
    %cst_39 = arith.constant dense<0.000000e+00> : vector<8x8xf32>
    %66 = tpu.matmul %65, %51, %cst_39 {dimension_numbers = #tpu.dot_dimension_numbers<[1], [0], [0], [1], [0, 0, 1, 1], [], []>} : vector<8x8xf32>, vector<8x8xf32>, vector<8x8xf32> -> vector<8x8xf32>
    %c0_40 = arith.constant 0 : index
    %c0_41 = arith.constant 0 : index
    %c0_42 = arith.constant 0 : index
    %67 = vector.load %arg7[%c0_40, %c0_41, %c0_42] : memref<4x8x32xf32, #tpu.memory_space<vmem>>, vector<1x8x32xf32>
    %68 = vector.shape_cast %67 : vector<1x8x32xf32> to vector<8x32xf32>
    %cst_43 = arith.constant dense<0.000000e+00> : vector<8x32xf32>
    %69 = tpu.matmul %66, %68, %cst_43 {dimension_numbers = #tpu.dot_dimension_numbers<[1], [0], [0], [1], [0, 0, 1, 1], [], []>} : vector<8x8xf32>, vector<8x32xf32>, vector<8x32xf32> -> vector<8x32xf32>
    %c1 = arith.constant 1 : index
    %c0_44 = arith.constant 0 : index
    %c0_45 = arith.constant 0 : index
    %70 = vector.load %arg5[%c1, %c0_44, %c0_45] : memref<12x32x8xf32, #tpu.memory_space<vmem>>, vector<1x32x8xf32>
    %71 = vector.shape_cast %70 : vector<1x32x8xf32> to vector<32x8xf32>
    %cst_46 = arith.constant dense<0.000000e+00> : vector<8x8xf32>
    %72 = tpu.matmul %30, %71, %cst_46 {dimension_numbers = #tpu.dot_dimension_numbers<[1], [0], [0], [1], [0, 0, 1, 1], [], []>} : vector<8x32xf32>, vector<32x8xf32>, vector<8x8xf32> -> vector<8x8xf32>
    %c1_47 = arith.constant 1 : index
    %c0_48 = arith.constant 0 : index
    %c0_49 = arith.constant 0 : index
    %73 = vector.load %arg6[%c1_47, %c0_48, %c0_49] : memref<12x1x8xf32, #tpu.memory_space<vmem>>, vector<1x1x8xf32>
    %74 = vector.shape_cast %73 : vector<1x1x8xf32> to vector<1x8xf32>
    %75 = vector.broadcast %74 : vector<1x8xf32> to vector<8x8xf32>
    %76 = arith.addf %72, %75 : vector<8x8xf32>
    %c5 = arith.constant 5 : index
    %c0_50 = arith.constant 0 : index
    %c0_51 = arith.constant 0 : index
    %77 = vector.load %arg5[%c5, %c0_50, %c0_51] : memref<12x32x8xf32, #tpu.memory_space<vmem>>, vector<1x32x8xf32>
    %78 = vector.shape_cast %77 : vector<1x32x8xf32> to vector<32x8xf32>
    %cst_52 = arith.constant dense<0.000000e+00> : vector<8x8xf32>
    %79 = tpu.matmul %30, %78, %cst_52 {dimension_numbers = #tpu.dot_dimension_numbers<[1], [0], [0], [1], [0, 0, 1, 1], [], []>} : vector<8x32xf32>, vector<32x8xf32>, vector<8x8xf32> -> vector<8x8xf32>
    %c5_53 = arith.constant 5 : index
    %c0_54 = arith.constant 0 : index
    %c0_55 = arith.constant 0 : index
    %80 = vector.load %arg6[%c5_53, %c0_54, %c0_55] : memref<12x1x8xf32, #tpu.memory_space<vmem>>, vector<1x1x8xf32>
    %81 = vector.shape_cast %80 : vector<1x1x8xf32> to vector<1x8xf32>
    %82 = vector.broadcast %81 : vector<1x8xf32> to vector<8x8xf32>
    %83 = arith.addf %79, %82 : vector<8x8xf32>
    %c9 = arith.constant 9 : index
    %c0_56 = arith.constant 0 : index
    %c0_57 = arith.constant 0 : index
    %84 = vector.load %arg5[%c9, %c0_56, %c0_57] : memref<12x32x8xf32, #tpu.memory_space<vmem>>, vector<1x32x8xf32>
    %85 = vector.shape_cast %84 : vector<1x32x8xf32> to vector<32x8xf32>
    %cst_58 = arith.constant dense<0.000000e+00> : vector<8x8xf32>
    %86 = tpu.matmul %30, %85, %cst_58 {dimension_numbers = #tpu.dot_dimension_numbers<[1], [0], [0], [1], [0, 0, 1, 1], [], []>} : vector<8x32xf32>, vector<32x8xf32>, vector<8x8xf32> -> vector<8x8xf32>
    %c9_59 = arith.constant 9 : index
    %c0_60 = arith.constant 0 : index
    %c0_61 = arith.constant 0 : index
    %87 = vector.load %arg6[%c9_59, %c0_60, %c0_61] : memref<12x1x8xf32, #tpu.memory_space<vmem>>, vector<1x1x8xf32>
    %88 = vector.shape_cast %87 : vector<1x1x8xf32> to vector<1x8xf32>
    %89 = vector.broadcast %88 : vector<1x8xf32> to vector<8x8xf32>
    %90 = arith.addf %86, %89 : vector<8x8xf32>
    %91 = tpu.transpose %83, [1, 0] : vector<8x8xf32> -> vector<8x8xf32>
    %cst_62 = arith.constant dense<0.000000e+00> : vector<8x8xf32>
    %92 = tpu.matmul %76, %91, %cst_62 {dimension_numbers = #tpu.dot_dimension_numbers<[1], [0], [0], [1], [0, 0, 1, 1], [], []>} : vector<8x8xf32>, vector<8x8xf32>, vector<8x8xf32> -> vector<8x8xf32>
    %cst_63 = arith.constant 0.353553385 : f32
    %93 = vector.broadcast %cst_63 : f32 to vector<8x8xf32>
    %94 = arith.mulf %92, %93 : vector<8x8xf32>
    %95 = arith.addf %94, %0 : vector<8x8xf32>
    %cst_64 = arith.constant dense<0xFF800000> : vector<8xf32>
    %96 = vector.multi_reduction <maximumf>, %95, %cst_64 [1] : vector<8x8xf32> to vector<8xf32>
    %97 = vector.shape_cast %96 : vector<8xf32> to vector<8x1xf32>
    %98 = vector.broadcast %97 : vector<8x1xf32> to vector<8x8xf32>
    %99 = arith.subf %95, %98 : vector<8x8xf32>
    %100 = math.exp %99 : vector<8x8xf32>
    %cst_65 = arith.constant dense<0.000000e+00> : vector<8xf32>
    %101 = vector.multi_reduction <add>, %100, %cst_65 [1] : vector<8x8xf32> to vector<8xf32>
    %102 = vector.shape_cast %101 : vector<8xf32> to vector<8x1xf32>
    %103 = vector.broadcast %102 : vector<8x1xf32> to vector<8x8xf32>
    %104 = arith.divf %100, %103 : vector<8x8xf32>
    %cst_66 = arith.constant dense<0.000000e+00> : vector<8x8xf32>
    %105 = tpu.matmul %104, %90, %cst_66 {dimension_numbers = #tpu.dot_dimension_numbers<[1], [0], [0], [1], [0, 0, 1, 1], [], []>} : vector<8x8xf32>, vector<8x8xf32>, vector<8x8xf32> -> vector<8x8xf32>
    %c1_67 = arith.constant 1 : index
    %c0_68 = arith.constant 0 : index
    %c0_69 = arith.constant 0 : index
    %106 = vector.load %arg7[%c1_67, %c0_68, %c0_69] : memref<4x8x32xf32, #tpu.memory_space<vmem>>, vector<1x8x32xf32>
    %107 = vector.shape_cast %106 : vector<1x8x32xf32> to vector<8x32xf32>
    %cst_70 = arith.constant dense<0.000000e+00> : vector<8x32xf32>
    %108 = tpu.matmul %105, %107, %cst_70 {dimension_numbers = #tpu.dot_dimension_numbers<[1], [0], [0], [1], [0, 0, 1, 1], [], []>} : vector<8x8xf32>, vector<8x32xf32>, vector<8x32xf32> -> vector<8x32xf32>
    %109 = arith.addf %69, %108 : vector<8x32xf32>
    %c2 = arith.constant 2 : index
    %c0_71 = arith.constant 0 : index
    %c0_72 = arith.constant 0 : index
    %110 = vector.load %arg5[%c2, %c0_71, %c0_72] : memref<12x32x8xf32, #tpu.memory_space<vmem>>, vector<1x32x8xf32>
    %111 = vector.shape_cast %110 : vector<1x32x8xf32> to vector<32x8xf32>
    %cst_73 = arith.constant dense<0.000000e+00> : vector<8x8xf32>
    %112 = tpu.matmul %30, %111, %cst_73 {dimension_numbers = #tpu.dot_dimension_numbers<[1], [0], [0], [1], [0, 0, 1, 1], [], []>} : vector<8x32xf32>, vector<32x8xf32>, vector<8x8xf32> -> vector<8x8xf32>
    %c2_74 = arith.constant 2 : index
    %c0_75 = arith.constant 0 : index
    %c0_76 = arith.constant 0 : index
    %113 = vector.load %arg6[%c2_74, %c0_75, %c0_76] : memref<12x1x8xf32, #tpu.memory_space<vmem>>, vector<1x1x8xf32>
    %114 = vector.shape_cast %113 : vector<1x1x8xf32> to vector<1x8xf32>
    %115 = vector.broadcast %114 : vector<1x8xf32> to vector<8x8xf32>
    %116 = arith.addf %112, %115 : vector<8x8xf32>
    %c6 = arith.constant 6 : index
    %c0_77 = arith.constant 0 : index
    %c0_78 = arith.constant 0 : index
    %117 = vector.load %arg5[%c6, %c0_77, %c0_78] : memref<12x32x8xf32, #tpu.memory_space<vmem>>, vector<1x32x8xf32>
    %118 = vector.shape_cast %117 : vector<1x32x8xf32> to vector<32x8xf32>
    %cst_79 = arith.constant dense<0.000000e+00> : vector<8x8xf32>
    %119 = tpu.matmul %30, %118, %cst_79 {dimension_numbers = #tpu.dot_dimension_numbers<[1], [0], [0], [1], [0, 0, 1, 1], [], []>} : vector<8x32xf32>, vector<32x8xf32>, vector<8x8xf32> -> vector<8x8xf32>
    %c6_80 = arith.constant 6 : index
    %c0_81 = arith.constant 0 : index
    %c0_82 = arith.constant 0 : index
    %120 = vector.load %arg6[%c6_80, %c0_81, %c0_82] : memref<12x1x8xf32, #tpu.memory_space<vmem>>, vector<1x1x8xf32>
    %121 = vector.shape_cast %120 : vector<1x1x8xf32> to vector<1x8xf32>
    %122 = vector.broadcast %121 : vector<1x8xf32> to vector<8x8xf32>
    %123 = arith.addf %119, %122 : vector<8x8xf32>
    %c10 = arith.constant 10 : index
    %c0_83 = arith.constant 0 : index
    %c0_84 = arith.constant 0 : index
    %124 = vector.load %arg5[%c10, %c0_83, %c0_84] : memref<12x32x8xf32, #tpu.memory_space<vmem>>, vector<1x32x8xf32>
    %125 = vector.shape_cast %124 : vector<1x32x8xf32> to vector<32x8xf32>
    %cst_85 = arith.constant dense<0.000000e+00> : vector<8x8xf32>
    %126 = tpu.matmul %30, %125, %cst_85 {dimension_numbers = #tpu.dot_dimension_numbers<[1], [0], [0], [1], [0, 0, 1, 1], [], []>} : vector<8x32xf32>, vector<32x8xf32>, vector<8x8xf32> -> vector<8x8xf32>
    %c10_86 = arith.constant 10 : index
    %c0_87 = arith.constant 0 : index
    %c0_88 = arith.constant 0 : index
    %127 = vector.load %arg6[%c10_86, %c0_87, %c0_88] : memref<12x1x8xf32, #tpu.memory_space<vmem>>, vector<1x1x8xf32>
    %128 = vector.shape_cast %127 : vector<1x1x8xf32> to vector<1x8xf32>
    %129 = vector.broadcast %128 : vector<1x8xf32> to vector<8x8xf32>
    %130 = arith.addf %126, %129 : vector<8x8xf32>
    %131 = tpu.transpose %123, [1, 0] : vector<8x8xf32> -> vector<8x8xf32>
    %cst_89 = arith.constant dense<0.000000e+00> : vector<8x8xf32>
    %132 = tpu.matmul %116, %131, %cst_89 {dimension_numbers = #tpu.dot_dimension_numbers<[1], [0], [0], [1], [0, 0, 1, 1], [], []>} : vector<8x8xf32>, vector<8x8xf32>, vector<8x8xf32> -> vector<8x8xf32>
    %cst_90 = arith.constant 0.353553385 : f32
    %133 = vector.broadcast %cst_90 : f32 to vector<8x8xf32>
    %134 = arith.mulf %132, %133 : vector<8x8xf32>
    %135 = arith.addf %134, %0 : vector<8x8xf32>
    %cst_91 = arith.constant dense<0xFF800000> : vector<8xf32>
    %136 = vector.multi_reduction <maximumf>, %135, %cst_91 [1] : vector<8x8xf32> to vector<8xf32>
    %137 = vector.shape_cast %136 : vector<8xf32> to vector<8x1xf32>
    %138 = vector.broadcast %137 : vector<8x1xf32> to vector<8x8xf32>
    %139 = arith.subf %135, %138 : vector<8x8xf32>
    %140 = math.exp %139 : vector<8x8xf32>
    %cst_92 = arith.constant dense<0.000000e+00> : vector<8xf32>
    %141 = vector.multi_reduction <add>, %140, %cst_92 [1] : vector<8x8xf32> to vector<8xf32>
    %142 = vector.shape_cast %141 : vector<8xf32> to vector<8x1xf32>
    %143 = vector.broadcast %142 : vector<8x1xf32> to vector<8x8xf32>
    %144 = arith.divf %140, %143 : vector<8x8xf32>
    %cst_93 = arith.constant dense<0.000000e+00> : vector<8x8xf32>
    %145 = tpu.matmul %144, %130, %cst_93 {dimension_numbers = #tpu.dot_dimension_numbers<[1], [0], [0], [1], [0, 0, 1, 1], [], []>} : vector<8x8xf32>, vector<8x8xf32>, vector<8x8xf32> -> vector<8x8xf32>
    %c2_94 = arith.constant 2 : index
    %c0_95 = arith.constant 0 : index
    %c0_96 = arith.constant 0 : index
    %146 = vector.load %arg7[%c2_94, %c0_95, %c0_96] : memref<4x8x32xf32, #tpu.memory_space<vmem>>, vector<1x8x32xf32>
    %147 = vector.shape_cast %146 : vector<1x8x32xf32> to vector<8x32xf32>
    %cst_97 = arith.constant dense<0.000000e+00> : vector<8x32xf32>
    %148 = tpu.matmul %145, %147, %cst_97 {dimension_numbers = #tpu.dot_dimension_numbers<[1], [0], [0], [1], [0, 0, 1, 1], [], []>} : vector<8x8xf32>, vector<8x32xf32>, vector<8x32xf32> -> vector<8x32xf32>
    %149 = arith.addf %109, %148 : vector<8x32xf32>
    %c3 = arith.constant 3 : index
    %c0_98 = arith.constant 0 : index
    %c0_99 = arith.constant 0 : index
    %150 = vector.load %arg5[%c3, %c0_98, %c0_99] : memref<12x32x8xf32, #tpu.memory_space<vmem>>, vector<1x32x8xf32>
    %151 = vector.shape_cast %150 : vector<1x32x8xf32> to vector<32x8xf32>
    %cst_100 = arith.constant dense<0.000000e+00> : vector<8x8xf32>
    %152 = tpu.matmul %30, %151, %cst_100 {dimension_numbers = #tpu.dot_dimension_numbers<[1], [0], [0], [1], [0, 0, 1, 1], [], []>} : vector<8x32xf32>, vector<32x8xf32>, vector<8x8xf32> -> vector<8x8xf32>
    %c3_101 = arith.constant 3 : index
    %c0_102 = arith.constant 0 : index
    %c0_103 = arith.constant 0 : index
    %153 = vector.load %arg6[%c3_101, %c0_102, %c0_103] : memref<12x1x8xf32, #tpu.memory_space<vmem>>, vector<1x1x8xf32>
    %154 = vector.shape_cast %153 : vector<1x1x8xf32> to vector<1x8xf32>
    %155 = vector.broadcast %154 : vector<1x8xf32> to vector<8x8xf32>
    %156 = arith.addf %152, %155 : vector<8x8xf32>
    %c7 = arith.constant 7 : index
    %c0_104 = arith.constant 0 : index
    %c0_105 = arith.constant 0 : index
    %157 = vector.load %arg5[%c7, %c0_104, %c0_105] : memref<12x32x8xf32, #tpu.memory_space<vmem>>, vector<1x32x8xf32>
    %158 = vector.shape_cast %157 : vector<1x32x8xf32> to vector<32x8xf32>
    %cst_106 = arith.constant dense<0.000000e+00> : vector<8x8xf32>
    %159 = tpu.matmul %30, %158, %cst_106 {dimension_numbers = #tpu.dot_dimension_numbers<[1], [0], [0], [1], [0, 0, 1, 1], [], []>} : vector<8x32xf32>, vector<32x8xf32>, vector<8x8xf32> -> vector<8x8xf32>
    %c7_107 = arith.constant 7 : index
    %c0_108 = arith.constant 0 : index
    %c0_109 = arith.constant 0 : index
    %160 = vector.load %arg6[%c7_107, %c0_108, %c0_109] : memref<12x1x8xf32, #tpu.memory_space<vmem>>, vector<1x1x8xf32>
    %161 = vector.shape_cast %160 : vector<1x1x8xf32> to vector<1x8xf32>
    %162 = vector.broadcast %161 : vector<1x8xf32> to vector<8x8xf32>
    %163 = arith.addf %159, %162 : vector<8x8xf32>
    %c11 = arith.constant 11 : index
    %c0_110 = arith.constant 0 : index
    %c0_111 = arith.constant 0 : index
    %164 = vector.load %arg5[%c11, %c0_110, %c0_111] : memref<12x32x8xf32, #tpu.memory_space<vmem>>, vector<1x32x8xf32>
    %165 = vector.shape_cast %164 : vector<1x32x8xf32> to vector<32x8xf32>
    %cst_112 = arith.constant dense<0.000000e+00> : vector<8x8xf32>
    %166 = tpu.matmul %30, %165, %cst_112 {dimension_numbers = #tpu.dot_dimension_numbers<[1], [0], [0], [1], [0, 0, 1, 1], [], []>} : vector<8x32xf32>, vector<32x8xf32>, vector<8x8xf32> -> vector<8x8xf32>
    %c11_113 = arith.constant 11 : index
    %c0_114 = arith.constant 0 : index
    %c0_115 = arith.constant 0 : index
    %167 = vector.load %arg6[%c11_113, %c0_114, %c0_115] : memref<12x1x8xf32, #tpu.memory_space<vmem>>, vector<1x1x8xf32>
    %168 = vector.shape_cast %167 : vector<1x1x8xf32> to vector<1x8xf32>
    %169 = vector.broadcast %168 : vector<1x8xf32> to vector<8x8xf32>
    %170 = arith.addf %166, %169 : vector<8x8xf32>
    %171 = tpu.transpose %163, [1, 0] : vector<8x8xf32> -> vector<8x8xf32>
    %cst_116 = arith.constant dense<0.000000e+00> : vector<8x8xf32>
    %172 = tpu.matmul %156, %171, %cst_116 {dimension_numbers = #tpu.dot_dimension_numbers<[1], [0], [0], [1], [0, 0, 1, 1], [], []>} : vector<8x8xf32>, vector<8x8xf32>, vector<8x8xf32> -> vector<8x8xf32>
    %cst_117 = arith.constant 0.353553385 : f32
    %173 = vector.broadcast %cst_117 : f32 to vector<8x8xf32>
    %174 = arith.mulf %172, %173 : vector<8x8xf32>
    %175 = arith.addf %174, %0 : vector<8x8xf32>
    %cst_118 = arith.constant dense<0xFF800000> : vector<8xf32>
    %176 = vector.multi_reduction <maximumf>, %175, %cst_118 [1] : vector<8x8xf32> to vector<8xf32>
    %177 = vector.shape_cast %176 : vector<8xf32> to vector<8x1xf32>
    %178 = vector.broadcast %177 : vector<8x1xf32> to vector<8x8xf32>
    %179 = arith.subf %175, %178 : vector<8x8xf32>
    %180 = math.exp %179 : vector<8x8xf32>
    %cst_119 = arith.constant dense<0.000000e+00> : vector<8xf32>
    %181 = vector.multi_reduction <add>, %180, %cst_119 [1] : vector<8x8xf32> to vector<8xf32>
    %182 = vector.shape_cast %181 : vector<8xf32> to vector<8x1xf32>
    %183 = vector.broadcast %182 : vector<8x1xf32> to vector<8x8xf32>
    %184 = arith.divf %180, %183 : vector<8x8xf32>
    %cst_120 = arith.constant dense<0.000000e+00> : vector<8x8xf32>
    %185 = tpu.matmul %184, %170, %cst_120 {dimension_numbers = #tpu.dot_dimension_numbers<[1], [0], [0], [1], [0, 0, 1, 1], [], []>} : vector<8x8xf32>, vector<8x8xf32>, vector<8x8xf32> -> vector<8x8xf32>
    %c3_121 = arith.constant 3 : index
    %c0_122 = arith.constant 0 : index
    %c0_123 = arith.constant 0 : index
    %186 = vector.load %arg7[%c3_121, %c0_122, %c0_123] : memref<4x8x32xf32, #tpu.memory_space<vmem>>, vector<1x8x32xf32>
    %187 = vector.shape_cast %186 : vector<1x8x32xf32> to vector<8x32xf32>
    %cst_124 = arith.constant dense<0.000000e+00> : vector<8x32xf32>
    %188 = tpu.matmul %185, %187, %cst_124 {dimension_numbers = #tpu.dot_dimension_numbers<[1], [0], [0], [1], [0, 0, 1, 1], [], []>} : vector<8x8xf32>, vector<8x32xf32>, vector<8x32xf32> -> vector<8x32xf32>
    %189 = arith.addf %149, %188 : vector<8x32xf32>
    %c0_125 = arith.constant 0 : index
    %c0_126 = arith.constant 0 : index
    %190 = vector.load %arg8[%c0_125, %c0_126] : memref<1x32xf32, #tpu.memory_space<vmem>>, vector<1x32xf32>
    %191 = vector.broadcast %190 : vector<1x32xf32> to vector<8x32xf32>
    %192 = arith.addf %189, %191 : vector<8x32xf32>
    %193 = arith.addf %6, %192 : vector<8x32xf32>
    %cst_127 = arith.constant dense<0.000000e+00> : vector<8xf32>
    %194 = vector.multi_reduction <add>, %193, %cst_127 [1] : vector<8x32xf32> to vector<8xf32>
    %195 = vector.shape_cast %194 : vector<8xf32> to vector<8x1xf32>
    %cst_128 = arith.constant 3.200000e+01 : f32
    %196 = vector.broadcast %cst_128 : f32 to vector<8x1xf32>
    %197 = arith.divf %195, %196 : vector<8x1xf32>
    %198 = vector.broadcast %197 : vector<8x1xf32> to vector<8x32xf32>
    %199 = arith.subf %193, %198 : vector<8x32xf32>
    %200 = arith.mulf %199, %199 : vector<8x32xf32>
    %cst_129 = arith.constant dense<0.000000e+00> : vector<8xf32>
    %201 = vector.multi_reduction <add>, %200, %cst_129 [1] : vector<8x32xf32> to vector<8xf32>
    %202 = vector.shape_cast %201 : vector<8xf32> to vector<8x1xf32>
    %cst_130 = arith.constant 3.200000e+01 : f32
    %203 = vector.broadcast %cst_130 : f32 to vector<8x1xf32>
    %204 = arith.divf %202, %203 : vector<8x1xf32>
    %205 = vector.broadcast %197 : vector<8x1xf32> to vector<8x32xf32>
    %206 = arith.subf %193, %205 : vector<8x32xf32>
    %cst_131 = arith.constant 9.99999974E-6 : f32
    %207 = vector.broadcast %cst_131 : f32 to vector<8x1xf32>
    %208 = arith.addf %204, %207 : vector<8x1xf32>
    %209 = math.rsqrt %208 : vector<8x1xf32>
    %210 = vector.broadcast %209 : vector<8x1xf32> to vector<8x32xf32>
    %211 = arith.mulf %206, %210 : vector<8x32xf32>
    %c0_132 = arith.constant 0 : index
    %c0_133 = arith.constant 0 : index
    %212 = vector.load %arg15[%c0_132, %c0_133] : memref<1x32xf32, #tpu.memory_space<vmem>>, vector<1x32xf32>
    %213 = vector.broadcast %212 : vector<1x32xf32> to vector<8x32xf32>
    %214 = arith.mulf %211, %213 : vector<8x32xf32>
    %c0_134 = arith.constant 0 : index
    %c0_135 = arith.constant 0 : index
    %215 = vector.load %arg16[%c0_134, %c0_135] : memref<1x32xf32, #tpu.memory_space<vmem>>, vector<1x32xf32>
    %216 = vector.broadcast %215 : vector<1x32xf32> to vector<8x32xf32>
    %217 = arith.addf %214, %216 : vector<8x32xf32>
    %c0_136 = arith.constant 0 : index
    %c0_137 = arith.constant 0 : index
    %c0_138 = arith.constant 0 : index
    %218 = vector.load %arg9[%c0_136, %c0_137, %c0_138] : memref<12x32x8xf32, #tpu.memory_space<vmem>>, vector<1x32x8xf32>
    %219 = vector.shape_cast %218 : vector<1x32x8xf32> to vector<32x8xf32>
    %cst_139 = arith.constant dense<0.000000e+00> : vector<8x8xf32>
    %220 = tpu.matmul %217, %219, %cst_139 {dimension_numbers = #tpu.dot_dimension_numbers<[1], [0], [0], [1], [0, 0, 1, 1], [], []>} : vector<8x32xf32>, vector<32x8xf32>, vector<8x8xf32> -> vector<8x8xf32>
    %c0_140 = arith.constant 0 : index
    %c0_141 = arith.constant 0 : index
    %c0_142 = arith.constant 0 : index
    %221 = vector.load %arg10[%c0_140, %c0_141, %c0_142] : memref<12x1x8xf32, #tpu.memory_space<vmem>>, vector<1x1x8xf32>
    %222 = vector.shape_cast %221 : vector<1x1x8xf32> to vector<1x8xf32>
    %223 = vector.broadcast %222 : vector<1x8xf32> to vector<8x8xf32>
    %224 = arith.addf %220, %223 : vector<8x8xf32>
    %c4_143 = arith.constant 4 : index
    %c0_144 = arith.constant 0 : index
    %c0_145 = arith.constant 0 : index
    %225 = vector.load %arg9[%c4_143, %c0_144, %c0_145] : memref<12x32x8xf32, #tpu.memory_space<vmem>>, vector<1x32x8xf32>
    %226 = vector.shape_cast %225 : vector<1x32x8xf32> to vector<32x8xf32>
    %cst_146 = arith.constant dense<0.000000e+00> : vector<8x8xf32>
    %227 = tpu.matmul %217, %226, %cst_146 {dimension_numbers = #tpu.dot_dimension_numbers<[1], [0], [0], [1], [0, 0, 1, 1], [], []>} : vector<8x32xf32>, vector<32x8xf32>, vector<8x8xf32> -> vector<8x8xf32>
    %c4_147 = arith.constant 4 : index
    %c0_148 = arith.constant 0 : index
    %c0_149 = arith.constant 0 : index
    %228 = vector.load %arg10[%c4_147, %c0_148, %c0_149] : memref<12x1x8xf32, #tpu.memory_space<vmem>>, vector<1x1x8xf32>
    %229 = vector.shape_cast %228 : vector<1x1x8xf32> to vector<1x8xf32>
    %230 = vector.broadcast %229 : vector<1x8xf32> to vector<8x8xf32>
    %231 = arith.addf %227, %230 : vector<8x8xf32>
    %c8_150 = arith.constant 8 : index
    %c0_151 = arith.constant 0 : index
    %c0_152 = arith.constant 0 : index
    %232 = vector.load %arg9[%c8_150, %c0_151, %c0_152] : memref<12x32x8xf32, #tpu.memory_space<vmem>>, vector<1x32x8xf32>
    %233 = vector.shape_cast %232 : vector<1x32x8xf32> to vector<32x8xf32>
    %cst_153 = arith.constant dense<0.000000e+00> : vector<8x8xf32>
    %234 = tpu.matmul %217, %233, %cst_153 {dimension_numbers = #tpu.dot_dimension_numbers<[1], [0], [0], [1], [0, 0, 1, 1], [], []>} : vector<8x32xf32>, vector<32x8xf32>, vector<8x8xf32> -> vector<8x8xf32>
    %c8_154 = arith.constant 8 : index
    %c0_155 = arith.constant 0 : index
    %c0_156 = arith.constant 0 : index
    %235 = vector.load %arg10[%c8_154, %c0_155, %c0_156] : memref<12x1x8xf32, #tpu.memory_space<vmem>>, vector<1x1x8xf32>
    %236 = vector.shape_cast %235 : vector<1x1x8xf32> to vector<1x8xf32>
    %237 = vector.broadcast %236 : vector<1x8xf32> to vector<8x8xf32>
    %238 = arith.addf %234, %237 : vector<8x8xf32>
    %239 = tpu.transpose %231, [1, 0] : vector<8x8xf32> -> vector<8x8xf32>
    %cst_157 = arith.constant dense<0.000000e+00> : vector<8x8xf32>
    %240 = tpu.matmul %224, %239, %cst_157 {dimension_numbers = #tpu.dot_dimension_numbers<[1], [0], [0], [1], [0, 0, 1, 1], [], []>} : vector<8x8xf32>, vector<8x8xf32>, vector<8x8xf32> -> vector<8x8xf32>
    %cst_158 = arith.constant 0.353553385 : f32
    %241 = vector.broadcast %cst_158 : f32 to vector<8x8xf32>
    %242 = arith.mulf %240, %241 : vector<8x8xf32>
    %243 = arith.addf %242, %0 : vector<8x8xf32>
    %cst_159 = arith.constant dense<0xFF800000> : vector<8xf32>
    %244 = vector.multi_reduction <maximumf>, %243, %cst_159 [1] : vector<8x8xf32> to vector<8xf32>
    %245 = vector.shape_cast %244 : vector<8xf32> to vector<8x1xf32>
    %246 = vector.broadcast %245 : vector<8x1xf32> to vector<8x8xf32>
    %247 = arith.subf %243, %246 : vector<8x8xf32>
    %248 = math.exp %247 : vector<8x8xf32>
    %cst_160 = arith.constant dense<0.000000e+00> : vector<8xf32>
    %249 = vector.multi_reduction <add>, %248, %cst_160 [1] : vector<8x8xf32> to vector<8xf32>
    %250 = vector.shape_cast %249 : vector<8xf32> to vector<8x1xf32>
    %251 = vector.broadcast %250 : vector<8x1xf32> to vector<8x8xf32>
    %252 = arith.divf %248, %251 : vector<8x8xf32>
    %cst_161 = arith.constant dense<0.000000e+00> : vector<8x8xf32>
    %253 = tpu.matmul %252, %238, %cst_161 {dimension_numbers = #tpu.dot_dimension_numbers<[1], [0], [0], [1], [0, 0, 1, 1], [], []>} : vector<8x8xf32>, vector<8x8xf32>, vector<8x8xf32> -> vector<8x8xf32>
    %c0_162 = arith.constant 0 : index
    %c0_163 = arith.constant 0 : index
    %c0_164 = arith.constant 0 : index
    %254 = vector.load %arg11[%c0_162, %c0_163, %c0_164] : memref<4x8x32xf32, #tpu.memory_space<vmem>>, vector<1x8x32xf32>
    %255 = vector.shape_cast %254 : vector<1x8x32xf32> to vector<8x32xf32>
    %cst_165 = arith.constant dense<0.000000e+00> : vector<8x32xf32>
    %256 = tpu.matmul %253, %255, %cst_165 {dimension_numbers = #tpu.dot_dimension_numbers<[1], [0], [0], [1], [0, 0, 1, 1], [], []>} : vector<8x8xf32>, vector<8x32xf32>, vector<8x32xf32> -> vector<8x32xf32>
    %c1_166 = arith.constant 1 : index
    %c0_167 = arith.constant 0 : index
    %c0_168 = arith.constant 0 : index
    %257 = vector.load %arg9[%c1_166, %c0_167, %c0_168] : memref<12x32x8xf32, #tpu.memory_space<vmem>>, vector<1x32x8xf32>
    %258 = vector.shape_cast %257 : vector<1x32x8xf32> to vector<32x8xf32>
    %cst_169 = arith.constant dense<0.000000e+00> : vector<8x8xf32>
    %259 = tpu.matmul %217, %258, %cst_169 {dimension_numbers = #tpu.dot_dimension_numbers<[1], [0], [0], [1], [0, 0, 1, 1], [], []>} : vector<8x32xf32>, vector<32x8xf32>, vector<8x8xf32> -> vector<8x8xf32>
    %c1_170 = arith.constant 1 : index
    %c0_171 = arith.constant 0 : index
    %c0_172 = arith.constant 0 : index
    %260 = vector.load %arg10[%c1_170, %c0_171, %c0_172] : memref<12x1x8xf32, #tpu.memory_space<vmem>>, vector<1x1x8xf32>
    %261 = vector.shape_cast %260 : vector<1x1x8xf32> to vector<1x8xf32>
    %262 = vector.broadcast %261 : vector<1x8xf32> to vector<8x8xf32>
    %263 = arith.addf %259, %262 : vector<8x8xf32>
    %c5_173 = arith.constant 5 : index
    %c0_174 = arith.constant 0 : index
    %c0_175 = arith.constant 0 : index
    %264 = vector.load %arg9[%c5_173, %c0_174, %c0_175] : memref<12x32x8xf32, #tpu.memory_space<vmem>>, vector<1x32x8xf32>
    %265 = vector.shape_cast %264 : vector<1x32x8xf32> to vector<32x8xf32>
    %cst_176 = arith.constant dense<0.000000e+00> : vector<8x8xf32>
    %266 = tpu.matmul %217, %265, %cst_176 {dimension_numbers = #tpu.dot_dimension_numbers<[1], [0], [0], [1], [0, 0, 1, 1], [], []>} : vector<8x32xf32>, vector<32x8xf32>, vector<8x8xf32> -> vector<8x8xf32>
    %c5_177 = arith.constant 5 : index
    %c0_178 = arith.constant 0 : index
    %c0_179 = arith.constant 0 : index
    %267 = vector.load %arg10[%c5_177, %c0_178, %c0_179] : memref<12x1x8xf32, #tpu.memory_space<vmem>>, vector<1x1x8xf32>
    %268 = vector.shape_cast %267 : vector<1x1x8xf32> to vector<1x8xf32>
    %269 = vector.broadcast %268 : vector<1x8xf32> to vector<8x8xf32>
    %270 = arith.addf %266, %269 : vector<8x8xf32>
    %c9_180 = arith.constant 9 : index
    %c0_181 = arith.constant 0 : index
    %c0_182 = arith.constant 0 : index
    %271 = vector.load %arg9[%c9_180, %c0_181, %c0_182] : memref<12x32x8xf32, #tpu.memory_space<vmem>>, vector<1x32x8xf32>
    %272 = vector.shape_cast %271 : vector<1x32x8xf32> to vector<32x8xf32>
    %cst_183 = arith.constant dense<0.000000e+00> : vector<8x8xf32>
    %273 = tpu.matmul %217, %272, %cst_183 {dimension_numbers = #tpu.dot_dimension_numbers<[1], [0], [0], [1], [0, 0, 1, 1], [], []>} : vector<8x32xf32>, vector<32x8xf32>, vector<8x8xf32> -> vector<8x8xf32>
    %c9_184 = arith.constant 9 : index
    %c0_185 = arith.constant 0 : index
    %c0_186 = arith.constant 0 : index
    %274 = vector.load %arg10[%c9_184, %c0_185, %c0_186] : memref<12x1x8xf32, #tpu.memory_space<vmem>>, vector<1x1x8xf32>
    %275 = vector.shape_cast %274 : vector<1x1x8xf32> to vector<1x8xf32>
    %276 = vector.broadcast %275 : vector<1x8xf32> to vector<8x8xf32>
    %277 = arith.addf %273, %276 : vector<8x8xf32>
    %278 = tpu.transpose %270, [1, 0] : vector<8x8xf32> -> vector<8x8xf32>
    %cst_187 = arith.constant dense<0.000000e+00> : vector<8x8xf32>
    %279 = tpu.matmul %263, %278, %cst_187 {dimension_numbers = #tpu.dot_dimension_numbers<[1], [0], [0], [1], [0, 0, 1, 1], [], []>} : vector<8x8xf32>, vector<8x8xf32>, vector<8x8xf32> -> vector<8x8xf32>
    %cst_188 = arith.constant 0.353553385 : f32
    %280 = vector.broadcast %cst_188 : f32 to vector<8x8xf32>
    %281 = arith.mulf %279, %280 : vector<8x8xf32>
    %282 = arith.addf %281, %0 : vector<8x8xf32>
    %cst_189 = arith.constant dense<0xFF800000> : vector<8xf32>
    %283 = vector.multi_reduction <maximumf>, %282, %cst_189 [1] : vector<8x8xf32> to vector<8xf32>
    %284 = vector.shape_cast %283 : vector<8xf32> to vector<8x1xf32>
    %285 = vector.broadcast %284 : vector<8x1xf32> to vector<8x8xf32>
    %286 = arith.subf %282, %285 : vector<8x8xf32>
    %287 = math.exp %286 : vector<8x8xf32>
    %cst_190 = arith.constant dense<0.000000e+00> : vector<8xf32>
    %288 = vector.multi_reduction <add>, %287, %cst_190 [1] : vector<8x8xf32> to vector<8xf32>
    %289 = vector.shape_cast %288 : vector<8xf32> to vector<8x1xf32>
    %290 = vector.broadcast %289 : vector<8x1xf32> to vector<8x8xf32>
    %291 = arith.divf %287, %290 : vector<8x8xf32>
    %cst_191 = arith.constant dense<0.000000e+00> : vector<8x8xf32>
    %292 = tpu.matmul %291, %277, %cst_191 {dimension_numbers = #tpu.dot_dimension_numbers<[1], [0], [0], [1], [0, 0, 1, 1], [], []>} : vector<8x8xf32>, vector<8x8xf32>, vector<8x8xf32> -> vector<8x8xf32>
    %c1_192 = arith.constant 1 : index
    %c0_193 = arith.constant 0 : index
    %c0_194 = arith.constant 0 : index
    %293 = vector.load %arg11[%c1_192, %c0_193, %c0_194] : memref<4x8x32xf32, #tpu.memory_space<vmem>>, vector<1x8x32xf32>
    %294 = vector.shape_cast %293 : vector<1x8x32xf32> to vector<8x32xf32>
    %cst_195 = arith.constant dense<0.000000e+00> : vector<8x32xf32>
    %295 = tpu.matmul %292, %294, %cst_195 {dimension_numbers = #tpu.dot_dimension_numbers<[1], [0], [0], [1], [0, 0, 1, 1], [], []>} : vector<8x8xf32>, vector<8x32xf32>, vector<8x32xf32> -> vector<8x32xf32>
    %296 = arith.addf %256, %295 : vector<8x32xf32>
    %c2_196 = arith.constant 2 : index
    %c0_197 = arith.constant 0 : index
    %c0_198 = arith.constant 0 : index
    %297 = vector.load %arg9[%c2_196, %c0_197, %c0_198] : memref<12x32x8xf32, #tpu.memory_space<vmem>>, vector<1x32x8xf32>
    %298 = vector.shape_cast %297 : vector<1x32x8xf32> to vector<32x8xf32>
    %cst_199 = arith.constant dense<0.000000e+00> : vector<8x8xf32>
    %299 = tpu.matmul %217, %298, %cst_199 {dimension_numbers = #tpu.dot_dimension_numbers<[1], [0], [0], [1], [0, 0, 1, 1], [], []>} : vector<8x32xf32>, vector<32x8xf32>, vector<8x8xf32> -> vector<8x8xf32>
    %c2_200 = arith.constant 2 : index
    %c0_201 = arith.constant 0 : index
    %c0_202 = arith.constant 0 : index
    %300 = vector.load %arg10[%c2_200, %c0_201, %c0_202] : memref<12x1x8xf32, #tpu.memory_space<vmem>>, vector<1x1x8xf32>
    %301 = vector.shape_cast %300 : vector<1x1x8xf32> to vector<1x8xf32>
    %302 = vector.broadcast %301 : vector<1x8xf32> to vector<8x8xf32>
    %303 = arith.addf %299, %302 : vector<8x8xf32>
    %c6_203 = arith.constant 6 : index
    %c0_204 = arith.constant 0 : index
    %c0_205 = arith.constant 0 : index
    %304 = vector.load %arg9[%c6_203, %c0_204, %c0_205] : memref<12x32x8xf32, #tpu.memory_space<vmem>>, vector<1x32x8xf32>
    %305 = vector.shape_cast %304 : vector<1x32x8xf32> to vector<32x8xf32>
    %cst_206 = arith.constant dense<0.000000e+00> : vector<8x8xf32>
    %306 = tpu.matmul %217, %305, %cst_206 {dimension_numbers = #tpu.dot_dimension_numbers<[1], [0], [0], [1], [0, 0, 1, 1], [], []>} : vector<8x32xf32>, vector<32x8xf32>, vector<8x8xf32> -> vector<8x8xf32>
    %c6_207 = arith.constant 6 : index
    %c0_208 = arith.constant 0 : index
    %c0_209 = arith.constant 0 : index
    %307 = vector.load %arg10[%c6_207, %c0_208, %c0_209] : memref<12x1x8xf32, #tpu.memory_space<vmem>>, vector<1x1x8xf32>
    %308 = vector.shape_cast %307 : vector<1x1x8xf32> to vector<1x8xf32>
    %309 = vector.broadcast %308 : vector<1x8xf32> to vector<8x8xf32>
    %310 = arith.addf %306, %309 : vector<8x8xf32>
    %c10_210 = arith.constant 10 : index
    %c0_211 = arith.constant 0 : index
    %c0_212 = arith.constant 0 : index
    %311 = vector.load %arg9[%c10_210, %c0_211, %c0_212] : memref<12x32x8xf32, #tpu.memory_space<vmem>>, vector<1x32x8xf32>
    %312 = vector.shape_cast %311 : vector<1x32x8xf32> to vector<32x8xf32>
    %cst_213 = arith.constant dense<0.000000e+00> : vector<8x8xf32>
    %313 = tpu.matmul %217, %312, %cst_213 {dimension_numbers = #tpu.dot_dimension_numbers<[1], [0], [0], [1], [0, 0, 1, 1], [], []>} : vector<8x32xf32>, vector<32x8xf32>, vector<8x8xf32> -> vector<8x8xf32>
    %c10_214 = arith.constant 10 : index
    %c0_215 = arith.constant 0 : index
    %c0_216 = arith.constant 0 : index
    %314 = vector.load %arg10[%c10_214, %c0_215, %c0_216] : memref<12x1x8xf32, #tpu.memory_space<vmem>>, vector<1x1x8xf32>
    %315 = vector.shape_cast %314 : vector<1x1x8xf32> to vector<1x8xf32>
    %316 = vector.broadcast %315 : vector<1x8xf32> to vector<8x8xf32>
    %317 = arith.addf %313, %316 : vector<8x8xf32>
    %318 = tpu.transpose %310, [1, 0] : vector<8x8xf32> -> vector<8x8xf32>
    %cst_217 = arith.constant dense<0.000000e+00> : vector<8x8xf32>
    %319 = tpu.matmul %303, %318, %cst_217 {dimension_numbers = #tpu.dot_dimension_numbers<[1], [0], [0], [1], [0, 0, 1, 1], [], []>} : vector<8x8xf32>, vector<8x8xf32>, vector<8x8xf32> -> vector<8x8xf32>
    %cst_218 = arith.constant 0.353553385 : f32
    %320 = vector.broadcast %cst_218 : f32 to vector<8x8xf32>
    %321 = arith.mulf %319, %320 : vector<8x8xf32>
    %322 = arith.addf %321, %0 : vector<8x8xf32>
    %cst_219 = arith.constant dense<0xFF800000> : vector<8xf32>
    %323 = vector.multi_reduction <maximumf>, %322, %cst_219 [1] : vector<8x8xf32> to vector<8xf32>
    %324 = vector.shape_cast %323 : vector<8xf32> to vector<8x1xf32>
    %325 = vector.broadcast %324 : vector<8x1xf32> to vector<8x8xf32>
    %326 = arith.subf %322, %325 : vector<8x8xf32>
    %327 = math.exp %326 : vector<8x8xf32>
    %cst_220 = arith.constant dense<0.000000e+00> : vector<8xf32>
    %328 = vector.multi_reduction <add>, %327, %cst_220 [1] : vector<8x8xf32> to vector<8xf32>
    %329 = vector.shape_cast %328 : vector<8xf32> to vector<8x1xf32>
    %330 = vector.broadcast %329 : vector<8x1xf32> to vector<8x8xf32>
    %331 = arith.divf %327, %330 : vector<8x8xf32>
    %cst_221 = arith.constant dense<0.000000e+00> : vector<8x8xf32>
    %332 = tpu.matmul %331, %317, %cst_221 {dimension_numbers = #tpu.dot_dimension_numbers<[1], [0], [0], [1], [0, 0, 1, 1], [], []>} : vector<8x8xf32>, vector<8x8xf32>, vector<8x8xf32> -> vector<8x8xf32>
    %c2_222 = arith.constant 2 : index
    %c0_223 = arith.constant 0 : index
    %c0_224 = arith.constant 0 : index
    %333 = vector.load %arg11[%c2_222, %c0_223, %c0_224] : memref<4x8x32xf32, #tpu.memory_space<vmem>>, vector<1x8x32xf32>
    %334 = vector.shape_cast %333 : vector<1x8x32xf32> to vector<8x32xf32>
    %cst_225 = arith.constant dense<0.000000e+00> : vector<8x32xf32>
    %335 = tpu.matmul %332, %334, %cst_225 {dimension_numbers = #tpu.dot_dimension_numbers<[1], [0], [0], [1], [0, 0, 1, 1], [], []>} : vector<8x8xf32>, vector<8x32xf32>, vector<8x32xf32> -> vector<8x32xf32>
    %336 = arith.addf %296, %335 : vector<8x32xf32>
    %c3_226 = arith.constant 3 : index
    %c0_227 = arith.constant 0 : index
    %c0_228 = arith.constant 0 : index
    %337 = vector.load %arg9[%c3_226, %c0_227, %c0_228] : memref<12x32x8xf32, #tpu.memory_space<vmem>>, vector<1x32x8xf32>
    %338 = vector.shape_cast %337 : vector<1x32x8xf32> to vector<32x8xf32>
    %cst_229 = arith.constant dense<0.000000e+00> : vector<8x8xf32>
    %339 = tpu.matmul %217, %338, %cst_229 {dimension_numbers = #tpu.dot_dimension_numbers<[1], [0], [0], [1], [0, 0, 1, 1], [], []>} : vector<8x32xf32>, vector<32x8xf32>, vector<8x8xf32> -> vector<8x8xf32>
    %c3_230 = arith.constant 3 : index
    %c0_231 = arith.constant 0 : index
    %c0_232 = arith.constant 0 : index
    %340 = vector.load %arg10[%c3_230, %c0_231, %c0_232] : memref<12x1x8xf32, #tpu.memory_space<vmem>>, vector<1x1x8xf32>
    %341 = vector.shape_cast %340 : vector<1x1x8xf32> to vector<1x8xf32>
    %342 = vector.broadcast %341 : vector<1x8xf32> to vector<8x8xf32>
    %343 = arith.addf %339, %342 : vector<8x8xf32>
    %c7_233 = arith.constant 7 : index
    %c0_234 = arith.constant 0 : index
    %c0_235 = arith.constant 0 : index
    %344 = vector.load %arg9[%c7_233, %c0_234, %c0_235] : memref<12x32x8xf32, #tpu.memory_space<vmem>>, vector<1x32x8xf32>
    %345 = vector.shape_cast %344 : vector<1x32x8xf32> to vector<32x8xf32>
    %cst_236 = arith.constant dense<0.000000e+00> : vector<8x8xf32>
    %346 = tpu.matmul %217, %345, %cst_236 {dimension_numbers = #tpu.dot_dimension_numbers<[1], [0], [0], [1], [0, 0, 1, 1], [], []>} : vector<8x32xf32>, vector<32x8xf32>, vector<8x8xf32> -> vector<8x8xf32>
    %c7_237 = arith.constant 7 : index
    %c0_238 = arith.constant 0 : index
    %c0_239 = arith.constant 0 : index
    %347 = vector.load %arg10[%c7_237, %c0_238, %c0_239] : memref<12x1x8xf32, #tpu.memory_space<vmem>>, vector<1x1x8xf32>
    %348 = vector.shape_cast %347 : vector<1x1x8xf32> to vector<1x8xf32>
    %349 = vector.broadcast %348 : vector<1x8xf32> to vector<8x8xf32>
    %350 = arith.addf %346, %349 : vector<8x8xf32>
    %c11_240 = arith.constant 11 : index
    %c0_241 = arith.constant 0 : index
    %c0_242 = arith.constant 0 : index
    %351 = vector.load %arg9[%c11_240, %c0_241, %c0_242] : memref<12x32x8xf32, #tpu.memory_space<vmem>>, vector<1x32x8xf32>
    %352 = vector.shape_cast %351 : vector<1x32x8xf32> to vector<32x8xf32>
    %cst_243 = arith.constant dense<0.000000e+00> : vector<8x8xf32>
    %353 = tpu.matmul %217, %352, %cst_243 {dimension_numbers = #tpu.dot_dimension_numbers<[1], [0], [0], [1], [0, 0, 1, 1], [], []>} : vector<8x32xf32>, vector<32x8xf32>, vector<8x8xf32> -> vector<8x8xf32>
    %c11_244 = arith.constant 11 : index
    %c0_245 = arith.constant 0 : index
    %c0_246 = arith.constant 0 : index
    %354 = vector.load %arg10[%c11_244, %c0_245, %c0_246] : memref<12x1x8xf32, #tpu.memory_space<vmem>>, vector<1x1x8xf32>
    %355 = vector.shape_cast %354 : vector<1x1x8xf32> to vector<1x8xf32>
    %356 = vector.broadcast %355 : vector<1x8xf32> to vector<8x8xf32>
    %357 = arith.addf %353, %356 : vector<8x8xf32>
    %358 = tpu.transpose %350, [1, 0] : vector<8x8xf32> -> vector<8x8xf32>
    %cst_247 = arith.constant dense<0.000000e+00> : vector<8x8xf32>
    %359 = tpu.matmul %343, %358, %cst_247 {dimension_numbers = #tpu.dot_dimension_numbers<[1], [0], [0], [1], [0, 0, 1, 1], [], []>} : vector<8x8xf32>, vector<8x8xf32>, vector<8x8xf32> -> vector<8x8xf32>
    %cst_248 = arith.constant 0.353553385 : f32
    %360 = vector.broadcast %cst_248 : f32 to vector<8x8xf32>
    %361 = arith.mulf %359, %360 : vector<8x8xf32>
    %362 = arith.addf %361, %0 : vector<8x8xf32>
    %cst_249 = arith.constant dense<0xFF800000> : vector<8xf32>
    %363 = vector.multi_reduction <maximumf>, %362, %cst_249 [1] : vector<8x8xf32> to vector<8xf32>
    %364 = vector.shape_cast %363 : vector<8xf32> to vector<8x1xf32>
    %365 = vector.broadcast %364 : vector<8x1xf32> to vector<8x8xf32>
    %366 = arith.subf %362, %365 : vector<8x8xf32>
    %367 = math.exp %366 : vector<8x8xf32>
    %cst_250 = arith.constant dense<0.000000e+00> : vector<8xf32>
    %368 = vector.multi_reduction <add>, %367, %cst_250 [1] : vector<8x8xf32> to vector<8xf32>
    %369 = vector.shape_cast %368 : vector<8xf32> to vector<8x1xf32>
    %370 = vector.broadcast %369 : vector<8x1xf32> to vector<8x8xf32>
    %371 = arith.divf %367, %370 : vector<8x8xf32>
    %cst_251 = arith.constant dense<0.000000e+00> : vector<8x8xf32>
    %372 = tpu.matmul %371, %357, %cst_251 {dimension_numbers = #tpu.dot_dimension_numbers<[1], [0], [0], [1], [0, 0, 1, 1], [], []>} : vector<8x8xf32>, vector<8x8xf32>, vector<8x8xf32> -> vector<8x8xf32>
    %c3_252 = arith.constant 3 : index
    %c0_253 = arith.constant 0 : index
    %c0_254 = arith.constant 0 : index
    %373 = vector.load %arg11[%c3_252, %c0_253, %c0_254] : memref<4x8x32xf32, #tpu.memory_space<vmem>>, vector<1x8x32xf32>
    %374 = vector.shape_cast %373 : vector<1x8x32xf32> to vector<8x32xf32>
    %cst_255 = arith.constant dense<0.000000e+00> : vector<8x32xf32>
    %375 = tpu.matmul %372, %374, %cst_255 {dimension_numbers = #tpu.dot_dimension_numbers<[1], [0], [0], [1], [0, 0, 1, 1], [], []>} : vector<8x8xf32>, vector<8x32xf32>, vector<8x32xf32> -> vector<8x32xf32>
    %376 = arith.addf %336, %375 : vector<8x32xf32>
    %c0_256 = arith.constant 0 : index
    %c0_257 = arith.constant 0 : index
    %377 = vector.load %arg12[%c0_256, %c0_257] : memref<1x32xf32, #tpu.memory_space<vmem>>, vector<1x32xf32>
    %378 = vector.broadcast %377 : vector<1x32xf32> to vector<8x32xf32>
    %379 = arith.addf %376, %378 : vector<8x32xf32>
    %380 = arith.addf %193, %379 : vector<8x32xf32>
    %cst_258 = arith.constant dense<0.000000e+00> : vector<8xf32>
    %381 = vector.multi_reduction <add>, %380, %cst_258 [1] : vector<8x32xf32> to vector<8xf32>
    %382 = vector.shape_cast %381 : vector<8xf32> to vector<8x1xf32>
    %cst_259 = arith.constant 3.200000e+01 : f32
    %383 = vector.broadcast %cst_259 : f32 to vector<8x1xf32>
    %384 = arith.divf %382, %383 : vector<8x1xf32>
    %385 = vector.broadcast %384 : vector<8x1xf32> to vector<8x32xf32>
    %386 = arith.subf %380, %385 : vector<8x32xf32>
    %387 = arith.mulf %386, %386 : vector<8x32xf32>
    %cst_260 = arith.constant dense<0.000000e+00> : vector<8xf32>
    %388 = vector.multi_reduction <add>, %387, %cst_260 [1] : vector<8x32xf32> to vector<8xf32>
    %389 = vector.shape_cast %388 : vector<8xf32> to vector<8x1xf32>
    %cst_261 = arith.constant 3.200000e+01 : f32
    %390 = vector.broadcast %cst_261 : f32 to vector<8x1xf32>
    %391 = arith.divf %389, %390 : vector<8x1xf32>
    %392 = vector.broadcast %384 : vector<8x1xf32> to vector<8x32xf32>
    %393 = arith.subf %380, %392 : vector<8x32xf32>
    %cst_262 = arith.constant 9.99999974E-6 : f32
    %394 = vector.broadcast %cst_262 : f32 to vector<8x1xf32>
    %395 = arith.addf %391, %394 : vector<8x1xf32>
    %396 = math.rsqrt %395 : vector<8x1xf32>
    %397 = vector.broadcast %396 : vector<8x1xf32> to vector<8x32xf32>
    %398 = arith.mulf %393, %397 : vector<8x32xf32>
    %c0_263 = arith.constant 0 : index
    %c0_264 = arith.constant 0 : index
    %399 = vector.load %arg17[%c0_263, %c0_264] : memref<1x32xf32, #tpu.memory_space<vmem>>, vector<1x32xf32>
    %400 = vector.broadcast %399 : vector<1x32xf32> to vector<8x32xf32>
    %401 = arith.mulf %398, %400 : vector<8x32xf32>
    %c0_265 = arith.constant 0 : index
    %c0_266 = arith.constant 0 : index
    %402 = vector.load %arg18[%c0_265, %c0_266] : memref<1x32xf32, #tpu.memory_space<vmem>>, vector<1x32xf32>
    %403 = vector.broadcast %402 : vector<1x32xf32> to vector<8x32xf32>
    %404 = arith.addf %401, %403 : vector<8x32xf32>
    %c0_267 = arith.constant 0 : index
    %c0_268 = arith.constant 0 : index
    %405 = vector.load %arg21[%c0_267, %c0_268] : memref<32x64xf32, #tpu.memory_space<vmem>>, vector<32x64xf32>
    %cst_269 = arith.constant dense<0.000000e+00> : vector<8x64xf32>
    %406 = tpu.matmul %404, %405, %cst_269 {dimension_numbers = #tpu.dot_dimension_numbers<[1], [0], [0], [1], [0, 0, 1, 1], [], []>} : vector<8x32xf32>, vector<32x64xf32>, vector<8x64xf32> -> vector<8x64xf32>
    %c0_270 = arith.constant 0 : index
    %c0_271 = arith.constant 0 : index
    %407 = vector.load %arg22[%c0_270, %c0_271] : memref<1x64xf32, #tpu.memory_space<vmem>>, vector<1x64xf32>
    %408 = vector.broadcast %407 : vector<1x64xf32> to vector<8x64xf32>
    %409 = arith.addf %406, %408 : vector<8x64xf32>
    %cst_272 = arith.constant 0.000000e+00 : f32
    %410 = vector.broadcast %cst_272 : f32 to vector<8x64xf32>
    %411 = arith.maximumf %409, %410 : vector<8x64xf32>
    %c0_273 = arith.constant 0 : index
    %c0_274 = arith.constant 0 : index
    %412 = vector.load %arg23[%c0_273, %c0_274] : memref<64x32xf32, #tpu.memory_space<vmem>>, vector<64x32xf32>
    %cst_275 = arith.constant dense<0.000000e+00> : vector<8x32xf32>
    %413 = tpu.matmul %411, %412, %cst_275 {dimension_numbers = #tpu.dot_dimension_numbers<[1], [0], [0], [1], [0, 0, 1, 1], [], []>} : vector<8x64xf32>, vector<64x32xf32>, vector<8x32xf32> -> vector<8x32xf32>
    %c0_276 = arith.constant 0 : index
    %c0_277 = arith.constant 0 : index
    %414 = vector.load %arg24[%c0_276, %c0_277] : memref<1x32xf32, #tpu.memory_space<vmem>>, vector<1x32xf32>
    %415 = vector.broadcast %414 : vector<1x32xf32> to vector<8x32xf32>
    %416 = arith.addf %413, %415 : vector<8x32xf32>
    %417 = arith.addf %380, %416 : vector<8x32xf32>
    %cst_278 = arith.constant dense<0.000000e+00> : vector<8xf32>
    %418 = vector.multi_reduction <add>, %417, %cst_278 [1] : vector<8x32xf32> to vector<8xf32>
    %419 = vector.shape_cast %418 : vector<8xf32> to vector<8x1xf32>
    %cst_279 = arith.constant 3.200000e+01 : f32
    %420 = vector.broadcast %cst_279 : f32 to vector<8x1xf32>
    %421 = arith.divf %419, %420 : vector<8x1xf32>
    %422 = vector.broadcast %421 : vector<8x1xf32> to vector<8x32xf32>
    %423 = arith.subf %417, %422 : vector<8x32xf32>
    %424 = arith.mulf %423, %423 : vector<8x32xf32>
    %cst_280 = arith.constant dense<0.000000e+00> : vector<8xf32>
    %425 = vector.multi_reduction <add>, %424, %cst_280 [1] : vector<8x32xf32> to vector<8xf32>
    %426 = vector.shape_cast %425 : vector<8xf32> to vector<8x1xf32>
    %cst_281 = arith.constant 3.200000e+01 : f32
    %427 = vector.broadcast %cst_281 : f32 to vector<8x1xf32>
    %428 = arith.divf %426, %427 : vector<8x1xf32>
    %429 = vector.broadcast %421 : vector<8x1xf32> to vector<8x32xf32>
    %430 = arith.subf %417, %429 : vector<8x32xf32>
    %cst_282 = arith.constant 9.99999974E-6 : f32
    %431 = vector.broadcast %cst_282 : f32 to vector<8x1xf32>
    %432 = arith.addf %428, %431 : vector<8x1xf32>
    %433 = math.rsqrt %432 : vector<8x1xf32>
    %434 = vector.broadcast %433 : vector<8x1xf32> to vector<8x32xf32>
    %435 = arith.mulf %430, %434 : vector<8x32xf32>
    %c0_283 = arith.constant 0 : index
    %c0_284 = arith.constant 0 : index
    %436 = vector.load %arg19[%c0_283, %c0_284] : memref<1x32xf32, #tpu.memory_space<vmem>>, vector<1x32xf32>
    %437 = vector.broadcast %436 : vector<1x32xf32> to vector<8x32xf32>
    %438 = arith.mulf %435, %437 : vector<8x32xf32>
    %c0_285 = arith.constant 0 : index
    %c0_286 = arith.constant 0 : index
    %439 = vector.load %arg20[%c0_285, %c0_286] : memref<1x32xf32, #tpu.memory_space<vmem>>, vector<1x32xf32>
    %440 = vector.broadcast %439 : vector<1x32xf32> to vector<8x32xf32>
    %441 = arith.addf %438, %440 : vector<8x32xf32>
    %c0_287 = arith.constant 0 : index
    %c0_288 = arith.constant 0 : index
    %442 = vector.load %arg25[%c0_287, %c0_288] : memref<32x16xf32, #tpu.memory_space<vmem>>, vector<32x16xf32>
    %cst_289 = arith.constant dense<0.000000e+00> : vector<8x16xf32>
    %443 = tpu.matmul %441, %442, %cst_289 {dimension_numbers = #tpu.dot_dimension_numbers<[1], [0], [0], [1], [0, 0, 1, 1], [], []>} : vector<8x32xf32>, vector<32x16xf32>, vector<8x16xf32> -> vector<8x16xf32>
    %c0_290 = arith.constant 0 : index
    %c0_291 = arith.constant 0 : index
    %444 = vector.load %arg26[%c0_290, %c0_291] : memref<1x16xf32, #tpu.memory_space<vmem>>, vector<1x16xf32>
    %445 = vector.broadcast %444 : vector<1x16xf32> to vector<8x16xf32>
    %446 = arith.addf %443, %445 : vector<8x16xf32>
    %c0_292 = arith.constant 0 : index
    %c0_293 = arith.constant 0 : index
    %447 = vector.load %arg27[%c0_292, %c0_293] : memref<8x16xf32, #tpu.memory_space<vmem>>, vector<8x16xf32>
    tpu.vector_store %arg27[%c0_292, %c0_293], %446 {strides = array<i32>} : memref<8x16xf32, #tpu.memory_space<vmem>>, vector<8x16xf32>,
    return
  }
  func.func @transform_0(%arg0: i32) -> (i32, i32) {
    %c0_i32 = arith.constant 0 : i32
    %c0_i32_0 = arith.constant 0 : i32
    return %arg0, %c0_i32 : i32, i32
  }
  func.func @transform_1(%arg0: i32) -> (i32, i32) {
    %c0_i32 = arith.constant 0 : i32
    %c0_i32_0 = arith.constant 0 : i32
    %c0_i32_1 = arith.constant 0 : i32
    return %c0_i32, %c0_i32_0 : i32, i32
  }
  func.func @transform_2(%arg0: i32) -> (i32, i32) {
    %c0_i32 = arith.constant 0 : i32
    %c0_i32_0 = arith.constant 0 : i32
    %c0_i32_1 = arith.constant 0 : i32
    return %c0_i32, %c0_i32_0 : i32, i32
  }
  func.func @transform_3(%arg0: i32) -> (i32, i32) {
    %c0_i32 = arith.constant 0 : i32
    %c0_i32_0 = arith.constant 0 : i32
    %c0_i32_1 = arith.constant 0 : i32
    return %c0_i32, %c0_i32_0 : i32, i32
  }
  func.func @transform_4(%arg0: i32) -> (i32, i32, i32) {
    %c0_i32 = arith.constant 0 : i32
    %c0_i32_0 = arith.constant 0 : i32
    %c0_i32_1 = arith.constant 0 : i32
    %c0_i32_2 = arith.constant 0 : i32
    return %c0_i32, %c0_i32_0, %c0_i32_1 : i32, i32, i32
  }
  func.func @transform_5(%arg0: i32) -> (i32, i32, i32) {
    %c0_i32 = arith.constant 0 : i32
    %c0_i32_0 = arith.constant 0 : i32
    %c0_i32_1 = arith.constant 0 : i32
    %c0_i32_2 = arith.constant 0 : i32
    return %c0_i32, %c0_i32_0, %c0_i32_1 : i32, i32, i32
  }
  func.func @transform_6(%arg0: i32) -> (i32, i32, i32) {
    %c0_i32 = arith.constant 0 : i32
    %c0_i32_0 = arith.constant 0 : i32
    %c0_i32_1 = arith.constant 0 : i32
    %c0_i32_2 = arith.constant 0 : i32
    return %c0_i32, %c0_i32_0, %c0_i32_1 : i32, i32, i32
  }
  func.func @transform_7(%arg0: i32) -> (i32, i32) {
    %c0_i32 = arith.constant 0 : i32
    %c0_i32_0 = arith.constant 0 : i32
    %c0_i32_1 = arith.constant 0 : i32
    return %c0_i32, %c0_i32_0 : i32, i32
  }
  func.func @transform_8(%arg0: i32) -> (i32, i32, i32) {
    %c0_i32 = arith.constant 0 : i32
    %c0_i32_0 = arith.constant 0 : i32
    %c0_i32_1 = arith.constant 0 : i32
    %c0_i32_2 = arith.constant 0 : i32
    return %c0_i32, %c0_i32_0, %c0_i32_1 : i32, i32, i32
  }
  func.func @transform_9(%arg0: i32) -> (i32, i32, i32) {
    %c0_i32 = arith.constant 0 : i32
    %c0_i32_0 = arith.constant 0 : i32
    %c0_i32_1 = arith.constant 0 : i32
    %c0_i32_2 = arith.constant 0 : i32
    return %c0_i32, %c0_i32_0, %c0_i32_1 : i32, i32, i32
  }
  func.func @transform_10(%arg0: i32) -> (i32, i32, i32) {
    %c0_i32 = arith.constant 0 : i32
    %c0_i32_0 = arith.constant 0 : i32
    %c0_i32_1 = arith.constant 0 : i32
    %c0_i32_2 = arith.constant 0 : i32
    return %c0_i32, %c0_i32_0, %c0_i32_1 : i32, i32, i32
  }
  func.func @transform_11(%arg0: i32) -> (i32, i32) {
    %c0_i32 = arith.constant 0 : i32
    %c0_i32_0 = arith.constant 0 : i32
    %c0_i32_1 = arith.constant 0 : i32
    return %c0_i32, %c0_i32_0 : i32, i32
  }
  func.func @transform_12(%arg0: i32) -> (i32, i32) {
    %c0_i32 = arith.constant 0 : i32
    %c0_i32_0 = arith.constant 0 : i32
    %c0_i32_1 = arith.constant 0 : i32
    return %c0_i32, %c0_i32_0 : i32, i32
  }
  func.func @transform_13(%arg0: i32) -> (i32, i32) {
    %c0_i32 = arith.constant 0 : i32
    %c0_i32_0 = arith.constant 0 : i32
    %c0_i32_1 = arith.constant 0 : i32
    return %c0_i32, %c0_i32_0 : i32, i32
  }
  func.func @transform_14(%arg0: i32) -> (i32, i32) {
    %c0_i32 = arith.constant 0 : i32
    %c0_i32_0 = arith.constant 0 : i32
    %c0_i32_1 = arith.constant 0 : i32
    return %c0_i32, %c0_i32_0 : i32, i32
  }
  func.func @transform_15(%arg0: i32) -> (i32, i32) {
    %c0_i32 = arith.constant 0 : i32
    %c0_i32_0 = arith.constant 0 : i32
    %c0_i32_1 = arith.constant 0 : i32
    return %c0_i32, %c0_i32_0 : i32, i32
  }
  func.func @transform_16(%arg0: i32) -> (i32, i32) {
    %c0_i32 = arith.constant 0 : i32
    %c0_i32_0 = arith.constant 0 : i32
    %c0_i32_1 = arith.constant 0 : i32
    return %c0_i32, %c0_i32_0 : i32, i32
  }
  func.func @transform_17(%arg0: i32) -> (i32, i32) {
    %c0_i32 = arith.constant 0 : i32
    %c0_i32_0 = arith.constant 0 : i32
    %c0_i32_1 = arith.constant 0 : i32
    return %c0_i32, %c0_i32_0 : i32, i32
  }
  func.func @transform_18(%arg0: i32) -> (i32, i32) {
    %c0_i32 = arith.constant 0 : i32
    %c0_i32_0 = arith.constant 0 : i32
    %c0_i32_1 = arith.constant 0 : i32
    return %c0_i32, %c0_i32_0 : i32, i32
  }
  func.func @transform_19(%arg0: i32) -> (i32, i32) {
    %c0_i32 = arith.constant 0 : i32
    %c0_i32_0 = arith.constant 0 : i32
    %c0_i32_1 = arith.constant 0 : i32
    return %c0_i32, %c0_i32_0 : i32, i32
  }
  func.func @transform_20(%arg0: i32) -> (i32, i32) {
    %c0_i32 = arith.constant 0 : i32
    %c0_i32_0 = arith.constant 0 : i32
    %c0_i32_1 = arith.constant 0 : i32
    return %c0_i32, %c0_i32_0 : i32, i32
  }
  func.func @transform_21(%arg0: i32) -> (i32, i32) {
    %c0_i32 = arith.constant 0 : i32
    %c0_i32_0 = arith.constant 0 : i32
    %c0_i32_1 = arith.constant 0 : i32
    return %c0_i32, %c0_i32_0 : i32, i32
  }
  func.func @transform_22(%arg0: i32) -> (i32, i32) {
    %c0_i32 = arith.constant 0 : i32
    %c0_i32_0 = arith.constant 0 : i32
    %c0_i32_1 = arith.constant 0 : i32
    return %c0_i32, %c0_i32_0 : i32, i32
  }
  func.func @transform_23(%arg0: i32) -> (i32, i32) {
    %c0_i32 = arith.constant 0 : i32
    %c0_i32_0 = arith.constant 0 : i32
    %c0_i32_1 = arith.constant 0 : i32
    return %c0_i32, %c0_i32_0 : i32, i32
  }
  func.func @transform_24(%arg0: i32) -> (i32, i32) {
    %c0_i32 = arith.constant 0 : i32
    %c0_i32_0 = arith.constant 0 : i32
    %c0_i32_1 = arith.constant 0 : i32
    return %c0_i32, %c0_i32_0 : i32, i32
  }
  func.func @transform_25(%arg0: i32) -> (i32, i32) {
    %c0_i32 = arith.constant 0 : i32
    %c0_i32_0 = arith.constant 0 : i32
    %c0_i32_1 = arith.constant 0 : i32
    return %c0_i32, %c0_i32_0 : i32, i32
  }
  func.func @transform_26(%arg0: i32) -> (i32, i32) {
    %c0_i32 = arith.constant 0 : i32
    %c0_i32_0 = arith.constant 0 : i32
    return %arg0, %c0_i32 : i32, i32
  }
}

</mosaic_0001>

<llo_original>
// kernel: model_forward_pallas.1
$region0: #{model_forward_pallas.1}
  #allocation0 [shape = 'u32[]', space=smem, size = 0x4, offset = 0x4, fixed_abs, tag = 'smem constant byte address 0x4 - core index']
  #allocation1 [shape = 'u32[72,128]{1,0:T(1,128)}', space=vmem, size = 0x9000, scoped, tag = 'internal scratch']
  %s0 = inlined_call_operand.vmem [shape: f32[16,16], index: 0, kind: input, shape index: {}]
  %s1 = inlined_call_operand.vmem [shape: f32[8,8], index: 1, kind: input, shape index: {}]
  %s2 = inlined_call_operand.vmem [shape: f32[16,32], index: 2, kind: input, shape index: {}]
  %s3 = inlined_call_operand.vmem [shape: f32[1,32], index: 3, kind: input, shape index: {}]
  %s4 = inlined_call_operand.vmem [shape: f32[12,32,8], index: 4, kind: input, shape index: {}]
  %s5 = inlined_call_operand.vmem [shape: f32[12,1,8], index: 5, kind: input, shape index: {}]
  %s6 = inlined_call_operand.vmem [shape: f32[4,8,32], index: 6, kind: input, shape index: {}]
  %s7 = inlined_call_operand.vmem [shape: f32[1,32], index: 7, kind: input, shape index: {}]
  %s8 = inlined_call_operand.vmem [shape: f32[12,32,8], index: 8, kind: input, shape index: {}]
  %s9 = inlined_call_operand.vmem [shape: f32[12,1,8], index: 9, kind: input, shape index: {}]
  %s10 = inlined_call_operand.vmem [shape: f32[4,8,32], index: 10, kind: input, shape index: {}]
  %s11 = inlined_call_operand.vmem [shape: f32[1,32], index: 11, kind: input, shape index: {}]
  %s12 = inlined_call_operand.vmem [shape: f32[1,32], index: 12, kind: input, shape index: {}]
  %s13 = inlined_call_operand.vmem [shape: f32[1,32], index: 13, kind: input, shape index: {}]
  %s14 = inlined_call_operand.vmem [shape: f32[1,32], index: 14, kind: input, shape index: {}]
  %s15 = inlined_call_operand.vmem [shape: f32[1,32], index: 15, kind: input, shape index: {}]
  %s16 = inlined_call_operand.vmem [shape: f32[1,32], index: 16, kind: input, shape index: {}]
  %s17 = inlined_call_operand.vmem [shape: f32[1,32], index: 17, kind: input, shape index: {}]
  %s18 = inlined_call_operand.vmem [shape: f32[1,32], index: 18, kind: input, shape index: {}]
  %s19 = inlined_call_operand.vmem [shape: f32[1,32], index: 19, kind: input, shape index: {}]
  %s20 = inlined_call_operand.vmem [shape: f32[32,64], index: 20, kind: input, shape index: {}]
  %s21 = inlined_call_operand.vmem [shape: f32[1,64], index: 21, kind: input, shape index: {}]
  %s22 = inlined_call_operand.vmem [shape: f32[64,32], index: 22, kind: input, shape index: {}]
  %s23 = inlined_call_operand.vmem [shape: f32[1,32], index: 23, kind: input, shape index: {}]
  %s24 = inlined_call_operand.vmem [shape: f32[32,16], index: 24, kind: input, shape index: {}]
  %s25 = inlined_call_operand.vmem [shape: f32[1,16], index: 25, kind: input, shape index: {}]
  %s26 = inlined_call_operand.hbm [shape: f32[16,16], index: 26, kind: output, shape index: {}]
  %s27 = sld [smem:[#allocation0]]
  $region137: #{model_forward_pallas.1} parent=0
    _
  %s29 = ssub.s32 1, %s27
  %s30 = scalar_select 0, %s29, %s27
  $region1: #{model_forward_pallas.1} parent=0
    #allocation2 [shape = 'u8[8192]{0}', space=vmem, size = 0x2000, scoped, tag = 'output window, operand 0']
    #allocation3 [shape = 's32[2]{0}', space=sflag, size = 0x8, scoped, tag = 'scoped memory for model_forward_pallas.1']
    %31 = vsyncpa [#allocation3], 0
    %s32 = scalar_lea.sflag [#allocation3], 1
    %33 = vsyncpa %s32, 0
    loop: start=0, step=1, limit=4
    $region2: #{model_forward_pallas.1} parent=1 // loop_pre_header
      _
    $region3: #{model_forward_pallas.1} parent=1 // loop_header
      %s35 = sphi 0, %s39
      %p36 = scmp.ge.s32.totalorder %s35, 4
      %s45 = sphi 0, %s47
      %s48 = sphi 0, %s45
      %s49 = sphi 0, %s48
      %s65 = sphi 0, %s49
      %s69 = sphi 0, %s69
      %s71 = sphi 0, %s69
      %s72 = sphi 0, %s71
      %s86 = sphi 0, %s72
      %s90 = sphi 0, %s90
      %s92 = sphi 0, %s90
      %s93 = sphi 0, %s92
      %s107 = sphi 0, %s93
      %s111 = sphi 0, %s111
      %s113 = sphi 0, %s111
      %s114 = sphi 0, %s113
      %s128 = sphi 0, %s114
      %s132 = sphi 0, %s132
      %s134 = sphi 0, %s132
      %s135 = sphi 0, %s134
      %s149 = sphi 0, %s135
      %s153 = sphi 0, %s153
      %s155 = sphi 0, %s153
      %s156 = sphi 0, %s155
      %s170 = sphi 0, %s156
      %s174 = sphi 0, %s174
      %s176 = sphi 0, %s174
      %s177 = sphi 0, %s176
      %s191 = sphi 0, %s177
      %s195 = sphi 0, %s195
      %s197 = sphi 0, %s195
      %s198 = sphi 0, %s197
      %s212 = sphi 0, %s198
      %s216 = sphi 0, %s216
      %s218 = sphi 0, %s216
      %s219 = sphi 0, %s218
      %s233 = sphi 0, %s219
      %s237 = sphi 0, %s237
      %s239 = sphi 0, %s237
      %s240 = sphi 0, %s239
      %s254 = sphi 0, %s240
      %s258 = sphi 0, %s258
      %s260 = sphi 0, %s258
      %s261 = sphi 0, %s260
      %s275 = sphi 0, %s261
      %s279 = sphi 0, %s279
      %s281 = sphi 0, %s279
      %s282 = sphi 0, %s281
      %s296 = sphi 0, %s282
      %s300 = sphi 0, %s300
      %s302 = sphi 0, %s300
      %s303 = sphi 0, %s302
      %s317 = sphi 0, %s303
      %s321 = sphi 0, %s321
      %s323 = sphi 0, %s321
      %s324 = sphi 0, %s323
      %s338 = sphi 0, %s324
      %s342 = sphi 0, %s342
      %s344 = sphi 0, %s342
      %s345 = sphi 0, %s344
      %s359 = sphi 0, %s345
      %s363 = sphi 0, %s363
      %s365 = sphi 0, %s363
      %s366 = sphi 0, %s365
      %s380 = sphi 0, %s366
      %s384 = sphi 0, %s384
      %s386 = sphi 0, %s384
      %s387 = sphi 0, %s386
      %s401 = sphi 0, %s387
      %s405 = sphi 0, %s405
      %s407 = sphi 0, %s405
      %s408 = sphi 0, %s407
      %s422 = sphi 0, %s408
      %s426 = sphi 0, %s426
      %s428 = sphi 0, %s426
      %s429 = sphi 0, %s428
      %s443 = sphi 0, %s429
      %s447 = sphi 0, %s447
      %s449 = sphi 0, %s447
      %s450 = sphi 0, %s449
      %s464 = sphi 0, %s450
      %s468 = sphi 0, %s468
      %s470 = sphi 0, %s468
      %s471 = sphi 0, %s470
      %s485 = sphi 0, %s471
      %s489 = sphi 0, %s489
      %s491 = sphi 0, %s489
      %s492 = sphi 0, %s491
      %s506 = sphi 0, %s492
      %s510 = sphi 0, %s510
      %s512 = sphi 0, %s510
      %s513 = sphi 0, %s512
      %s527 = sphi 0, %s513
      %s531 = sphi 0, %s531
      %s533 = sphi 0, %s531
      %s534 = sphi 0, %s533
      %s548 = sphi 0, %s534
      %s552 = sphi 0, %s552
      %s554 = sphi 0, %s552
      %s555 = sphi 0, %s554
      %s569 = sphi 0, %s555
      %s573 = sphi 0, %s573
      %s575 = sphi 0, %s573
      %s576 = sphi 0, %s575
      %s590 = sphi 0, %s576
      %s596 = sphi 0, %s598
      %s599 = sphi 0, %s596
      %s600 = sphi 0, %s599
      %s616 = sphi 0, %s600
    $region4: #{model_forward_pallas.1} parent=1 // loop_header_branch
      %38 = sbr.rel (%p36) target = $region8
    $region5: #{model_forward_pallas.1} parent=1 // loop_body
      %s40 = ssub.s32 %s35, 1
      %s41 = ssub.s32 %s35, 2
      %s42 = sadd.s32 %s35, 1
      %s43 = ssub.s32 %s35, %s42
      %p44 = scmp.eq.s32.totalorder %s43, 0
      %s46 = sadd.s32 %s45, 1
      %s47 = scalar_select %p44, %s45, %s46
      %p50 = pneg %p44
      %p51 = scmp.eq.s32.totalorder %s35, 1
      %p52 = por %p50, %p51
      %p53 = scmp.ne.s32.totalorder %s45, %s48
      %p54 = scmp.eq.s32.totalorder %s35, 0
      %p55 = por %p53, %p54
      %p56 = scmp.ne.s32.totalorder %s45, %s48
      %p57 = scmp.eq.s32.totalorder %s40, 1
      %p58 = por %p56, %p57
      %p59 = scmp.ne.s32.totalorder %s48, %s49
      %p60 = scmp.eq.s32.totalorder %s40, 0
      %p61 = por %p59, %p60
      %p62 = scmp.ne.s32.totalorder %s48, %s49
      %p63 = scmp.eq.s32.totalorder %s41, 1
      %p64 = por %p62, %p63
      %p66 = scmp.ne.s32.totalorder %s49, %s65
      %p67 = scmp.eq.s32.totalorder %s41, 0
      %p68 = por %p66, %p67
      %s70 = sadd.s32 %s69, 1
      %p73 = scmp.eq.s32.totalorder %s35, 1
      %p74 = scmp.ne.s32.totalorder %s69, %s71
      %p75 = scmp.eq.s32.totalorder %s35, 0
      %p76 = por %p74, %p75
      %p77 = scmp.ne.s32.totalorder %s69, %s71
      %p78 = scmp.eq.s32.totalorder %s40, 1
      %p79 = por %p77, %p78
      %p80 = scmp.ne.s32.totalorder %s71, %s72
      %p81 = scmp.eq.s32.totalorder %s40, 0
      %p82 = por %p80, %p81
      %p83 = scmp.ne.s32.totalorder %s71, %s72
      %p84 = scmp.eq.s32.totalorder %s41, 1
      %p85 = por %p83, %p84
      %p87 = scmp.ne.s32.totalorder %s72, %s86
      %p88 = scmp.eq.s32.totalorder %s41, 0
      %p89 = por %p87, %p88
      %s91 = sadd.s32 %s90, 1
      %p94 = scmp.eq.s32.totalorder %s35, 1
      %p95 = scmp.ne.s32.totalorder %s90, %s92
      %p96 = scmp.eq.s32.totalorder %s35, 0
      %p97 = por %p95, %p96
      %p98 = scmp.ne.s32.totalorder %s90, %s92
      %p99 = scmp.eq.s32.totalorder %s40, 1
      %p100 = por %p98, %p99
      %p101 = scmp.ne.s32.totalorder %s92, %s93
      %p102 = scmp.eq.s32.totalorder %s40, 0
      %p103 = por %p101, %p102
      %p104 = scmp.ne.s32.totalorder %s92, %s93
      %p105 = scmp.eq.s32.totalorder %s41, 1
      %p106 = por %p104, %p105
      %p108 = scmp.ne.s32.totalorder %s93, %s107
      %p109 = scmp.eq.s32.totalorder %s41, 0
      %p110 = por %p108, %p109
      %s112 = sadd.s32 %s111, 1
      %p115 = scmp.eq.s32.totalorder %s35, 1
      %p116 = scmp.ne.s32.totalorder %s111, %s113
      %p117 = scmp.eq.s32.totalorder %s35, 0
      %p118 = por %p116, %p117
      %p119 = scmp.ne.s32.totalorder %s111, %s113
      %p120 = scmp.eq.s32.totalorder %s40, 1
      %p121 = por %p119, %p120
      %p122 = scmp.ne.s32.totalorder %s113, %s114
      %p123 = scmp.eq.s32.totalorder %s40, 0
      %p124 = por %p122, %p123
      %p125 = scmp.ne.s32.totalorder %s113, %s114
      %p126 = scmp.eq.s32.totalorder %s41, 1
      %p127 = por %p125, %p126
      %p129 = scmp.ne.s32.totalorder %s114, %s128
      %p130 = scmp.eq.s32.totalorder %s41, 0
      %p131 = por %p129, %p130
      %s133 = sadd.s32 %s132, 1
      %p136 = scmp.eq.s32.totalorder %s35, 1
      %p137 = scmp.ne.s32.totalorder %s132, %s134
      %p138 = scmp.eq.s32.totalorder %s35, 0
      %p139 = por %p137, %p138
      %p140 = scmp.ne.s32.totalorder %s132, %s134
      %p141 = scmp.eq.s32.totalorder %s40, 1
      %p142 = por %p140, %p141
      %p143 = scmp.ne.s32.totalorder %s134, %s135
      %p144 = scmp.eq.s32.totalorder %s40, 0
      %p145 = por %p143, %p144
      %p146 = scmp.ne.s32.totalorder %s134, %s135
      %p147 = scmp.eq.s32.totalorder %s41, 1
      %p148 = por %p146, %p147
      %p150 = scmp.ne.s32.totalorder %s135, %s149
      %p151 = scmp.eq.s32.totalorder %s41, 0
      %p152 = por %p150, %p151
      %s154 = sadd.s32 %s153, 1
      %p157 = scmp.eq.s32.totalorder %s35, 1
      %p158 = scmp.ne.s32.totalorder %s153, %s155
      %p159 = scmp.eq.s32.totalorder %s35, 0
      %p160 = por %p158, %p159
      %p161 = scmp.ne.s32.totalorder %s153, %s155
      %p162 = scmp.eq.s32.totalorder %s40, 1
      %p163 = por %p161, %p162
      %p164 = scmp.ne.s32.totalorder %s155, %s156
      %p165 = scmp.eq.s32.totalorder %s40, 0
      %p166 = por %p164, %p165
      %p167 = scmp.ne.s32.totalorder %s155, %s156
      %p168 = scmp.eq.s32.totalorder %s41, 1
      %p169 = por %p167, %p168
      %p171 = scmp.ne.s32.totalorder %s156, %s170
      %p172 = scmp.eq.s32.totalorder %s41, 0
      %p173 = por %p171, %p172
      %s175 = sadd.s32 %s174, 1
      %p178 = scmp.eq.s32.totalorder %s35, 1
      %p179 = scmp.ne.s32.totalorder %s174, %s176
      %p180 = scmp.eq.s32.totalorder %s35, 0
      %p181 = por %p179, %p180
      %p182 = scmp.ne.s32.totalorder %s174, %s176
      %p183 = scmp.eq.s32.totalorder %s40, 1
      %p184 = por %p182, %p183
      %p185 = scmp.ne.s32.totalorder %s176, %s177
      %p186 = scmp.eq.s32.totalorder %s40, 0
      %p187 = por %p185, %p186
      %p188 = scmp.ne.s32.totalorder %s176, %s177
      %p189 = scmp.eq.s32.totalorder %s41, 1
      %p190 = por %p188, %p189
      %p192 = scmp.ne.s32.totalorder %s177, %s191
      %p193 = scmp.eq.s32.totalorder %s41, 0
      %p194 = por %p192, %p193
      %s196 = sadd.s32 %s195, 1
      %p199 = scmp.eq.s32.totalorder %s35, 1
      %p200 = scmp.ne.s32.totalorder %s195, %s197
      %p201 = scmp.eq.s32.totalorder %s35, 0
      %p202 = por %p200, %p201
      %p203 = scmp.ne.s32.totalorder %s195, %s197
      %p204 = scmp.eq.s32.totalorder %s40, 1
      %p205 = por %p203, %p204
      %p206 = scmp.ne.s32.totalorder %s197, %s198
      %p207 = scmp.eq.s32.totalorder %s40, 0
      %p208 = por %p206, %p207
      %p209 = scmp.ne.s32.totalorder %s197, %s198
      %p210 = scmp.eq.s32.totalorder %s41, 1
      %p211 = por %p209, %p210
      %p213 = scmp.ne.s32.totalorder %s198, %s212
      %p214 = scmp.eq.s32.totalorder %s41, 0
      %p215 = por %p213, %p214
      %s217 = sadd.s32 %s216, 1
      %p220 = scmp.eq.s32.totalorder %s35, 1
      %p221 = scmp.ne.s32.totalorder %s216, %s218
      %p222 = scmp.eq.s32.totalorder %s35, 0
      %p223 = por %p221, %p222
      %p224 = scmp.ne.s32.totalorder %s216, %s218
      %p225 = scmp.eq.s32.totalorder %s40, 1
      %p226 = por %p224, %p225
      %p227 = scmp.ne.s32.totalorder %s218, %s219
      %p228 = scmp.eq.s32.totalorder %s40, 0
      %p229 = por %p227, %p228
      %p230 = scmp.ne.s32.totalorder %s218, %s219
      %p231 = scmp.eq.s32.totalorder %s41, 1
      %p232 = por %p230, %p231
      %p234 = scmp.ne.s32.totalorder %s219, %s233
      %p235 = scmp.eq.s32.totalorder %s41, 0
      %p236 = por %p234, %p235
      %s238 = sadd.s32 %s237, 1
      %p241 = scmp.eq.s32.totalorder %s35, 1
      %p242 = scmp.ne.s32.totalorder %s237, %s239
      %p243 = scmp.eq.s32.totalorder %s35, 0
      %p244 = por %p242, %p243
      %p245 = scmp.ne.s32.totalorder %s237, %s239
      %p246 = scmp.eq.s32.totalorder %s40, 1
      %p247 = por %p245, %p246
      %p248 = scmp.ne.s32.totalorder %s239, %s240
      %p249 = scmp.eq.s32.totalorder %s40, 0
      %p250 = por %p248, %p249
      %p251 = scmp.ne.s32.totalorder %s239, %s240
      %p252 = scmp.eq.s32.totalorder %s41, 1
      %p253 = por %p251, %p252
      %p255 = scmp.ne.s32.totalorder %s240, %s254
      %p256 = scmp.eq.s32.totalorder %s41, 0
      %p257 = por %p255, %p256
      %s259 = sadd.s32 %s258, 1
      %p262 = scmp.eq.s32.totalorder %s35, 1
      %p263 = scmp.ne.s32.totalorder %s258, %s260
      %p264 = scmp.eq.s32.totalorder %s35, 0
      %p265 = por %p263, %p264
      %p266 = scmp.ne.s32.totalorder %s258, %s260
      %p267 = scmp.eq.s32.totalorder %s40, 1
      %p268 = por %p266, %p267
      %p269 = scmp.ne.s32.totalorder %s260, %s261
      %p270 = scmp.eq.s32.totalorder %s40, 0
      %p271 = por %p269, %p270
      %p272 = scmp.ne.s32.totalorder %s260, %s261
      %p273 = scmp.eq.s32.totalorder %s41, 1
      %p274 = por %p272, %p273
      %p276 = scmp.ne.s32.totalorder %s261, %s275
      %p277 = scmp.eq.s32.totalorder %s41, 0
      %p278 = por %p276, %p277
      %s280 = sadd.s32 %s279, 1
      %p283 = scmp.eq.s32.totalorder %s35, 1
      %p284 = scmp.ne.s32.totalorder %s279, %s281
      %p285 = scmp.eq.s32.totalorder %s35, 0
      %p286 = por %p284, %p285
      %p287 = scmp.ne.s32.totalorder %s279, %s281
      %p288 = scmp.eq.s32.totalorder %s40, 1
      %p289 = por %p287, %p288
      %p290 = scmp.ne.s32.totalorder %s281, %s282
      %p291 = scmp.eq.s32.totalorder %s40, 0
      %p292 = por %p290, %p291
      %p293 = scmp.ne.s32.totalorder %s281, %s282
      %p294 = scmp.eq.s32.totalorder %s41, 1
      %p295 = por %p293, %p294
      %p297 = scmp.ne.s32.totalorder %s282, %s296
      %p298 = scmp.eq.s32.totalorder %s41, 0
      %p299 = por %p297, %p298
      %s301 = sadd.s32 %s300, 1
      %p304 = scmp.eq.s32.totalorder %s35, 1
      %p305 = scmp.ne.s32.totalorder %s300, %s302
      %p306 = scmp.eq.s32.totalorder %s35, 0
      %p307 = por %p305, %p306
      %p308 = scmp.ne.s32.totalorder %s300, %s302
      %p309 = scmp.eq.s32.totalorder %s40, 1
      %p310 = por %p308, %p309
      %p311 = scmp.ne.s32.totalorder %s302, %s303
      %p312 = scmp.eq.s32.totalorder %s40, 0
      %p313 = por %p311, %p312
      %p314 = scmp.ne.s32.totalorder %s302, %s303
      %p315 = scmp.eq.s32.totalorder %s41, 1
      %p316 = por %p314, %p315
      %p318 = scmp.ne.s32.totalorder %s303, %s317
      %p319 = scmp.eq.s32.totalorder %s41, 0
      %p320 = por %p318, %p319
      %s322 = sadd.s32 %s321, 1
      %p325 = scmp.eq.s32.totalorder %s35, 1
      %p326 = scmp.ne.s32.totalorder %s321, %s323
      %p327 = scmp.eq.s32.totalorder %s35, 0
      %p328 = por %p326, %p327
      %p329 = scmp.ne.s32.totalorder %s321, %s323
      %p330 = scmp.eq.s32.totalorder %s40, 1
      %p331 = por %p329, %p330
      %p332 = scmp.ne.s32.totalorder %s323, %s324
      %p333 = scmp.eq.s32.totalorder %s40, 0
      %p334 = por %p332, %p333
      %p335 = scmp.ne.s32.totalorder %s323, %s324
      %p336 = scmp.eq.s32.totalorder %s41, 1
      %p337 = por %p335, %p336
      %p339 = scmp.ne.s32.totalorder %s324, %s338
      %p340 = scmp.eq.s32.totalorder %s41, 0
      %p341 = por %p339, %p340
      %s343 = sadd.s32 %s342, 1
      %p346 = scmp.eq.s32.totalorder %s35, 1
      %p347 = scmp.ne.s32.totalorder %s342, %s344
      %p348 = scmp.eq.s32.totalorder %s35, 0
      %p349 = por %p347, %p348
      %p350 = scmp.ne.s32.totalorder %s342, %s344
      %p351 = scmp.eq.s32.totalorder %s40, 1
      %p352 = por %p350, %p351
      %p353 = scmp.ne.s32.totalorder %s344, %s345
      %p354 = scmp.eq.s32.totalorder %s40, 0
      %p355 = por %p353, %p354
      %p356 = scmp.ne.s32.totalorder %s344, %s345
      %p357 = scmp.eq.s32.totalorder %s41, 1
      %p358 = por %p356, %p357
      %p360 = scmp.ne.s32.totalorder %s345, %s359
      %p361 = scmp.eq.s32.totalorder %s41, 0
      %p362 = por %p360, %p361
      %s364 = sadd.s32 %s363, 1
      %p367 = scmp.eq.s32.totalorder %s35, 1
      %p368 = scmp.ne.s32.totalorder %s363, %s365
      %p369 = scmp.eq.s32.totalorder %s35, 0
      %p370 = por %p368, %p369
      %p371 = scmp.ne.s32.totalorder %s363, %s365
      %p372 = scmp.eq.s32.totalorder %s40, 1
      %p373 = por %p371, %p372
      %p374 = scmp.ne.s32.totalorder %s365, %s366
      %p375 = scmp.eq.s32.totalorder %s40, 0
      %p376 = por %p374, %p375
      %p377 = scmp.ne.s32.totalorder %s365, %s366
      %p378 = scmp.eq.s32.totalorder %s41, 1
      %p379 = por %p377, %p378
      %p381 = scmp.ne.s32.totalorder %s366, %s380
      %p382 = scmp.eq.s32.totalorder %s41, 0
      %p383 = por %p381, %p382
      %s385 = sadd.s32 %s384, 1
      %p388 = scmp.eq.s32.totalorder %s35, 1
      %p389 = scmp.ne.s32.totalorder %s384, %s386
      %p390 = scmp.eq.s32.totalorder %s35, 0
      %p391 = por %p389, %p390
      %p392 = scmp.ne.s32.totalorder %s384, %s386
      %p393 = scmp.eq.s32.totalorder %s40, 1
      %p394 = por %p392, %p393
      %p395 = scmp.ne.s32.totalorder %s386, %s387
      %p396 = scmp.eq.s32.totalorder %s40, 0
      %p397 = por %p395, %p396
      %p398 = scmp.ne.s32.totalorder %s386, %s387
      %p399 = scmp.eq.s32.totalorder %s41, 1
      %p400 = por %p398, %p399
      %p402 = scmp.ne.s32.totalorder %s387, %s401
      %p403 = scmp.eq.s32.totalorder %s41, 0
      %p404 = por %p402, %p403
      %s406 = sadd.s32 %s405, 1
      %p409 = scmp.eq.s32.totalorder %s35, 1
      %p410 = scmp.ne.s32.totalorder %s405, %s407
      %p411 = scmp.eq.s32.totalorder %s35, 0
      %p412 = por %p410, %p411
      %p413 = scmp.ne.s32.totalorder %s405, %s407
      %p414 = scmp.eq.s32.totalorder %s40, 1
      %p415 = por %p413, %p414
      %p416 = scmp.ne.s32.totalorder %s407, %s408
      %p417 = scmp.eq.s32.totalorder %s40, 0
      %p418 = por %p416, %p417
      %p419 = scmp.ne.s32.totalorder %s407, %s408
      %p420 = scmp.eq.s32.totalorder %s41, 1
      %p421 = por %p419, %p420
      %p423 = scmp.ne.s32.totalorder %s408, %s422
      %p424 = scmp.eq.s32.totalorder %s41, 0
      %p425 = por %p423, %p424
      %s427 = sadd.s32 %s426, 1
      %p430 = scmp.eq.s32.totalorder %s35, 1
      %p431 = scmp.ne.s32.totalorder %s426, %s428
      %p432 = scmp.eq.s32.totalorder %s35, 0
      %p433 = por %p431, %p432
      %p434 = scmp.ne.s32.totalorder %s426, %s428
      %p435 = scmp.eq.s32.totalorder %s40, 1
      %p436 = por %p434, %p435
      %p437 = scmp.ne.s32.totalorder %s428, %s429
      %p438 = scmp.eq.s32.totalorder %s40, 0
      %p439 = por %p437, %p438
      %p440 = scmp.ne.s32.totalorder %s428, %s429
      %p441 = scmp.eq.s32.totalorder %s41, 1
      %p442 = por %p440, %p441
      %p444 = scmp.ne.s32.totalorder %s429, %s443
      %p445 = scmp.eq.s32.totalorder %s41, 0
      %p446 = por %p444, %p445
      %s448 = sadd.s32 %s447, 1
      %p451 = scmp.eq.s32.totalorder %s35, 1
      %p452 = scmp.ne.s32.totalorder %s447, %s449
      %p453 = scmp.eq.s32.totalorder %s35, 0
      %p454 = por %p452, %p453
      %p455 = scmp.ne.s32.totalorder %s447, %s449
      %p456 = scmp.eq.s32.totalorder %s40, 1
      %p457 = por %p455, %p456
      %p458 = scmp.ne.s32.totalorder %s449, %s450
      %p459 = scmp.eq.s32.totalorder %s40, 0
      %p460 = por %p458, %p459
      %p461 = scmp.ne.s32.totalorder %s449, %s450
      %p462 = scmp.eq.s32.totalorder %s41, 1
      %p463 = por %p461, %p462
      %p465 = scmp.ne.s32.totalorder %s450, %s464
      %p466 = scmp.eq.s32.totalorder %s41, 0
      %p467 = por %p465, %p466
      %s469 = sadd.s32 %s468, 1
      %p472 = scmp.eq.s32.totalorder %s35, 1
      %p473 = scmp.ne.s32.totalorder %s468, %s470
      %p474 = scmp.eq.s32.totalorder %s35, 0
      %p475 = por %p473, %p474
      %p476 = scmp.ne.s32.totalorder %s468, %s470
      %p477 = scmp.eq.s32.totalorder %s40, 1
      %p478 = por %p476, %p477
      %p479 = scmp.ne.s32.totalorder %s470, %s471
      %p480 = scmp.eq.s32.totalorder %s40, 0
      %p481 = por %p479, %p480
      %p482 = scmp.ne.s32.totalorder %s470, %s471
      %p483 = scmp.eq.s32.totalorder %s41, 1
      %p484 = por %p482, %p483
      %p486 = scmp.ne.s32.totalorder %s471, %s485
      %p487 = scmp.eq.s32.totalorder %s41, 0
      %p488 = por %p486, %p487
      %s490 = sadd.s32 %s489, 1
      %p493 = scmp.eq.s32.totalorder %s35, 1
      %p494 = scmp.ne.s32.totalorder %s489, %s491
      %p495 = scmp.eq.s32.totalorder %s35, 0
      %p496 = por %p494, %p495
      %p497 = scmp.ne.s32.totalorder %s489, %s491
      %p498 = scmp.eq.s32.totalorder %s40, 1
      %p499 = por %p497, %p498
      %p500 = scmp.ne.s32.totalorder %s491, %s492
      %p501 = scmp.eq.s32.totalorder %s40, 0
      %p502 = por %p500, %p501
      %p503 = scmp.ne.s32.totalorder %s491, %s492
      %p504 = scmp.eq.s32.totalorder %s41, 1
      %p505 = por %p503, %p504
      %p507 = scmp.ne.s32.totalorder %s492, %s506
      %p508 = scmp.eq.s32.totalorder %s41, 0
      %p509 = por %p507, %p508
      %s511 = sadd.s32 %s510, 1
      %p514 = scmp.eq.s32.totalorder %s35, 1
      %p515 = scmp.ne.s32.totalorder %s510, %s512
      %p516 = scmp.eq.s32.totalorder %s35, 0
      %p517 = por %p515, %p516
      %p518 = scmp.ne.s32.totalorder %s510, %s512
      %p519 = scmp.eq.s32.totalorder %s40, 1
      %p520 = por %p518, %p519
      %p521 = scmp.ne.s32.totalorder %s512, %s513
      %p522 = scmp.eq.s32.totalorder %s40, 0
      %p523 = por %p521, %p522
      %p524 = scmp.ne.s32.totalorder %s512, %s513
      %p525 = scmp.eq.s32.totalorder %s41, 1
      %p526 = por %p524, %p525
      %p528 = scmp.ne.s32.totalorder %s513, %s527
      %p529 = scmp.eq.s32.totalorder %s41, 0
      %p530 = por %p528, %p529
      %s532 = sadd.s32 %s531, 1
      %p535 = scmp.eq.s32.totalorder %s35, 1
      %p536 = scmp.ne.s32.totalorder %s531, %s533
      %p537 = scmp.eq.s32.totalorder %s35, 0
      %p538 = por %p536, %p537
      %p539 = scmp.ne.s32.totalorder %s531, %s533
      %p540 = scmp.eq.s32.totalorder %s40, 1
      %p541 = por %p539, %p540
      %p542 = scmp.ne.s32.totalorder %s533, %s534
      %p543 = scmp.eq.s32.totalorder %s40, 0
      %p544 = por %p542, %p543
      %p545 = scmp.ne.s32.totalorder %s533, %s534
      %p546 = scmp.eq.s32.totalorder %s41, 1
      %p547 = por %p545, %p546
      %p549 = scmp.ne.s32.totalorder %s534, %s548
      %p550 = scmp.eq.s32.totalorder %s41, 0
      %p551 = por %p549, %p550
      %s553 = sadd.s32 %s552, 1
      %p556 = scmp.eq.s32.totalorder %s35, 1
      %p557 = scmp.ne.s32.totalorder %s552, %s554
      %p558 = scmp.eq.s32.totalorder %s35, 0
      %p559 = por %p557, %p558
      %p560 = scmp.ne.s32.totalorder %s552, %s554
      %p561 = scmp.eq.s32.totalorder %s40, 1
      %p562 = por %p560, %p561
      %p563 = scmp.ne.s32.totalorder %s554, %s555
      %p564 = scmp.eq.s32.totalorder %s40, 0
      %p565 = por %p563, %p564
      %p566 = scmp.ne.s32.totalorder %s554, %s555
      %p567 = scmp.eq.s32.totalorder %s41, 1
      %p568 = por %p566, %p567
      %p570 = scmp.ne.s32.totalorder %s555, %s569
      %p571 = scmp.eq.s32.totalorder %s41, 0
      %p572 = por %p570, %p571
      %s574 = sadd.s32 %s573, 1
      %p577 = scmp.eq.s32.totalorder %s35, 1
      %p578 = scmp.ne.s32.totalorder %s573, %s575
      %p579 = scmp.eq.s32.totalorder %s35, 0
      %p580 = por %p578, %p579
      %p581 = scmp.ne.s32.totalorder %s573, %s575
      %p582 = scmp.eq.s32.totalorder %s40, 1
      %p583 = por %p581, %p582
      %p584 = scmp.ne.s32.totalorder %s575, %s576
      %p585 = scmp.eq.s32.totalorder %s40, 0
      %p586 = por %p584, %p585
      %p587 = scmp.ne.s32.totalorder %s575, %s576
      %p588 = scmp.eq.s32.totalorder %s41, 1
      %p589 = por %p587, %p588
      %p591 = scmp.ne.s32.totalorder %s576, %s590
      %p592 = scmp.eq.s32.totalorder %s41, 0
      %p593 = por %p591, %p592
      %s594 = ssub.s32 %s35, %s42
      %p595 = scmp.eq.s32.totalorder %s594, 0
      %s597 = sadd.s32 %s596, 1
      %s598 = scalar_select %p595, %s596, %s597
      %p601 = pneg %p595
      %p602 = scmp.eq.s32.totalorder %s35, 1
      %p603 = por %p601, %p602
      %p604 = scmp.ne.s32.totalorder %s596, %s599
      %p605 = scmp.eq.s32.totalorder %s35, 0
      %p606 = por %p604, %p605
      %p607 = scmp.ne.s32.totalorder %s596, %s599
      %p608 = scmp.eq.s32.totalorder %s40, 1
      %p609 = por %p607, %p608
      %p610 = scmp.ne.s32.totalorder %s599, %s600
      %p611 = scmp.eq.s32.totalorder %s40, 0
      %p612 = por %p610, %p611
      %p613 = scmp.ne.s32.totalorder %s599, %s600
      %p614 = scmp.eq.s32.totalorder %s41, 1
      %p615 = por %p613, %p614
      %p617 = scmp.ne.s32.totalorder %s600, %s616
      %p618 = scmp.eq.s32.totalorder %s41, 0
      %p619 = por %p617, %p618
      %p620 = scmp.le.s32.totalorder 1, %s35
      %p621 = scmp.lt.s32.totalorder %s35, 3
      %p622 = pnand %p620, %p621
      %p623 = pneg %p622
      // Predicated region
      $region9: #{model_forward_pallas.1} parent=5 // pred_check
        _
      $region10: #{model_forward_pallas.1} parent=5 // pred_check_branch
        %625 = sbr.rel (%p622) target = $region12
      $region11: #{model_forward_pallas.1} parent=5 // pred_region
        %s626 = ssub.s32 %s35, 1
        // Predicated region
        $region13: #{model_forward_pallas.1} parent=11 // pred_check
          %p627 = pneg %p82
        $region14: #{model_forward_pallas.1} parent=11 // pred_check_branch
          %629 = sbr.rel (%p627) target = $region16
        $region15: #{model_forward_pallas.1} parent=11 // pred_region
          _
        $region16: #{model_forward_pallas.1} parent=11 // pred_fallthru
          _
        // Predicated region
        $region17: #{model_forward_pallas.1} parent=11 // pred_check
          %p630 = pneg %p103
        $region18: #{model_forward_pallas.1} parent=11 // pred_check_branch
          %632 = sbr.rel (%p630) target = $region20
        $region19: #{model_forward_pallas.1} parent=11 // pred_region
          _
        $region20: #{model_forward_pallas.1} parent=11 // pred_fallthru
          _
        // Predicated region
        $region21: #{model_forward_pallas.1} parent=11 // pred_check
          %p633 = pneg %p124
        $region22: #{model_forward_pallas.1} parent=11 // pred_check_branch
          %635 = sbr.rel (%p633) target = $region24
        $region23: #{model_forward_pallas.1} parent=11 // pred_region
          _
        $region24: #{model_forward_pallas.1} parent=11 // pred_fallthru
          _
        // Predicated region
        $region25: #{model_forward_pallas.1} parent=11 // pred_check
          %p636 = pneg %p145
        $region26: #{model_forward_pallas.1} parent=11 // pred_check_branch
          %638 = sbr.rel (%p636) target = $region28
        $region27: #{model_forward_pallas.1} parent=11 // pred_region
          _
        $region28: #{model_forward_pallas.1} parent=11 // pred_fallthru
          _
        // Predicated region
        $region29: #{model_forward_pallas.1} parent=11 // pred_check
          %p639 = pneg %p166
        $region30: #{model_forward_pallas.1} parent=11 // pred_check_branch
          %641 = sbr.rel (%p639) target = $region32
        $region31: #{model_forward_pallas.1} parent=11 // pred_region
          _
        $region32: #{model_forward_pallas.1} parent=11 // pred_fallthru
          _
        // Predicated region
        $region33: #{model_forward_pallas.1} parent=11 // pred_check
          %p642 = pneg %p187
        $region34: #{model_forward_pallas.1} parent=11 // pred_check_branch
          %644 = sbr.rel (%p642) target = $region36
        $region35: #{model_forward_pallas.1} parent=11 // pred_region
          _
        $region36: #{model_forward_pallas.1} parent=11 // pred_fallthru
          _
        // Predicated region
        $region37: #{model_forward_pallas.1} parent=11 // pred_check
          %p645 = pneg %p208
        $region38: #{model_forward_pallas.1} parent=11 // pred_check_branch
          %647 = sbr.rel (%p645) target = $region40
        $region39: #{model_forward_pallas.1} parent=11 // pred_region
          _
        $region40: #{model_forward_pallas.1} parent=11 // pred_fallthru
          _
        // Predicated region
        $region41: #{model_forward_pallas.1} parent=11 // pred_check
          %p648 = pneg %p229
        $region42: #{model_forward_pallas.1} parent=11 // pred_check_branch
          %650 = sbr.rel (%p648) target = $region44
        $region43: #{model_forward_pallas.1} parent=11 // pred_region
          _
        $region44: #{model_forward_pallas.1} parent=11 // pred_fallthru
          _
        // Predicated region
        $region45: #{model_forward_pallas.1} parent=11 // pred_check
          %p651 = pneg %p250
        $region46: #{model_forward_pallas.1} parent=11 // pred_check_branch
          %653 = sbr.rel (%p651) target = $region48
        $region47: #{model_forward_pallas.1} parent=11 // pred_region
          _
        $region48: #{model_forward_pallas.1} parent=11 // pred_fallthru
          _
        // Predicated region
        $region49: #{model_forward_pallas.1} parent=11 // pred_check
          %p654 = pneg %p271
        $region50: #{model_forward_pallas.1} parent=11 // pred_check_branch
          %656 = sbr.rel (%p654) target = $region52
        $region51: #{model_forward_pallas.1} parent=11 // pred_region
          _
        $region52: #{model_forward_pallas.1} parent=11 // pred_fallthru
          _
        // Predicated region
        $region53: #{model_forward_pallas.1} parent=11 // pred_check
          %p657 = pneg %p292
        $region54: #{model_forward_pallas.1} parent=11 // pred_check_branch
          %659 = sbr.rel (%p657) target = $region56
        $region55: #{model_forward_pallas.1} parent=11 // pred_region
          _
        $region56: #{model_forward_pallas.1} parent=11 // pred_fallthru
          _
        // Predicated region
        $region57: #{model_forward_pallas.1} parent=11 // pred_check
          %p660 = pneg %p313
        $region58: #{model_forward_pallas.1} parent=11 // pred_check_branch
          %662 = sbr.rel (%p660) target = $region60
        $region59: #{model_forward_pallas.1} parent=11 // pred_region
          _
        $region60: #{model_forward_pallas.1} parent=11 // pred_fallthru
          _
        // Predicated region
        $region61: #{model_forward_pallas.1} parent=11 // pred_check
          %p663 = pneg %p334
        $region62: #{model_forward_pallas.1} parent=11 // pred_check_branch
          %665 = sbr.rel (%p663) target = $region64
        $region63: #{model_forward_pallas.1} parent=11 // pred_region
          _
        $region64: #{model_forward_pallas.1} parent=11 // pred_fallthru
          _
        // Predicated region
        $region65: #{model_forward_pallas.1} parent=11 // pred_check
          %p666 = pneg %p355
        $region66: #{model_forward_pallas.1} parent=11 // pred_check_branch
          %668 = sbr.rel (%p666) target = $region68
        $region67: #{model_forward_pallas.1} parent=11 // pred_region
          _
        $region68: #{model_forward_pallas.1} parent=11 // pred_fallthru
          _
        // Predicated region
        $region69: #{model_forward_pallas.1} parent=11 // pred_check
          %p669 = pneg %p376
        $region70: #{model_forward_pallas.1} parent=11 // pred_check_branch
          %671 = sbr.rel (%p669) target = $region72
        $region71: #{model_forward_pallas.1} parent=11 // pred_region
          _
        $region72: #{model_forward_pallas.1} parent=11 // pred_fallthru
          _
        // Predicated region
        $region73: #{model_forward_pallas.1} parent=11 // pred_check
          %p672 = pneg %p397
        $region74: #{model_forward_pallas.1} parent=11 // pred_check_branch
          %674 = sbr.rel (%p672) target = $region76
        $region75: #{model_forward_pallas.1} parent=11 // pred_region
          _
        $region76: #{model_forward_pallas.1} parent=11 // pred_fallthru
          _
        // Predicated region
        $region77: #{model_forward_pallas.1} parent=11 // pred_check
          %p675 = pneg %p418
        $region78: #{model_forward_pallas.1} parent=11 // pred_check_branch
          %677 = sbr.rel (%p675) target = $region80
        $region79: #{model_forward_pallas.1} parent=11 // pred_region
          _
        $region80: #{model_forward_pallas.1} parent=11 // pred_fallthru
          _
        // Predicated region
        $region81: #{model_forward_pallas.1} parent=11 // pred_check
          %p678 = pneg %p439
        $region82: #{model_forward_pallas.1} parent=11 // pred_check_branch
          %680 = sbr.rel (%p678) target = $region84
        $region83: #{model_forward_pallas.1} parent=11 // pred_region
          _
        $region84: #{model_forward_pallas.1} parent=11 // pred_fallthru
          _
        // Predicated region
        $region85: #{model_forward_pallas.1} parent=11 // pred_check
          %p681 = pneg %p460
        $region86: #{model_forward_pallas.1} parent=11 // pred_check_branch
          %683 = sbr.rel (%p681) target = $region88
        $region87: #{model_forward_pallas.1} parent=11 // pred_region
          _
        $region88: #{model_forward_pallas.1} parent=11 // pred_fallthru
          _
        // Predicated region
        $region89: #{model_forward_pallas.1} parent=11 // pred_check
          %p684 = pneg %p481
        $region90: #{model_forward_pallas.1} parent=11 // pred_check_branch
          %686 = sbr.rel (%p684) target = $region92
        $region91: #{model_forward_pallas.1} parent=11 // pred_region
          _
        $region92: #{model_forward_pallas.1} parent=11 // pred_fallthru
          _
        // Predicated region
        $region93: #{model_forward_pallas.1} parent=11 // pred_check
          %p687 = pneg %p502
        $region94: #{model_forward_pallas.1} parent=11 // pred_check_branch
          %689 = sbr.rel (%p687) target = $region96
        $region95: #{model_forward_pallas.1} parent=11 // pred_region
          _
        $region96: #{model_forward_pallas.1} parent=11 // pred_fallthru
          _
        // Predicated region
        $region97: #{model_forward_pallas.1} parent=11 // pred_check
          %p690 = pneg %p523
        $region98: #{model_forward_pallas.1} parent=11 // pred_check_branch
          %692 = sbr.rel (%p690) target = $region100
        $region99: #{model_forward_pallas.1} parent=11 // pred_region
          _
        $region100: #{model_forward_pallas.1} parent=11 // pred_fallthru
          _
        // Predicated region
        $region101: #{model_forward_pallas.1} parent=11 // pred_check
          %p693 = pneg %p544
        $region102: #{model_forward_pallas.1} parent=11 // pred_check_branch
          %695 = sbr.rel (%p693) target = $region104
        $region103: #{model_forward_pallas.1} parent=11 // pred_region
          _
        $region104: #{model_forward_pallas.1} parent=11 // pred_fallthru
          _
        // Predicated region
        $region105: #{model_forward_pallas.1} parent=11 // pred_check
          %p696 = pneg %p565
        $region106: #{model_forward_pallas.1} parent=11 // pred_check_branch
          %698 = sbr.rel (%p696) target = $region108
        $region107: #{model_forward_pallas.1} parent=11 // pred_region
          _
        $region108: #{model_forward_pallas.1} parent=11 // pred_fallthru
          _
        // Predicated region
        $region109: #{model_forward_pallas.1} parent=11 // pred_check
          %p699 = pneg %p586
        $region110: #{model_forward_pallas.1} parent=11 // pred_check_branch
          %701 = sbr.rel (%p699) target = $region112
        $region111: #{model_forward_pallas.1} parent=11 // pred_region
          _
        $region112: #{model_forward_pallas.1} parent=11 // pred_fallthru
          _
      $region12: #{model_forward_pallas.1} parent=5 // pred_fallthru
        _
      %p702 = scmp.lt.s32.totalorder %s35, 2
      // Predicated region
      $region113: #{model_forward_pallas.1} parent=5 // pred_check
        %p703 = pneg %p702
      $region114: #{model_forward_pallas.1} parent=5 // pred_check_branch
        %705 = sbr.rel (%p703) target = $region116
      $region115: #{model_forward_pallas.1} parent=5 // pred_region
        // Predicated region
        $region117: #{model_forward_pallas.1} parent=115 // pred_check
          %p706 = pneg %p55
        $region118: #{model_forward_pallas.1} parent=115 // pred_check_branch
          %708 = sbr.rel (%p706) target = $region120
        $region119: #{model_forward_pallas.1} parent=115 // pred_region
          %p709 = scmp.lt.s32.totalorder %s35, 1
          %s710 = scalar_select %p709, %s35, 1
          %s711 = smul.addr %s710, 8
          %s712 = scalar_lea.vmem %s0, %s711
        $region120: #{model_forward_pallas.1} parent=115 // pred_fallthru
          _
      $region116: #{model_forward_pallas.1} parent=5 // pred_fallthru
        _
      %p713 = scmp.le.s32.totalorder 1, %s35
      %p714 = scmp.lt.s32.totalorder %s35, 3
      %p715 = pnand %p713, %p714
      %p716 = pneg %p715
      // Predicated region
      $region121: #{model_forward_pallas.1} parent=5 // pred_check
        _
      $region122: #{model_forward_pallas.1} parent=5 // pred_check_branch
        %718 = sbr.rel (%p715) target = $region124
      $region123: #{model_forward_pallas.1} parent=5 // pred_region
        %s719 = ssub.s32 %s35, 1
        %p720 = scmp.lt.s32.totalorder %s40, 1
        %s721 = scalar_select %p720, %s40, 1
        %s722 = smul.addr %s721, 8
        %s723 = scalar_lea.vmem %s0, %s722
        %p724 = pneg %p61
        %p725 = pneg %p58
        %p726 = pneg %p82
        %p727 = pneg %p79
        %p728 = pneg %p103
        %p729 = pneg %p100
        %p730 = pneg %p124
        %p731 = pneg %p121
        %p732 = pneg %p145
        %p733 = pneg %p142
        %p734 = pneg %p166
        %p735 = pneg %p163
        %p736 = pneg %p187
        %p737 = pneg %p184
        %p738 = pneg %p208
        %p739 = pneg %p205
        %p740 = pneg %p229
        %p741 = pneg %p226
        %p742 = pneg %p250
        %p743 = pneg %p247
        %p744 = pneg %p271
        %p745 = pneg %p268
        %p746 = pneg %p292
        %p747 = pneg %p289
        %p748 = pneg %p313
        %p749 = pneg %p310
        %p750 = pneg %p334
        %p751 = pneg %p331
        %p752 = pneg %p355
        %p753 = pneg %p352
        %p754 = pneg %p376
        %p755 = pneg %p373
        %p756 = pneg %p397
        %p757 = pneg %p394
        %p758 = pneg %p418
        %p759 = pneg %p415
        %p760 = pneg %p439
        %p761 = pneg %p436
        %p762 = pneg %p460
        %p763 = pneg %p457
        %p764 = pneg %p481
        %p765 = pneg %p478
        %p766 = pneg %p502
        %p767 = pneg %p499
        %p768 = pneg %p523
        %p769 = pneg %p520
        %p770 = pneg %p544
        %p771 = pneg %p541
        %p772 = pneg %p565
        %p773 = pneg %p562
        %p774 = pneg %p586
        %p775 = pneg %p583
        %p776 = pneg %p612
        %p777 = pneg %p609
        %s778 = sand.u32 %s599, 1
        %s779 = scalar_lea.sflag [#allocation3], %s778
        %s780 = sand.u32 %s599, 1
        %s781 = smul.addr %s780, 8
        %s782 = scalar_lea.vmem [#allocation2], %s781
        %p783 = scmp.lt.s32.totalorder %s40, 1
        %s784 = scalar_select %p783, %s40, 1
        %s785 = smul.addr %s784, 8
        %s786 = scalar_lea.vmem %s0, %s785
        %v787 = vld [vmem:[%s1] sm:$0xff]
        %v788 = vld [vmem:[%s786] sm:$0xff]
        %v789 = vld [vmem:[%s2] sm:$0xff]
        %v790 = vld [vmem:[%s2 + $0x8] sm:$0xff]
        %v791 = vld [vmem:[%s3] sm:$0x1]
        %v793 = vperm.slane %v791, 0
        %vm795 = vcmask 130048
        %v797 = vsel %vm795, %v788, 0
        %799 = vmatpush.msra.mxu0 0.0
        %800 = vmatpush.msra.mxu0 0.0
        %801 = vmatpush.msra.mxu0 0.0
        %802 = vmatpush.msra.mxu0 0.0
        %803 = vmatpush.msra.mxu0 0.0
        %804 = vmatpush.msra.mxu0 0.0
        %805 = vmatpush.msra.mxu0 0.0
        %806 = vmatpush.msra.mxu0 0.0
        %807 = vmatpush.msra.mxu0 0.0
        %808 = vmatpush.msra.mxu0 0.0
        %809 = vmatpush.msra.mxu0 0.0
        %810 = vmatpush.msra.mxu0 0.0
        %811 = vmatpush.msra.mxu0 0.0
        %812 = vmatpush.msra.mxu0 0.0
        %813 = vmatpush.msra.mxu0 %v790
        %814 = vmatpush.msra.mxu0 %v789
        %815 = vmatmul.f32.gmra.mxu0 %v797
        %v816 = vpop.f32.mrf.mxu0
        %v817 = vadd.f32 %v793, %v816
        %818 = vdwg.mxu0
        %vm819 = vcmask 261120
        %v820 = vsel %vm819, %v817, 0.0
        %821 = vadd.xlane.f32.xlu0 %v820
        %v822 = vpop.xlane.xlu0 %821
        %v823 = vrcp.pop 32.0
        %v824 = vmul.f32 32.0, %v823
        %v825 = vsub.f32 1.0, %v824
        %v826 = vmul.f32 %v823, %v825
        %v827 = vadd.f32 %v823, %v826
        %vm828 = vweird.f32 %v823
        %v829 = vsel %vm828, %v823, %v827
        %v830 = vmul.f32 %v822, %v829
        %v831 = vsub.f32 %v817, %v830
        %v832 = vmul.f32 %v831, %v831
        %v833 = vsel %vm819, %v832, 0.0
        %834 = vadd.xlane.f32.xlu0 %v833
        %v835 = vpop.xlane.xlu0 %834
        %v836 = vmul.f32 %v835, %v829
        %v837 = vadd.f32 %v836, 1e-05
        %v838 = vrsqrt.pop %v837
        %v839 = vmul.f32 %v838, %v837
        %v840 = vmul.f32 %v839, %v838
        %v841 = vmul.f32 0.5, %v840
        %v842 = vsub.f32 1.5, %v841
        %v843 = vmul.f32 %v838, %v842
        %vm844 = vweird.f32 %v837
        %vm845 = vweird.f32 %v838
        %vm846 = vmor %vm844, %vm845
        %v847 = vsel %vm846, %v838, %v843
        %v848 = vmul.f32 %v831, %v847
        %v849 = vld [vmem:[%s12] sm:$0x1]
        %v851 = vperm.slane %v849, 0
        %v853 = vmul.f32 %v848, %v851
        %v854 = vld [vmem:[%s13] sm:$0x1]
        %v856 = vperm.slane %v854, 0
        %v858 = vadd.f32 %v853, %v856
        %v859 = vld [vmem:[%s4] sm:$0xff]
        %v860 = vld [vmem:[%s4 + $0x8] sm:$0xff]
        %v861 = vld [vmem:[%s4 + $0x10] sm:$0xff]
        %v862 = vld [vmem:[%s4 + $0x18] sm:$0xff]
        %v863 = vld [vmem:[%s5] sm:$0x1]
        %v865 = vperm.slane %v863, 0
        %v868 = vsel %vm819, %v858, 0
        %870 = vmatpush.msra.mxu0 0.0
        %871 = vmatpush.msra.mxu0 0.0
        %872 = vmatpush.msra.mxu0 0.0
        %873 = vmatpush.msra.mxu0 0.0
        %874 = vmatpush.msra.mxu0 0.0
        %875 = vmatpush.msra.mxu0 0.0
        %876 = vmatpush.msra.mxu0 0.0
        %877 = vmatpush.msra.mxu0 0.0
        %878 = vmatpush.msra.mxu0 0.0
        %879 = vmatpush.msra.mxu0 0.0
        %880 = vmatpush.msra.mxu0 0.0
        %881 = vmatpush.msra.mxu0 0.0
        %882 = vmatpush.msra.mxu0 %v862
        %883 = vmatpush.msra.mxu0 %v861
        %884 = vmatpush.msra.mxu0 %v860
        %885 = vmatpush.msra.mxu0 %v859
        %886 = vmatmul.f32.gmra.mxu0 %v868
        %v887 = vpop.f32.mrf.mxu0
        %v888 = vadd.f32 %v865, %v887
        %889 = vdwg.mxu0
        %s890 = scalar_lea.vmem %s4, 128
        %v891 = vld [vmem:[%s890] sm:$0xff]
        %v892 = vld [vmem:[%s890 + $0x8] sm:$0xff]
        %v893 = vld [vmem:[%s890 + $0x10] sm:$0xff]
        %v894 = vld [vmem:[%s890 + $0x18] sm:$0xff]
        %s895 = scalar_lea.vmem %s5, 4
        %v896 = vld [vmem:[%s895] sm:$0x1]
        %v898 = vperm.slane %v896, 0
        %900 = vmatpush.msra.mxu0 0.0
        %901 = vmatpush.msra.mxu0 0.0
        %902 = vmatpush.msra.mxu0 0.0
        %903 = vmatpush.msra.mxu0 0.0
        %904 = vmatpush.msra.mxu0 0.0
        %905 = vmatpush.msra.mxu0 0.0
        %906 = vmatpush.msra.mxu0 0.0
        %907 = vmatpush.msra.mxu0 0.0
        %908 = vmatpush.msra.mxu0 0.0
        %909 = vmatpush.msra.mxu0 0.0
        %910 = vmatpush.msra.mxu0 0.0
        %911 = vmatpush.msra.mxu0 0.0
        %912 = vmatpush.msra.mxu0 %v894
        %913 = vmatpush.msra.mxu0 %v893
        %914 = vmatpush.msra.mxu0 %v892
        %915 = vmatpush.msra.mxu0 %v891
        %916 = vmatmul.f32.gmra.mxu0 %v868
        %v917 = vpop.f32.mrf.mxu0
        %v918 = vadd.f32 %v898, %v917
        %919 = vdwg.mxu0
        %s920 = scalar_lea.vmem %s4, 256
        %v921 = vld [vmem:[%s920] sm:$0xff]
        %v922 = vld [vmem:[%s920 + $0x8] sm:$0xff]
        %v923 = vld [vmem:[%s920 + $0x10] sm:$0xff]
        %v924 = vld [vmem:[%s920 + $0x18] sm:$0xff]
        %s925 = scalar_lea.vmem %s5, 8
        %v926 = vld [vmem:[%s925] sm:$0x1]
        %v928 = vperm.slane %v926, 0
        %930 = vmatpush.msra.mxu0 0.0
        %931 = vmatpush.msra.mxu0 0.0
        %932 = vmatpush.msra.mxu0 0.0
        %933 = vmatpush.msra.mxu0 0.0
        %934 = vmatpush.msra.mxu0 0.0
        %935 = vmatpush.msra.mxu0 0.0
        %936 = vmatpush.msra.mxu0 0.0
        %937 = vmatpush.msra.mxu0 0.0
        %938 = vmatpush.msra.mxu0 0.0
        %939 = vmatpush.msra.mxu0 0.0
        %940 = vmatpush.msra.mxu0 0.0
        %941 = vmatpush.msra.mxu0 0.0
        %942 = vmatpush.msra.mxu0 %v924
        %943 = vmatpush.msra.mxu0 %v923
        %944 = vmatpush.msra.mxu0 %v922
        %945 = vmatpush.msra.mxu0 %v921
        %946 = vmatmul.f32.gmra.mxu0 %v868
        %v947 = vpop.f32.mrf.mxu0
        %v948 = vadd.f32 %v928, %v947
        %949 = vdwg.mxu0
        %vm950 = vcmask 64512
        %v952 = vsel %vm950, %v888, 0
        %v955 = vsel %vm950, %v918, 0
        %957 = vmatpush.xpose.msra.mxu0 0.0
        %958 = vmatpush.xpose.msra.mxu0 0.0
        %959 = vmatpush.xpose.msra.mxu0 0.0
        %960 = vmatpush.xpose.msra.mxu0 0.0
        %961 = vmatpush.xpose.msra.mxu0 0.0
        %962 = vmatpush.xpose.msra.mxu0 0.0
        %963 = vmatpush.xpose.msra.mxu0 0.0
        %964 = vmatpush.xpose.msra.mxu0 0.0
        %965 = vmatpush.xpose.msra.mxu0 0.0
        %966 = vmatpush.xpose.msra.mxu0 0.0
        %967 = vmatpush.xpose.msra.mxu0 0.0
        %968 = vmatpush.xpose.msra.mxu0 0.0
        %969 = vmatpush.xpose.msra.mxu0 0.0
        %970 = vmatpush.xpose.msra.mxu0 0.0
        %971 = vmatpush.xpose.msra.mxu0 0.0
        %972 = vmatpush.xpose.msra.mxu0 %v955
        %973 = vmatmul.f32.gmra.mxu0 %v952
        %v974 = vpop.f32.mrf.mxu0
        %v975 = vadd.f32 0.0, %v974
        %976 = vdwg.mxu0
        %v977 = vmul.f32 %v975, 0.35355338
        %v978 = vadd.f32 %v977, %v787
        %v979 = vsel %vm950, %v978, -inf
        %980 = vmax.xlane.f32.xlu0 %v979
        %v981 = vpop.xlane.xlu0 %980
        %v982 = vsub.f32 %v978, %v981
        %v983 = vmul.f32 %v982, 1.442695
        %v984 = vpow.pop %v983
        %v985 = vsel %vm950, %v984, 0.0
        %986 = vadd.xlane.f32.xlu0 %v985
        %v987 = vpop.xlane.xlu0 %986
        %v988 = vrcp.pop %v987
        %v989 = vmul.f32 %v987, %v988
        %v990 = vsub.f32 1.0, %v989
        %v991 = vmul.f32 %v988, %v990
        %v992 = vadd.f32 %v988, %v991
        %vm993 = vweird.f32 %v987
        %vm994 = vweird.f32 %v988
        %vm995 = vmor %vm993, %vm994
        %v996 = vsel %vm995, %v988, %v992
        %v997 = vand.u32 2147483647, %v987
        %vm998 = vcmp.eq.f32.partialorder %v997, 8.507059e+37
        %v999 = vand.u32 %v987, 2147483648
        %v1000 = vor.u32 1.1754944e-38, %v999
        %v1001 = vsel %vm998, %v1000, %v996
        %v1002 = vmul.f32 %v984, %v1001
        %v1004 = vsel %vm950, %v1002, 0
        %1006 = vmatpush.msra.mxu0 0.0
        %1007 = vmatpush.msra.mxu0 0.0
        %1008 = vmatpush.msra.mxu0 0.0
        %1009 = vmatpush.msra.mxu0 0.0
        %1010 = vmatpush.msra.mxu0 0.0
        %1011 = vmatpush.msra.mxu0 0.0
        %1012 = vmatpush.msra.mxu0 0.0
        %1013 = vmatpush.msra.mxu0 0.0
        %1014 = vmatpush.msra.mxu0 0.0
        %1015 = vmatpush.msra.mxu0 0.0
        %1016 = vmatpush.msra.mxu0 0.0
        %1017 = vmatpush.msra.mxu0 0.0
        %1018 = vmatpush.msra.mxu0 0.0
        %1019 = vmatpush.msra.mxu0 0.0
        %1020 = vmatpush.msra.mxu0 0.0
        %1021 = vmatpush.msra.mxu0 %v948
        %1022 = vmatmul.f32.gmra.mxu0 %v1004
        %v1023 = vpop.f32.mrf.mxu0
        %v1024 = vadd.f32 0.0, %v1023
        %1025 = vdwg.mxu0
        %v1026 = vld [vmem:[%s6] sm:$0xff]
        %s1027 = scalar_lea.vmem %s4, 32
        %v1028 = vld [vmem:[%s1027] sm:$0xff]
        %v1029 = vld [vmem:[%s1027 + $0x8] sm:$0xff]
        %v1030 = vld [vmem:[%s1027 + $0x10] sm:$0xff]
        %v1031 = vld [vmem:[%s1027 + $0x18] sm:$0xff]
        %s1032 = scalar_lea.vmem %s5, 1
        %v1033 = vld [vmem:[%s1032] sm:$0x1]
        %v1035 = vperm.slane %v1033, 0
        %1037 = vmatpush.msra.mxu0 0.0
        %1038 = vmatpush.msra.mxu0 0.0
        %1039 = vmatpush.msra.mxu0 0.0
        %1040 = vmatpush.msra.mxu0 0.0
        %1041 = vmatpush.msra.mxu0 0.0
        %1042 = vmatpush.msra.mxu0 0.0
        %1043 = vmatpush.msra.mxu0 0.0
        %1044 = vmatpush.msra.mxu0 0.0
        %1045 = vmatpush.msra.mxu0 0.0
        %1046 = vmatpush.msra.mxu0 0.0
        %1047 = vmatpush.msra.mxu0 0.0
        %1048 = vmatpush.msra.mxu0 0.0
        %1049 = vmatpush.msra.mxu0 %v1031
        %1050 = vmatpush.msra.mxu0 %v1030
        %1051 = vmatpush.msra.mxu0 %v1029
        %1052 = vmatpush.msra.mxu0 %v1028
        %1053 = vmatmul.f32.gmra.mxu0 %v868
        %v1054 = vpop.f32.mrf.mxu0
        %v1055 = vadd.f32 %v1035, %v1054
        %1056 = vdwg.mxu0
        %s1057 = scalar_lea.vmem %s4, 160
        %v1058 = vld [vmem:[%s1057] sm:$0xff]
        %v1059 = vld [vmem:[%s1057 + $0x8] sm:$0xff]
        %v1060 = vld [vmem:[%s1057 + $0x10] sm:$0xff]
        %v1061 = vld [vmem:[%s1057 + $0x18] sm:$0xff]
        %s1062 = scalar_lea.vmem %s5, 5
        %v1063 = vld [vmem:[%s1062] sm:$0x1]
        %v1065 = vperm.slane %v1063, 0
        %1067 = vmatpush.msra.mxu0 0.0
        %1068 = vmatpush.msra.mxu0 0.0
        %1069 = vmatpush.msra.mxu0 0.0
        %1070 = vmatpush.msra.mxu0 0.0
        %1071 = vmatpush.msra.mxu0 0.0
        %1072 = vmatpush.msra.mxu0 0.0
        %1073 = vmatpush.msra.mxu0 0.0
        %1074 = vmatpush.msra.mxu0 0.0
        %1075 = vmatpush.msra.mxu0 0.0
        %1076 = vmatpush.msra.mxu0 0.0
        %1077 = vmatpush.msra.mxu0 0.0
        %1078 = vmatpush.msra.mxu0 0.0
        %1079 = vmatpush.msra.mxu0 %v1061
        %1080 = vmatpush.msra.mxu0 %v1060
        %1081 = vmatpush.msra.mxu0 %v1059
        %1082 = vmatpush.msra.mxu0 %v1058
        %1083 = vmatmul.f32.gmra.mxu0 %v868
        %v1084 = vpop.f32.mrf.mxu0
        %v1085 = vadd.f32 %v1065, %v1084
        %1086 = vdwg.mxu0
        %s1087 = scalar_lea.vmem %s4, 288
        %v1088 = vld [vmem:[%s1087] sm:$0xff]
        %v1089 = vld [vmem:[%s1087 + $0x8] sm:$0xff]
        %v1090 = vld [vmem:[%s1087 + $0x10] sm:$0xff]
        %v1091 = vld [vmem:[%s1087 + $0x18] sm:$0xff]
        %s1092 = scalar_lea.vmem %s5, 9
        %v1093 = vld [vmem:[%s1092] sm:$0x1]
        %v1095 = vperm.slane %v1093, 0
        %1097 = vmatpush.msra.mxu0 0.0
        %1098 = vmatpush.msra.mxu0 0.0
        %1099 = vmatpush.msra.mxu0 0.0
        %1100 = vmatpush.msra.mxu0 0.0
        %1101 = vmatpush.msra.mxu0 0.0
        %1102 = vmatpush.msra.mxu0 0.0
        %1103 = vmatpush.msra.mxu0 0.0
        %1104 = vmatpush.msra.mxu0 0.0
        %1105 = vmatpush.msra.mxu0 0.0
        %1106 = vmatpush.msra.mxu0 0.0
        %1107 = vmatpush.msra.mxu0 0.0
        %1108 = vmatpush.msra.mxu0 0.0
        %1109 = vmatpush.msra.mxu0 %v1091
        %1110 = vmatpush.msra.mxu0 %v1090
        %1111 = vmatpush.msra.mxu0 %v1089
        %1112 = vmatpush.msra.mxu0 %v1088
        %1113 = vmatmul.f32.gmra.mxu0 %v868
        %v1114 = vpop.f32.mrf.mxu0
        %v1115 = vadd.f32 %v1095, %v1114
        %1116 = vdwg.mxu0
        %v1118 = vsel %vm950, %v1055, 0
        %v1121 = vsel %vm950, %v1085, 0
        %1123 = vmatpush.xpose.msra.mxu0 0.0
        %1124 = vmatpush.xpose.msra.mxu0 0.0
        %1125 = vmatpush.xpose.msra.mxu0 0.0
        %1126 = vmatpush.xpose.msra.mxu0 0.0
        %1127 = vmatpush.xpose.msra.mxu0 0.0
        %1128 = vmatpush.xpose.msra.mxu0 0.0
        %1129 = vmatpush.xpose.msra.mxu0 0.0
        %1130 = vmatpush.xpose.msra.mxu0 0.0
        %1131 = vmatpush.xpose.msra.mxu0 0.0
        %1132 = vmatpush.xpose.msra.mxu0 0.0
        %1133 = vmatpush.xpose.msra.mxu0 0.0
        %1134 = vmatpush.xpose.msra.mxu0 0.0
        %1135 = vmatpush.xpose.msra.mxu0 0.0
        %1136 = vmatpush.xpose.msra.mxu0 0.0
        %1137 = vmatpush.xpose.msra.mxu0 0.0
        %1138 = vmatpush.xpose.msra.mxu0 %v1121
        %1139 = vmatmul.f32.gmra.mxu0 %v1118
        %v1140 = vpop.f32.mrf.mxu0
        %v1141 = vadd.f32 0.0, %v1140
        %1142 = vdwg.mxu0
        %v1143 = vmul.f32 %v1141, 0.35355338
        %v1144 = vadd.f32 %v1143, %v787
        %v1145 = vsel %vm950, %v1144, -inf
        %1146 = vmax.xlane.f32.xlu0 %v1145
        %v1147 = vpop.xlane.xlu0 %1146
        %v1148 = vsub.f32 %v1144, %v1147
        %v1149 = vmul.f32 %v1148, 1.442695
        %v1150 = vpow.pop %v1149
        %v1151 = vsel %vm950, %v1150, 0.0
        %1152 = vadd.xlane.f32.xlu0 %v1151
        %v1153 = vpop.xlane.xlu0 %1152
        %v1154 = vrcp.pop %v1153
        %v1155 = vmul.f32 %v1153, %v1154
        %v1156 = vsub.f32 1.0, %v1155
        %v1157 = vmul.f32 %v1154, %v1156
        %v1158 = vadd.f32 %v1154, %v1157
        %vm1159 = vweird.f32 %v1153
        %vm1160 = vweird.f32 %v1154
        %vm1161 = vmor %vm1159, %vm1160
        %v1162 = vsel %vm1161, %v1154, %v1158
        %v1163 = vand.u32 2147483647, %v1153
        %vm1164 = vcmp.eq.f32.partialorder %v1163, 8.507059e+37
        %v1165 = vand.u32 %v1153, 2147483648
        %v1166 = vor.u32 1.1754944e-38, %v1165
        %v1167 = vsel %vm1164, %v1166, %v1162
        %v1168 = vmul.f32 %v1150, %v1167
        %v1170 = vsel %vm950, %v1168, 0
        %1172 = vmatpush.msra.mxu0 0.0
        %1173 = vmatpush.msra.mxu0 0.0
        %1174 = vmatpush.msra.mxu0 0.0
        %1175 = vmatpush.msra.mxu0 0.0
        %1176 = vmatpush.msra.mxu0 0.0
        %1177 = vmatpush.msra.mxu0 0.0
        %1178 = vmatpush.msra.mxu0 0.0
        %1179 = vmatpush.msra.mxu0 0.0
        %1180 = vmatpush.msra.mxu0 0.0
        %1181 = vmatpush.msra.mxu0 0.0
        %1182 = vmatpush.msra.mxu0 0.0
        %1183 = vmatpush.msra.mxu0 0.0
        %1184 = vmatpush.msra.mxu0 0.0
        %1185 = vmatpush.msra.mxu0 0.0
        %1186 = vmatpush.msra.mxu0 0.0
        %1187 = vmatpush.msra.mxu0 %v1115
        %1188 = vmatmul.f32.gmra.mxu0 %v1170
        %v1189 = vpop.f32.mrf.mxu0
        %v1190 = vadd.f32 0.0, %v1189
        %1191 = vdwg.mxu0
        %s1192 = scalar_lea.vmem %s6, 8
        %v1193 = vld [vmem:[%s1192] sm:$0xff]
        %v1195 = vsel %vm950, %v1190, 0
        %1197 = vmatpush.msra.mxu0 0.0
        %1198 = vmatpush.msra.mxu0 0.0
        %1199 = vmatpush.msra.mxu0 0.0
        %1200 = vmatpush.msra.mxu0 0.0
        %1201 = vmatpush.msra.mxu0 0.0
        %1202 = vmatpush.msra.mxu0 0.0
        %1203 = vmatpush.msra.mxu0 0.0
        %1204 = vmatpush.msra.mxu0 0.0
        %1205 = vmatpush.msra.mxu0 0.0
        %1206 = vmatpush.msra.mxu0 0.0
        %1207 = vmatpush.msra.mxu0 0.0
        %1208 = vmatpush.msra.mxu0 0.0
        %1209 = vmatpush.msra.mxu0 0.0
        %1210 = vmatpush.msra.mxu0 0.0
        %1211 = vmatpush.msra.mxu0 0.0
        %1212 = vmatpush.msra.mxu0 %v1193
        %1213 = vmatmul.f32.gmra.mxu0 %v1195
        %v1214 = vpop.f32.mrf.mxu0
        %v1215 = vadd.f32 0.0, %v1214
        %1216 = vdwg.mxu0
        %v1218 = vsel %vm950, %v1024, 0
        %1220 = vmatpush.msra.mxu0 0.0
        %1221 = vmatpush.msra.mxu0 0.0
        %1222 = vmatpush.msra.mxu0 0.0
        %1223 = vmatpush.msra.mxu0 0.0
        %1224 = vmatpush.msra.mxu0 0.0
        %1225 = vmatpush.msra.mxu0 0.0
        %1226 = vmatpush.msra.mxu0 0.0
        %1227 = vmatpush.msra.mxu0 0.0
        %1228 = vmatpush.msra.mxu0 0.0
        %1229 = vmatpush.msra.mxu0 0.0
        %1230 = vmatpush.msra.mxu0 0.0
        %1231 = vmatpush.msra.mxu0 0.0
        %1232 = vmatpush.msra.mxu0 0.0
        %1233 = vmatpush.msra.mxu0 0.0
        %1234 = vmatpush.msra.mxu0 0.0
        %1235 = vmatpush.msra.mxu0 %v1026
        %1236 = vmatmul.f32.gmra.mxu0 %v1218
        %v1237 = vpop.f32.mrf.mxu0
        %v1238 = vadd.f32 %v1215, %v1237
        %1239 = vdwg.mxu0
        %s1240 = scalar_lea.vmem %s4, 64
        %v1241 = vld [vmem:[%s1240] sm:$0xff]
        %v1242 = vld [vmem:[%s1240 + $0x8] sm:$0xff]
        %v1243 = vld [vmem:[%s1240 + $0x10] sm:$0xff]
        %v1244 = vld [vmem:[%s1240 + $0x18] sm:$0xff]
        %s1245 = scalar_lea.vmem %s5, 2
        %v1246 = vld [vmem:[%s1245] sm:$0x1]
        %v1248 = vperm.slane %v1246, 0
        %1250 = vmatpush.msra.mxu0 0.0
        %1251 = vmatpush.msra.mxu0 0.0
        %1252 = vmatpush.msra.mxu0 0.0
        %1253 = vmatpush.msra.mxu0 0.0
        %1254 = vmatpush.msra.mxu0 0.0
        %1255 = vmatpush.msra.mxu0 0.0
        %1256 = vmatpush.msra.mxu0 0.0
        %1257 = vmatpush.msra.mxu0 0.0
        %1258 = vmatpush.msra.mxu0 0.0
        %1259 = vmatpush.msra.mxu0 0.0
        %1260 = vmatpush.msra.mxu0 0.0
        %1261 = vmatpush.msra.mxu0 0.0
        %1262 = vmatpush.msra.mxu0 %v1244
        %1263 = vmatpush.msra.mxu0 %v1243
        %1264 = vmatpush.msra.mxu0 %v1242
        %1265 = vmatpush.msra.mxu0 %v1241
        %1266 = vmatmul.f32.gmra.mxu0 %v868
        %v1267 = vpop.f32.mrf.mxu0
        %v1268 = vadd.f32 %v1248, %v1267
        %1269 = vdwg.mxu0
        %s1270 = scalar_lea.vmem %s4, 192
        %v1271 = vld [vmem:[%s1270] sm:$0xff]
        %v1272 = vld [vmem:[%s1270 + $0x8] sm:$0xff]
        %v1273 = vld [vmem:[%s1270 + $0x10] sm:$0xff]
        %v1274 = vld [vmem:[%s1270 + $0x18] sm:$0xff]
        %s1275 = scalar_lea.vmem %s5, 6
        %v1276 = vld [vmem:[%s1275] sm:$0x1]
        %v1278 = vperm.slane %v1276, 0
        %1280 = vmatpush.msra.mxu0 0.0
        %1281 = vmatpush.msra.mxu0 0.0
        %1282 = vmatpush.msra.mxu0 0.0
        %1283 = vmatpush.msra.mxu0 0.0
        %1284 = vmatpush.msra.mxu0 0.0
        %1285 = vmatpush.msra.mxu0 0.0
        %1286 = vmatpush.msra.mxu0 0.0
        %1287 = vmatpush.msra.mxu0 0.0
        %1288 = vmatpush.msra.mxu0 0.0
        %1289 = vmatpush.msra.mxu0 0.0
        %1290 = vmatpush.msra.mxu0 0.0
        %1291 = vmatpush.msra.mxu0 0.0
        %1292 = vmatpush.msra.mxu0 %v1274
        %1293 = vmatpush.msra.mxu0 %v1273
        %1294 = vmatpush.msra.mxu0 %v1272
        %1295 = vmatpush.msra.mxu0 %v1271
        %1296 = vmatmul.f32.gmra.mxu0 %v868
        %v1297 = vpop.f32.mrf.mxu0
        %v1298 = vadd.f32 %v1278, %v1297
        %1299 = vdwg.mxu0
        %s1300 = scalar_lea.vmem %s4, 320
        %v1301 = vld [vmem:[%s1300] sm:$0xff]
        %v1302 = vld [vmem:[%s1300 + $0x8] sm:$0xff]
        %v1303 = vld [vmem:[%s1300 + $0x10] sm:$0xff]
        %v1304 = vld [vmem:[%s1300 + $0x18] sm:$0xff]
        %s1305 = scalar_lea.vmem %s5, 10
        %v1306 = vld [vmem:[%s1305] sm:$0x1]
        %v1308 = vperm.slane %v1306, 0
        %1310 = vmatpush.msra.mxu0 0.0
        %1311 = vmatpush.msra.mxu0 0.0
        %1312 = vmatpush.msra.mxu0 0.0
        %1313 = vmatpush.msra.mxu0 0.0
        %1314 = vmatpush.msra.mxu0 0.0
        %1315 = vmatpush.msra.mxu0 0.0
        %1316 = vmatpush.msra.mxu0 0.0
        %1317 = vmatpush.msra.mxu0 0.0
        %1318 = vmatpush.msra.mxu0 0.0
        %1319 = vmatpush.msra.mxu0 0.0
        %1320 = vmatpush.msra.mxu0 0.0
        %1321 = vmatpush.msra.mxu0 0.0
        %1322 = vmatpush.msra.mxu0 %v1304
        %1323 = vmatpush.msra.mxu0 %v1303
        %1324 = vmatpush.msra.mxu0 %v1302
        %1325 = vmatpush.msra.mxu0 %v1301
        %1326 = vmatmul.f32.gmra.mxu0 %v868
        %v1327 = vpop.f32.mrf.mxu0
        %v1328 = vadd.f32 %v1308, %v1327
        %1329 = vdwg.mxu0
        %v1331 = vsel %vm950, %v1268, 0
        %v1334 = vsel %vm950, %v1298, 0
        %1336 = vmatpush.xpose.msra.mxu0 0.0
        %1337 = vmatpush.xpose.msra.mxu0 0.0
        %1338 = vmatpush.xpose.msra.mxu0 0.0
        %1339 = vmatpush.xpose.msra.mxu0 0.0
        %1340 = vmatpush.xpose.msra.mxu0 0.0
        %1341 = vmatpush.xpose.msra.mxu0 0.0
        %1342 = vmatpush.xpose.msra.mxu0 0.0
        %1343 = vmatpush.xpose.msra.mxu0 0.0
        %1344 = vmatpush.xpose.msra.mxu0 0.0
        %1345 = vmatpush.xpose.msra.mxu0 0.0
        %1346 = vmatpush.xpose.msra.mxu0 0.0
        %1347 = vmatpush.xpose.msra.mxu0 0.0
        %1348 = vmatpush.xpose.msra.mxu0 0.0
        %1349 = vmatpush.xpose.msra.mxu0 0.0
        %1350 = vmatpush.xpose.msra.mxu0 0.0
        %1351 = vmatpush.xpose.msra.mxu0 %v1334
        %1352 = vmatmul.f32.gmra.mxu0 %v1331
        %v1353 = vpop.f32.mrf.mxu0
        %v1354 = vadd.f32 0.0, %v1353
        %1355 = vdwg.mxu0
        %v1356 = vmul.f32 %v1354, 0.35355338
        %v1357 = vadd.f32 %v1356, %v787
        %v1358 = vsel %vm950, %v1357, -inf
        %1359 = vmax.xlane.f32.xlu0 %v1358
        %v1360 = vpop.xlane.xlu0 %1359
        %v1361 = vsub.f32 %v1357, %v1360
        %v1362 = vmul.f32 %v1361, 1.442695
        %v1363 = vpow.pop %v1362
        %v1364 = vsel %vm950, %v1363, 0.0
        %1365 = vadd.xlane.f32.xlu0 %v1364
        %v1366 = vpop.xlane.xlu0 %1365
        %v1367 = vrcp.pop %v1366
        %v1368 = vmul.f32 %v1366, %v1367
        %v1369 = vsub.f32 1.0, %v1368
        %v1370 = vmul.f32 %v1367, %v1369
        %v1371 = vadd.f32 %v1367, %v1370
        %vm1372 = vweird.f32 %v1366
        %vm1373 = vweird.f32 %v1367
        %vm1374 = vmor %vm1372, %vm1373
        %v1375 = vsel %vm1374, %v1367, %v1371
        %v1376 = vand.u32 2147483647, %v1366
        %vm1377 = vcmp.eq.f32.partialorder %v1376, 8.507059e+37
        %v1378 = vand.u32 %v1366, 2147483648
        %v1379 = vor.u32 1.1754944e-38, %v1378
        %v1380 = vsel %vm1377, %v1379, %v1375
        %v1381 = vmul.f32 %v1363, %v1380
        %v1383 = vsel %vm950, %v1381, 0
        %1385 = vmatpush.msra.mxu0 0.0
        %1386 = vmatpush.msra.mxu0 0.0
        %1387 = vmatpush.msra.mxu0 0.0
        %1388 = vmatpush.msra.mxu0 0.0
        %1389 = vmatpush.msra.mxu0 0.0
        %1390 = vmatpush.msra.mxu0 0.0
        %1391 = vmatpush.msra.mxu0 0.0
        %1392 = vmatpush.msra.mxu0 0.0
        %1393 = vmatpush.msra.mxu0 0.0
        %1394 = vmatpush.msra.mxu0 0.0
        %1395 = vmatpush.msra.mxu0 0.0
        %1396 = vmatpush.msra.mxu0 0.0
        %1397 = vmatpush.msra.mxu0 0.0
        %1398 = vmatpush.msra.mxu0 0.0
        %1399 = vmatpush.msra.mxu0 0.0
        %1400 = vmatpush.msra.mxu0 %v1328
        %1401 = vmatmul.f32.gmra.mxu0 %v1383
        %v1402 = vpop.f32.mrf.mxu0
        %v1403 = vadd.f32 0.0, %v1402
        %1404 = vdwg.mxu0
        %s1405 = scalar_lea.vmem %s6, 16
        %v1406 = vld [vmem:[%s1405] sm:$0xff]
        %v1408 = vsel %vm950, %v1403, 0
        %1410 = vmatpush.msra.mxu0 0.0
        %1411 = vmatpush.msra.mxu0 0.0
        %1412 = vmatpush.msra.mxu0 0.0
        %1413 = vmatpush.msra.mxu0 0.0
        %1414 = vmatpush.msra.mxu0 0.0
        %1415 = vmatpush.msra.mxu0 0.0
        %1416 = vmatpush.msra.mxu0 0.0
        %1417 = vmatpush.msra.mxu0 0.0
        %1418 = vmatpush.msra.mxu0 0.0
        %1419 = vmatpush.msra.mxu0 0.0
        %1420 = vmatpush.msra.mxu0 0.0
        %1421 = vmatpush.msra.mxu0 0.0
        %1422 = vmatpush.msra.mxu0 0.0
        %1423 = vmatpush.msra.mxu0 0.0
        %1424 = vmatpush.msra.mxu0 0.0
        %1425 = vmatpush.msra.mxu0 %v1406
        %1426 = vmatmul.f32.gmra.mxu0 %v1408
        %v1427 = vpop.f32.mrf.mxu0
        %v1428 = vadd.f32 0.0, %v1427
        %1429 = vdwg.mxu0
        %v1430 = vadd.f32 %v1238, %v1428
        %s1431 = scalar_lea.vmem %s4, 96
        %v1432 = vld [vmem:[%s1431] sm:$0xff]
        %v1433 = vld [vmem:[%s1431 + $0x8] sm:$0xff]
        %v1434 = vld [vmem:[%s1431 + $0x10] sm:$0xff]
        %v1435 = vld [vmem:[%s1431 + $0x18] sm:$0xff]
        %s1436 = scalar_lea.vmem %s5, 3
        %v1437 = vld [vmem:[%s1436] sm:$0x1]
        %v1439 = vperm.slane %v1437, 0
        %1441 = vmatpush.msra.mxu0 0.0
        %1442 = vmatpush.msra.mxu0 0.0
        %1443 = vmatpush.msra.mxu0 0.0
        %1444 = vmatpush.msra.mxu0 0.0
        %1445 = vmatpush.msra.mxu0 0.0
        %1446 = vmatpush.msra.mxu0 0.0
        %1447 = vmatpush.msra.mxu0 0.0
        %1448 = vmatpush.msra.mxu0 0.0
        %1449 = vmatpush.msra.mxu0 0.0
        %1450 = vmatpush.msra.mxu0 0.0
        %1451 = vmatpush.msra.mxu0 0.0
        %1452 = vmatpush.msra.mxu0 0.0
        %1453 = vmatpush.msra.mxu0 %v1435
        %1454 = vmatpush.msra.mxu0 %v1434
        %1455 = vmatpush.msra.mxu0 %v1433
        %1456 = vmatpush.msra.mxu0 %v1432
        %1457 = vmatmul.f32.gmra.mxu0 %v868
        %v1458 = vpop.f32.mrf.mxu0
        %v1459 = vadd.f32 %v1439, %v1458
        %1460 = vdwg.mxu0
        %s1461 = scalar_lea.vmem %s4, 224
        %v1462 = vld [vmem:[%s1461] sm:$0xff]
        %v1463 = vld [vmem:[%s1461 + $0x8] sm:$0xff]
        %v1464 = vld [vmem:[%s1461 + $0x10] sm:$0xff]
        %v1465 = vld [vmem:[%s1461 + $0x18] sm:$0xff]
        %s1466 = scalar_lea.vmem %s5, 7
        %v1467 = vld [vmem:[%s1466] sm:$0x1]
        %v1469 = vperm.slane %v1467, 0
        %1471 = vmatpush.msra.mxu0 0.0
        %1472 = vmatpush.msra.mxu0 0.0
        %1473 = vmatpush.msra.mxu0 0.0
        %1474 = vmatpush.msra.mxu0 0.0
        %1475 = vmatpush.msra.mxu0 0.0
        %1476 = vmatpush.msra.mxu0 0.0
        %1477 = vmatpush.msra.mxu0 0.0
        %1478 = vmatpush.msra.mxu0 0.0
        %1479 = vmatpush.msra.mxu0 0.0
        %1480 = vmatpush.msra.mxu0 0.0
        %1481 = vmatpush.msra.mxu0 0.0
        %1482 = vmatpush.msra.mxu0 0.0
        %1483 = vmatpush.msra.mxu0 %v1465
        %1484 = vmatpush.msra.mxu0 %v1464
        %1485 = vmatpush.msra.mxu0 %v1463
        %1486 = vmatpush.msra.mxu0 %v1462
        %1487 = vmatmul.f32.gmra.mxu0 %v868
        %v1488 = vpop.f32.mrf.mxu0
        %v1489 = vadd.f32 %v1469, %v1488
        %1490 = vdwg.mxu0
        %s1491 = scalar_lea.vmem %s4, 352
        %v1492 = vld [vmem:[%s1491] sm:$0xff]
        %v1493 = vld [vmem:[%s1491 + $0x8] sm:$0xff]
        %v1494 = vld [vmem:[%s1491 + $0x10] sm:$0xff]
        %v1495 = vld [vmem:[%s1491 + $0x18] sm:$0xff]
        %s1496 = scalar_lea.vmem %s5, 11
        %v1497 = vld [vmem:[%s1496] sm:$0x1]
        %v1499 = vperm.slane %v1497, 0
        %1501 = vmatpush.msra.mxu0 0.0
        %1502 = vmatpush.msra.mxu0 0.0
        %1503 = vmatpush.msra.mxu0 0.0
        %1504 = vmatpush.msra.mxu0 0.0
        %1505 = vmatpush.msra.mxu0 0.0
        %1506 = vmatpush.msra.mxu0 0.0
        %1507 = vmatpush.msra.mxu0 0.0
        %1508 = vmatpush.msra.mxu0 0.0
        %1509 = vmatpush.msra.mxu0 0.0
        %1510 = vmatpush.msra.mxu0 0.0
        %1511 = vmatpush.msra.mxu0 0.0
        %1512 = vmatpush.msra.mxu0 0.0
        %1513 = vmatpush.msra.mxu0 %v1495
        %1514 = vmatpush.msra.mxu0 %v1494
        %1515 = vmatpush.msra.mxu0 %v1493
        %1516 = vmatpush.msra.mxu0 %v1492
        %1517 = vmatmul.f32.gmra.mxu0 %v868
        %v1518 = vpop.f32.mrf.mxu0
        %v1519 = vadd.f32 %v1499, %v1518
        %1520 = vdwg.mxu0
        %v1522 = vsel %vm950, %v1459, 0
        %v1525 = vsel %vm950, %v1489, 0
        %1527 = vmatpush.xpose.msra.mxu0 0.0
        %1528 = vmatpush.xpose.msra.mxu0 0.0
        %1529 = vmatpush.xpose.msra.mxu0 0.0
        %1530 = vmatpush.xpose.msra.mxu0 0.0
        %1531 = vmatpush.xpose.msra.mxu0 0.0
        %1532 = vmatpush.xpose.msra.mxu0 0.0
        %1533 = vmatpush.xpose.msra.mxu0 0.0
        %1534 = vmatpush.xpose.msra.mxu0 0.0
        %1535 = vmatpush.xpose.msra.mxu0 0.0
        %1536 = vmatpush.xpose.msra.mxu0 0.0
        %1537 = vmatpush.xpose.msra.mxu0 0.0
        %1538 = vmatpush.xpose.msra.mxu0 0.0
        %1539 = vmatpush.xpose.msra.mxu0 0.0
        %1540 = vmatpush.xpose.msra.mxu0 0.0
        %1541 = vmatpush.xpose.msra.mxu0 0.0
        %1542 = vmatpush.xpose.msra.mxu0 %v1525
        %1543 = vmatmul.f32.gmra.mxu0 %v1522
        %v1544 = vpop.f32.mrf.mxu0
        %v1545 = vadd.f32 0.0, %v1544
        %1546 = vdwg.mxu0
        %v1547 = vmul.f32 %v1545, 0.35355338
        %v1548 = vadd.f32 %v1547, %v787
        %v1549 = vsel %vm950, %v1548, -inf
        %1550 = vmax.xlane.f32.xlu0 %v1549
        %v1551 = vpop.xlane.xlu0 %1550
        %v1552 = vsub.f32 %v1548, %v1551
        %v1553 = vmul.f32 %v1552, 1.442695
        %v1554 = vpow.pop %v1553
        %v1555 = vsel %vm950, %v1554, 0.0
        %1556 = vadd.xlane.f32.xlu0 %v1555
        %v1557 = vpop.xlane.xlu0 %1556
        %v1558 = vrcp.pop %v1557
        %v1559 = vmul.f32 %v1557, %v1558
        %v1560 = vsub.f32 1.0, %v1559
        %v1561 = vmul.f32 %v1558, %v1560
        %v1562 = vadd.f32 %v1558, %v1561
        %vm1563 = vweird.f32 %v1557
        %vm1564 = vweird.f32 %v1558
        %vm1565 = vmor %vm1563, %vm1564
        %v1566 = vsel %vm1565, %v1558, %v1562
        %v1567 = vand.u32 2147483647, %v1557
        %vm1568 = vcmp.eq.f32.partialorder %v1567, 8.507059e+37
        %v1569 = vand.u32 %v1557, 2147483648
        %v1570 = vor.u32 1.1754944e-38, %v1569
        %v1571 = vsel %vm1568, %v1570, %v1566
        %v1572 = vmul.f32 %v1554, %v1571
        %v1574 = vsel %vm950, %v1572, 0
        %1576 = vmatpush.msra.mxu0 0.0
        %1577 = vmatpush.msra.mxu0 0.0
        %1578 = vmatpush.msra.mxu0 0.0
        %1579 = vmatpush.msra.mxu0 0.0
        %1580 = vmatpush.msra.mxu0 0.0
        %1581 = vmatpush.msra.mxu0 0.0
        %1582 = vmatpush.msra.mxu0 0.0
        %1583 = vmatpush.msra.mxu0 0.0
        %1584 = vmatpush.msra.mxu0 0.0
        %1585 = vmatpush.msra.mxu0 0.0
        %1586 = vmatpush.msra.mxu0 0.0
        %1587 = vmatpush.msra.mxu0 0.0
        %1588 = vmatpush.msra.mxu0 0.0
        %1589 = vmatpush.msra.mxu0 0.0
        %1590 = vmatpush.msra.mxu0 0.0
        %1591 = vmatpush.msra.mxu0 %v1519
        %1592 = vmatmul.f32.gmra.mxu0 %v1574
        %v1593 = vpop.f32.mrf.mxu0
        %v1594 = vadd.f32 0.0, %v1593
        %1595 = vdwg.mxu0
        %s1596 = scalar_lea.vmem %s6, 24
        %v1597 = vld [vmem:[%s1596] sm:$0xff]
        %v1599 = vsel %vm950, %v1594, 0
        %1601 = vmatpush.msra.mxu0 0.0
        %1602 = vmatpush.msra.mxu0 0.0
        %1603 = vmatpush.msra.mxu0 0.0
        %1604 = vmatpush.msra.mxu0 0.0
        %1605 = vmatpush.msra.mxu0 0.0
        %1606 = vmatpush.msra.mxu0 0.0
        %1607 = vmatpush.msra.mxu0 0.0
        %1608 = vmatpush.msra.mxu0 0.0
        %1609 = vmatpush.msra.mxu0 0.0
        %1610 = vmatpush.msra.mxu0 0.0
        %1611 = vmatpush.msra.mxu0 0.0
        %1612 = vmatpush.msra.mxu0 0.0
        %1613 = vmatpush.msra.mxu0 0.0
        %1614 = vmatpush.msra.mxu0 0.0
        %1615 = vmatpush.msra.mxu0 0.0
        %1616 = vmatpush.msra.mxu0 %v1597
        %1617 = vmatmul.f32.gmra.mxu0 %v1599
        %v1618 = vpop.f32.mrf.mxu0
        %v1619 = vadd.f32 0.0, %v1618
        %1620 = vdwg.mxu0
        %v1621 = vadd.f32 %v1430, %v1619
        %v1622 = vld [vmem:[%s7] sm:$0x1]
        %v1624 = vperm.slane %v1622, 0
        %v1626 = vadd.f32 %v1621, %v1624
        %v1627 = vadd.f32 %v817, %v1626
        %v1628 = vsel %vm819, %v1627, 0.0
        %1629 = vadd.xlane.f32.xlu0 %v1628
        %v1630 = vpop.xlane.xlu0 %1629
        %v1631 = vmul.f32 %v1630, %v829
        %v1632 = vsub.f32 %v1627, %v1631
        %v1633 = vmul.f32 %v1632, %v1632
        %v1634 = vsel %vm819, %v1633, 0.0
        %1635 = vadd.xlane.f32.xlu0 %v1634
        %v1636 = vpop.xlane.xlu0 %1635
        %v1637 = vmul.f32 %v1636, %v829
        %v1638 = vadd.f32 %v1637, 1e-05
        %v1639 = vrsqrt.pop %v1638
        %v1640 = vmul.f32 %v1639, %v1638
        %v1641 = vmul.f32 %v1640, %v1639
        %v1642 = vmul.f32 0.5, %v1641
        %v1643 = vsub.f32 1.5, %v1642
        %v1644 = vmul.f32 %v1639, %v1643
        %vm1645 = vweird.f32 %v1638
        %vm1646 = vweird.f32 %v1639
        %vm1647 = vmor %vm1645, %vm1646
        %v1648 = vsel %vm1647, %v1639, %v1644
        %v1649 = vmul.f32 %v1632, %v1648
        %v1650 = vld [vmem:[%s14] sm:$0x1]
        %v1652 = vperm.slane %v1650, 0
        %v1654 = vmul.f32 %v1649, %v1652
        %v1655 = vld [vmem:[%s15] sm:$0x1]
        %v1657 = vperm.slane %v1655, 0
        %v1659 = vadd.f32 %v1654, %v1657
        %v1660 = vld [vmem:[%s8] sm:$0xff]
        %v1661 = vld [vmem:[%s8 + $0x8] sm:$0xff]
        %v1662 = vld [vmem:[%s8 + $0x10] sm:$0xff]
        %v1663 = vld [vmem:[%s8 + $0x18] sm:$0xff]
        %v1664 = vld [vmem:[%s9] sm:$0x1]
        %v1666 = vperm.slane %v1664, 0
        %v1669 = vsel %vm819, %v1659, 0
        %1671 = vmatpush.msra.mxu0 0.0
        %1672 = vmatpush.msra.mxu0 0.0
        %1673 = vmatpush.msra.mxu0 0.0
        %1674 = vmatpush.msra.mxu0 0.0
        %1675 = vmatpush.msra.mxu0 0.0
        %1676 = vmatpush.msra.mxu0 0.0
        %1677 = vmatpush.msra.mxu0 0.0
        %1678 = vmatpush.msra.mxu0 0.0
        %1679 = vmatpush.msra.mxu0 0.0
        %1680 = vmatpush.msra.mxu0 0.0
        %1681 = vmatpush.msra.mxu0 0.0
        %1682 = vmatpush.msra.mxu0 0.0
        %1683 = vmatpush.msra.mxu0 %v1663
        %1684 = vmatpush.msra.mxu0 %v1662
        %1685 = vmatpush.msra.mxu0 %v1661
        %1686 = vmatpush.msra.mxu0 %v1660
        %1687 = vmatmul.f32.gmra.mxu0 %v1669
        %v1688 = vpop.f32.mrf.mxu0
        %v1689 = vadd.f32 %v1666, %v1688
        %1690 = vdwg.mxu0
        %s1691 = scalar_lea.vmem %s8, 128
        %v1692 = vld [vmem:[%s1691] sm:$0xff]
        %v1693 = vld [vmem:[%s1691 + $0x8] sm:$0xff]
        %v1694 = vld [vmem:[%s1691 + $0x10] sm:$0xff]
        %v1695 = vld [vmem:[%s1691 + $0x18] sm:$0xff]
        %s1696 = scalar_lea.vmem %s9, 4
        %v1697 = vld [vmem:[%s1696] sm:$0x1]
        %v1699 = vperm.slane %v1697, 0
        %1701 = vmatpush.msra.mxu0 0.0
        %1702 = vmatpush.msra.mxu0 0.0
        %1703 = vmatpush.msra.mxu0 0.0
        %1704 = vmatpush.msra.mxu0 0.0
        %1705 = vmatpush.msra.mxu0 0.0
        %1706 = vmatpush.msra.mxu0 0.0
        %1707 = vmatpush.msra.mxu0 0.0
        %1708 = vmatpush.msra.mxu0 0.0
        %1709 = vmatpush.msra.mxu0 0.0
        %1710 = vmatpush.msra.mxu0 0.0
        %1711 = vmatpush.msra.mxu0 0.0
        %1712 = vmatpush.msra.mxu0 0.0
        %1713 = vmatpush.msra.mxu0 %v1695
        %1714 = vmatpush.msra.mxu0 %v1694
        %1715 = vmatpush.msra.mxu0 %v1693
        %1716 = vmatpush.msra.mxu0 %v1692
        %1717 = vmatmul.f32.gmra.mxu0 %v1669
        %v1718 = vpop.f32.mrf.mxu0
        %v1719 = vadd.f32 %v1699, %v1718
        %1720 = vdwg.mxu0
        %s1721 = scalar_lea.vmem %s8, 256
        %v1722 = vld [vmem:[%s1721] sm:$0xff]
        %v1723 = vld [vmem:[%s1721 + $0x8] sm:$0xff]
        %v1724 = vld [vmem:[%s1721 + $0x10] sm:$0xff]
        %v1725 = vld [vmem:[%s1721 + $0x18] sm:$0xff]
        %s1726 = scalar_lea.vmem %s9, 8
        %v1727 = vld [vmem:[%s1726] sm:$0x1]
        %v1729 = vperm.slane %v1727, 0
        %1731 = vmatpush.msra.mxu0 0.0
        %1732 = vmatpush.msra.mxu0 0.0
        %1733 = vmatpush.msra.mxu0 0.0
        %1734 = vmatpush.msra.mxu0 0.0
        %1735 = vmatpush.msra.mxu0 0.0
        %1736 = vmatpush.msra.mxu0 0.0
        %1737 = vmatpush.msra.mxu0 0.0
        %1738 = vmatpush.msra.mxu0 0.0
        %1739 = vmatpush.msra.mxu0 0.0
        %1740 = vmatpush.msra.mxu0 0.0
        %1741 = vmatpush.msra.mxu0 0.0
        %1742 = vmatpush.msra.mxu0 0.0
        %1743 = vmatpush.msra.mxu0 %v1725
        %1744 = vmatpush.msra.mxu0 %v1724
        %1745 = vmatpush.msra.mxu0 %v1723
        %1746 = vmatpush.msra.mxu0 %v1722
        %1747 = vmatmul.f32.gmra.mxu0 %v1669
        %v1748 = vpop.f32.mrf.mxu0
        %v1749 = vadd.f32 %v1729, %v1748
        %1750 = vdwg.mxu0
        %v1752 = vsel %vm950, %v1689, 0
        %v1755 = vsel %vm950, %v1719, 0
        %1757 = vmatpush.xpose.msra.mxu0 0.0
        %1758 = vmatpush.xpose.msra.mxu0 0.0
        %1759 = vmatpush.xpose.msra.mxu0 0.0
        %1760 = vmatpush.xpose.msra.mxu0 0.0
        %1761 = vmatpush.xpose.msra.mxu0 0.0
        %1762 = vmatpush.xpose.msra.mxu0 0.0
        %1763 = vmatpush.xpose.msra.mxu0 0.0
        %1764 = vmatpush.xpose.msra.mxu0 0.0
        %1765 = vmatpush.xpose.msra.mxu0 0.0
        %1766 = vmatpush.xpose.msra.mxu0 0.0
        %1767 = vmatpush.xpose.msra.mxu0 0.0
        %1768 = vmatpush.xpose.msra.mxu0 0.0
        %1769 = vmatpush.xpose.msra.mxu0 0.0
        %1770 = vmatpush.xpose.msra.mxu0 0.0
        %1771 = vmatpush.xpose.msra.mxu0 0.0
        %1772 = vmatpush.xpose.msra.mxu0 %v1755
        %1773 = vmatmul.f32.gmra.mxu0 %v1752
        %v1774 = vpop.f32.mrf.mxu0
        %v1775 = vadd.f32 0.0, %v1774
        %1776 = vdwg.mxu0
        %v1777 = vmul.f32 %v1775, 0.35355338
        %v1778 = vadd.f32 %v1777, %v787
        %v1779 = vsel %vm950, %v1778, -inf
        %1780 = vmax.xlane.f32.xlu0 %v1779
        %v1781 = vpop.xlane.xlu0 %1780
        %v1782 = vsub.f32 %v1778, %v1781
        %v1783 = vmul.f32 %v1782, 1.442695
        %v1784 = vpow.pop %v1783
        %v1785 = vsel %vm950, %v1784, 0.0
        %1786 = vadd.xlane.f32.xlu0 %v1785
        %v1787 = vpop.xlane.xlu0 %1786
        %v1788 = vrcp.pop %v1787
        %v1789 = vmul.f32 %v1787, %v1788
        %v1790 = vsub.f32 1.0, %v1789
        %v1791 = vmul.f32 %v1788, %v1790
        %v1792 = vadd.f32 %v1788, %v1791
        %vm1793 = vweird.f32 %v1787
        %vm1794 = vweird.f32 %v1788
        %vm1795 = vmor %vm1793, %vm1794
        %v1796 = vsel %vm1795, %v1788, %v1792
        %v1797 = vand.u32 2147483647, %v1787
        %vm1798 = vcmp.eq.f32.partialorder %v1797, 8.507059e+37
        %v1799 = vand.u32 %v1787, 2147483648
        %v1800 = vor.u32 1.1754944e-38, %v1799
        %v1801 = vsel %vm1798, %v1800, %v1796
        %v1802 = vmul.f32 %v1784, %v1801
        %v1804 = vsel %vm950, %v1802, 0
        %1806 = vmatpush.msra.mxu0 0.0
        %1807 = vmatpush.msra.mxu0 0.0
        %1808 = vmatpush.msra.mxu0 0.0
        %1809 = vmatpush.msra.mxu0 0.0
        %1810 = vmatpush.msra.mxu0 0.0
        %1811 = vmatpush.msra.mxu0 0.0
        %1812 = vmatpush.msra.mxu0 0.0
        %1813 = vmatpush.msra.mxu0 0.0
        %1814 = vmatpush.msra.mxu0 0.0
        %1815 = vmatpush.msra.mxu0 0.0
        %1816 = vmatpush.msra.mxu0 0.0
        %1817 = vmatpush.msra.mxu0 0.0
        %1818 = vmatpush.msra.mxu0 0.0
        %1819 = vmatpush.msra.mxu0 0.0
        %1820 = vmatpush.msra.mxu0 0.0
        %1821 = vmatpush.msra.mxu0 %v1749
        %1822 = vmatmul.f32.gmra.mxu0 %v1804
        %v1823 = vpop.f32.mrf.mxu0
        %v1824 = vadd.f32 0.0, %v1823
        %1825 = vdwg.mxu0
        %v1826 = vld [vmem:[%s10] sm:$0xff]
        %s1827 = scalar_lea.vmem %s8, 32
        %v1828 = vld [vmem:[%s1827] sm:$0xff]
        %v1829 = vld [vmem:[%s1827 + $0x8] sm:$0xff]
        %v1830 = vld [vmem:[%s1827 + $0x10] sm:$0xff]
        %v1831 = vld [vmem:[%s1827 + $0x18] sm:$0xff]
        %s1832 = scalar_lea.vmem %s9, 1
        %v1833 = vld [vmem:[%s1832] sm:$0x1]
        %v1835 = vperm.slane %v1833, 0
        %1837 = vmatpush.msra.mxu0 0.0
        %1838 = vmatpush.msra.mxu0 0.0
        %1839 = vmatpush.msra.mxu0 0.0
        %1840 = vmatpush.msra.mxu0 0.0
        %1841 = vmatpush.msra.mxu0 0.0
        %1842 = vmatpush.msra.mxu0 0.0
        %1843 = vmatpush.msra.mxu0 0.0
        %1844 = vmatpush.msra.mxu0 0.0
        %1845 = vmatpush.msra.mxu0 0.0
        %1846 = vmatpush.msra.mxu0 0.0
        %1847 = vmatpush.msra.mxu0 0.0
        %1848 = vmatpush.msra.mxu0 0.0
        %1849 = vmatpush.msra.mxu0 %v1831
        %1850 = vmatpush.msra.mxu0 %v1830
        %1851 = vmatpush.msra.mxu0 %v1829
        %1852 = vmatpush.msra.mxu0 %v1828
        %1853 = vmatmul.f32.gmra.mxu0 %v1669
        %v1854 = vpop.f32.mrf.mxu0
        %v1855 = vadd.f32 %v1835, %v1854
        %1856 = vdwg.mxu0
        %s1857 = scalar_lea.vmem %s8, 160
        %v1858 = vld [vmem:[%s1857] sm:$0xff]
        %v1859 = vld [vmem:[%s1857 + $0x8] sm:$0xff]
        %v1860 = vld [vmem:[%s1857 + $0x10] sm:$0xff]
        %v1861 = vld [vmem:[%s1857 + $0x18] sm:$0xff]
        %s1862 = scalar_lea.vmem %s9, 5
        %v1863 = vld [vmem:[%s1862] sm:$0x1]
        %v1865 = vperm.slane %v1863, 0
        %1867 = vmatpush.msra.mxu0 0.0
        %1868 = vmatpush.msra.mxu0 0.0
        %1869 = vmatpush.msra.mxu0 0.0
        %1870 = vmatpush.msra.mxu0 0.0
        %1871 = vmatpush.msra.mxu0 0.0
        %1872 = vmatpush.msra.mxu0 0.0
        %1873 = vmatpush.msra.mxu0 0.0
        %1874 = vmatpush.msra.mxu0 0.0
        %1875 = vmatpush.msra.mxu0 0.0
        %1876 = vmatpush.msra.mxu0 0.0
        %1877 = vmatpush.msra.mxu0 0.0
        %1878 = vmatpush.msra.mxu0 0.0
        %1879 = vmatpush.msra.mxu0 %v1861
        %1880 = vmatpush.msra.mxu0 %v1860
        %1881 = vmatpush.msra.mxu0 %v1859
        %1882 = vmatpush.msra.mxu0 %v1858
        %1883 = vmatmul.f32.gmra.mxu0 %v1669
        %v1884 = vpop.f32.mrf.mxu0
        %v1885 = vadd.f32 %v1865, %v1884
        %1886 = vdwg.mxu0
        %s1887 = scalar_lea.vmem %s8, 288
        %v1888 = vld [vmem:[%s1887] sm:$0xff]
        %v1889 = vld [vmem:[%s1887 + $0x8] sm:$0xff]
        %v1890 = vld [vmem:[%s1887 + $0x10] sm:$0xff]
        %v1891 = vld [vmem:[%s1887 + $0x18] sm:$0xff]
        %s1892 = scalar_lea.vmem %s9, 9
        %v1893 = vld [vmem:[%s1892] sm:$0x1]
        %v1895 = vperm.slane %v1893, 0
        %1897 = vmatpush.msra.mxu0 0.0
        %1898 = vmatpush.msra.mxu0 0.0
        %1899 = vmatpush.msra.mxu0 0.0
        %1900 = vmatpush.msra.mxu0 0.0
        %1901 = vmatpush.msra.mxu0 0.0
        %1902 = vmatpush.msra.mxu0 0.0
        %1903 = vmatpush.msra.mxu0 0.0
        %1904 = vmatpush.msra.mxu0 0.0
        %1905 = vmatpush.msra.mxu0 0.0
        %1906 = vmatpush.msra.mxu0 0.0
        %1907 = vmatpush.msra.mxu0 0.0
        %1908 = vmatpush.msra.mxu0 0.0
        %1909 = vmatpush.msra.mxu0 %v1891
        %1910 = vmatpush.msra.mxu0 %v1890
        %1911 = vmatpush.msra.mxu0 %v1889
        %1912 = vmatpush.msra.mxu0 %v1888
        %1913 = vmatmul.f32.gmra.mxu0 %v1669
        %v1914 = vpop.f32.mrf.mxu0
        %v1915 = vadd.f32 %v1895, %v1914
        %1916 = vdwg.mxu0
        %v1918 = vsel %vm950, %v1855, 0
        %v1921 = vsel %vm950, %v1885, 0
        %1923 = vmatpush.xpose.msra.mxu0 0.0
        %1924 = vmatpush.xpose.msra.mxu0 0.0
        %1925 = vmatpush.xpose.msra.mxu0 0.0
        %1926 = vmatpush.xpose.msra.mxu0 0.0
        %1927 = vmatpush.xpose.msra.mxu0 0.0
        %1928 = vmatpush.xpose.msra.mxu0 0.0
        %1929 = vmatpush.xpose.msra.mxu0 0.0
        %1930 = vmatpush.xpose.msra.mxu0 0.0
        %1931 = vmatpush.xpose.msra.mxu0 0.0
        %1932 = vmatpush.xpose.msra.mxu0 0.0
        %1933 = vmatpush.xpose.msra.mxu0 0.0
        %1934 = vmatpush.xpose.msra.mxu0 0.0
        %1935 = vmatpush.xpose.msra.mxu0 0.0
        %1936 = vmatpush.xpose.msra.mxu0 0.0
        %1937 = vmatpush.xpose.msra.mxu0 0.0
        %1938 = vmatpush.xpose.msra.mxu0 %v1921
        %1939 = vmatmul.f32.gmra.mxu0 %v1918
        %v1940 = vpop.f32.mrf.mxu0
        %v1941 = vadd.f32 0.0, %v1940
        %1942 = vdwg.mxu0
        %v1943 = vmul.f32 %v1941, 0.35355338
        %v1944 = vadd.f32 %v1943, %v787
        %v1945 = vsel %vm950, %v1944, -inf
        %1946 = vmax.xlane.f32.xlu0 %v1945
        %v1947 = vpop.xlane.xlu0 %1946
        %v1948 = vsub.f32 %v1944, %v1947
        %v1949 = vmul.f32 %v1948, 1.442695
        %v1950 = vpow.pop %v1949
        %v1951 = vsel %vm950, %v1950, 0.0
        %1952 = vadd.xlane.f32.xlu0 %v1951
        %v1953 = vpop.xlane.xlu0 %1952
        %v1954 = vrcp.pop %v1953
        %v1955 = vmul.f32 %v1953, %v1954
        %v1956 = vsub.f32 1.0, %v1955
        %v1957 = vmul.f32 %v1954, %v1956
        %v1958 = vadd.f32 %v1954, %v1957
        %vm1959 = vweird.f32 %v1953
        %vm1960 = vweird.f32 %v1954
        %vm1961 = vmor %vm1959, %vm1960
        %v1962 = vsel %vm1961, %v1954, %v1958
        %v1963 = vand.u32 2147483647, %v1953
        %vm1964 = vcmp.eq.f32.partialorder %v1963, 8.507059e+37
        %v1965 = vand.u32 %v1953, 2147483648
        %v1966 = vor.u32 1.1754944e-38, %v1965
        %v1967 = vsel %vm1964, %v1966, %v1962
        %v1968 = vmul.f32 %v1950, %v1967
        %v1970 = vsel %vm950, %v1968, 0
        %1972 = vmatpush.msra.mxu0 0.0
        %1973 = vmatpush.msra.mxu0 0.0
        %1974 = vmatpush.msra.mxu0 0.0
        %1975 = vmatpush.msra.mxu0 0.0
        %1976 = vmatpush.msra.mxu0 0.0
        %1977 = vmatpush.msra.mxu0 0.0
        %1978 = vmatpush.msra.mxu0 0.0
        %1979 = vmatpush.msra.mxu0 0.0
        %1980 = vmatpush.msra.mxu0 0.0
        %1981 = vmatpush.msra.mxu0 0.0
        %1982 = vmatpush.msra.mxu0 0.0
        %1983 = vmatpush.msra.mxu0 0.0
        %1984 = vmatpush.msra.mxu0 0.0
        %1985 = vmatpush.msra.mxu0 0.0
        %1986 = vmatpush.msra.mxu0 0.0
        %1987 = vmatpush.msra.mxu0 %v1915
        %1988 = vmatmul.f32.gmra.mxu0 %v1970
        %v1989 = vpop.f32.mrf.mxu0
        %v1990 = vadd.f32 0.0, %v1989
        %1991 = vdwg.mxu0
        %s1992 = scalar_lea.vmem %s10, 8
        %v1993 = vld [vmem:[%s1992] sm:$0xff]
        %v1995 = vsel %vm950, %v1990, 0
        %1997 = vmatpush.msra.mxu0 0.0
        %1998 = vmatpush.msra.mxu0 0.0
        %1999 = vmatpush.msra.mxu0 0.0
        %2000 = vmatpush.msra.mxu0 0.0
        %2001 = vmatpush.msra.mxu0 0.0
        %2002 = vmatpush.msra.mxu0 0.0
        %2003 = vmatpush.msra.mxu0 0.0
        %2004 = vmatpush.msra.mxu0 0.0
        %2005 = vmatpush.msra.mxu0 0.0
        %2006 = vmatpush.msra.mxu0 0.0
        %2007 = vmatpush.msra.mxu0 0.0
        %2008 = vmatpush.msra.mxu0 0.0
        %2009 = vmatpush.msra.mxu0 0.0
        %2010 = vmatpush.msra.mxu0 0.0
        %2011 = vmatpush.msra.mxu0 0.0
        %2012 = vmatpush.msra.mxu0 %v1993
        %2013 = vmatmul.f32.gmra.mxu0 %v1995
        %v2014 = vpop.f32.mrf.mxu0
        %v2015 = vadd.f32 0.0, %v2014
        %2016 = vdwg.mxu0
        %v2018 = vsel %vm950, %v1824, 0
        %2020 = vmatpush.msra.mxu0 0.0
        %2021 = vmatpush.msra.mxu0 0.0
        %2022 = vmatpush.msra.mxu0 0.0
        %2023 = vmatpush.msra.mxu0 0.0
        %2024 = vmatpush.msra.mxu0 0.0
        %2025 = vmatpush.msra.mxu0 0.0
        %2026 = vmatpush.msra.mxu0 0.0
        %2027 = vmatpush.msra.mxu0 0.0
        %2028 = vmatpush.msra.mxu0 0.0
        %2029 = vmatpush.msra.mxu0 0.0
        %2030 = vmatpush.msra.mxu0 0.0
        %2031 = vmatpush.msra.mxu0 0.0
        %2032 = vmatpush.msra.mxu0 0.0
        %2033 = vmatpush.msra.mxu0 0.0
        %2034 = vmatpush.msra.mxu0 0.0
        %2035 = vmatpush.msra.mxu0 %v1826
        %2036 = vmatmul.f32.gmra.mxu0 %v2018
        %v2037 = vpop.f32.mrf.mxu0
        %v2038 = vadd.f32 %v2015, %v2037
        %2039 = vdwg.mxu0
        %s2040 = scalar_lea.vmem %s8, 64
        %v2041 = vld [vmem:[%s2040] sm:$0xff]
        %v2042 = vld [vmem:[%s2040 + $0x8] sm:$0xff]
        %v2043 = vld [vmem:[%s2040 + $0x10] sm:$0xff]
        %v2044 = vld [vmem:[%s2040 + $0x18] sm:$0xff]
        %s2045 = scalar_lea.vmem %s9, 2
        %v2046 = vld [vmem:[%s2045] sm:$0x1]
        %v2048 = vperm.slane %v2046, 0
        %2050 = vmatpush.msra.mxu0 0.0
        %2051 = vmatpush.msra.mxu0 0.0
        %2052 = vmatpush.msra.mxu0 0.0
        %2053 = vmatpush.msra.mxu0 0.0
        %2054 = vmatpush.msra.mxu0 0.0
        %2055 = vmatpush.msra.mxu0 0.0
        %2056 = vmatpush.msra.mxu0 0.0
        %2057 = vmatpush.msra.mxu0 0.0
        %2058 = vmatpush.msra.mxu0 0.0
        %2059 = vmatpush.msra.mxu0 0.0
        %2060 = vmatpush.msra.mxu0 0.0
        %2061 = vmatpush.msra.mxu0 0.0
        %2062 = vmatpush.msra.mxu0 %v2044
        %2063 = vmatpush.msra.mxu0 %v2043
        %2064 = vmatpush.msra.mxu0 %v2042
        %2065 = vmatpush.msra.mxu0 %v2041
        %2066 = vmatmul.f32.gmra.mxu0 %v1669
        %v2067 = vpop.f32.mrf.mxu0
        %v2068 = vadd.f32 %v2048, %v2067
        %2069 = vdwg.mxu0
        %s2070 = scalar_lea.vmem %s8, 192
        %v2071 = vld [vmem:[%s2070] sm:$0xff]
        %v2072 = vld [vmem:[%s2070 + $0x8] sm:$0xff]
        %v2073 = vld [vmem:[%s2070 + $0x10] sm:$0xff]
        %v2074 = vld [vmem:[%s2070 + $0x18] sm:$0xff]
        %s2075 = scalar_lea.vmem %s9, 6
        %v2076 = vld [vmem:[%s2075] sm:$0x1]
        %v2078 = vperm.slane %v2076, 0
        %2080 = vmatpush.msra.mxu0 0.0
        %2081 = vmatpush.msra.mxu0 0.0
        %2082 = vmatpush.msra.mxu0 0.0
        %2083 = vmatpush.msra.mxu0 0.0
        %2084 = vmatpush.msra.mxu0 0.0
        %2085 = vmatpush.msra.mxu0 0.0
        %2086 = vmatpush.msra.mxu0 0.0
        %2087 = vmatpush.msra.mxu0 0.0
        %2088 = vmatpush.msra.mxu0 0.0
        %2089 = vmatpush.msra.mxu0 0.0
        %2090 = vmatpush.msra.mxu0 0.0
        %2091 = vmatpush.msra.mxu0 0.0
        %2092 = vmatpush.msra.mxu0 %v2074
        %2093 = vmatpush.msra.mxu0 %v2073
        %2094 = vmatpush.msra.mxu0 %v2072
        %2095 = vmatpush.msra.mxu0 %v2071
        %2096 = vmatmul.f32.gmra.mxu0 %v1669
        %v2097 = vpop.f32.mrf.mxu0
        %v2098 = vadd.f32 %v2078, %v2097
        %2099 = vdwg.mxu0
        %s2100 = scalar_lea.vmem %s8, 320
        %v2101 = vld [vmem:[%s2100] sm:$0xff]
        %v2102 = vld [vmem:[%s2100 + $0x8] sm:$0xff]
        %v2103 = vld [vmem:[%s2100 + $0x10] sm:$0xff]
        %v2104 = vld [vmem:[%s2100 + $0x18] sm:$0xff]
        %s2105 = scalar_lea.vmem %s9, 10
        %v2106 = vld [vmem:[%s2105] sm:$0x1]
        %v2108 = vperm.slane %v2106, 0
        %2110 = vmatpush.msra.mxu0 0.0
        %2111 = vmatpush.msra.mxu0 0.0
        %2112 = vmatpush.msra.mxu0 0.0
        %2113 = vmatpush.msra.mxu0 0.0
        %2114 = vmatpush.msra.mxu0 0.0
        %2115 = vmatpush.msra.mxu0 0.0
        %2116 = vmatpush.msra.mxu0 0.0
        %2117 = vmatpush.msra.mxu0 0.0
        %2118 = vmatpush.msra.mxu0 0.0
        %2119 = vmatpush.msra.mxu0 0.0
        %2120 = vmatpush.msra.mxu0 0.0
        %2121 = vmatpush.msra.mxu0 0.0
        %2122 = vmatpush.msra.mxu0 %v2104
        %2123 = vmatpush.msra.mxu0 %v2103
        %2124 = vmatpush.msra.mxu0 %v2102
        %2125 = vmatpush.msra.mxu0 %v2101
        %2126 = vmatmul.f32.gmra.mxu0 %v1669
        %v2127 = vpop.f32.mrf.mxu0
        %v2128 = vadd.f32 %v2108, %v2127
        %2129 = vdwg.mxu0
        %v2131 = vsel %vm950, %v2068, 0
        %v2134 = vsel %vm950, %v2098, 0
        %2136 = vmatpush.xpose.msra.mxu0 0.0
        %2137 = vmatpush.xpose.msra.mxu0 0.0
        %2138 = vmatpush.xpose.msra.mxu0 0.0
        %2139 = vmatpush.xpose.msra.mxu0 0.0
        %2140 = vmatpush.xpose.msra.mxu0 0.0
        %2141 = vmatpush.xpose.msra.mxu0 0.0
        %2142 = vmatpush.xpose.msra.mxu0 0.0
        %2143 = vmatpush.xpose.msra.mxu0 0.0
        %2144 = vmatpush.xpose.msra.mxu0 0.0
        %2145 = vmatpush.xpose.msra.mxu0 0.0
        %2146 = vmatpush.xpose.msra.mxu0 0.0
        %2147 = vmatpush.xpose.msra.mxu0 0.0
        %2148 = vmatpush.xpose.msra.mxu0 0.0
        %2149 = vmatpush.xpose.msra.mxu0 0.0
        %2150 = vmatpush.xpose.msra.mxu0 0.0
        %2151 = vmatpush.xpose.msra.mxu0 %v2134
        %2152 = vmatmul.f32.gmra.mxu0 %v2131
        %v2153 = vpop.f32.mrf.mxu0
        %v2154 = vadd.f32 0.0, %v2153
        %2155 = vdwg.mxu0
        %v2156 = vmul.f32 %v2154, 0.35355338
        %v2157 = vadd.f32 %v2156, %v787
        %v2158 = vsel %vm950, %v2157, -inf
        %2159 = vmax.xlane.f32.xlu0 %v2158
        %v2160 = vpop.xlane.xlu0 %2159
        %v2161 = vsub.f32 %v2157, %v2160
        %v2162 = vmul.f32 %v2161, 1.442695
        %v2163 = vpow.pop %v2162
        %v2164 = vsel %vm950, %v2163, 0.0
        %2165 = vadd.xlane.f32.xlu0 %v2164
        %v2166 = vpop.xlane.xlu0 %2165
        %v2167 = vrcp.pop %v2166
        %v2168 = vmul.f32 %v2166, %v2167
        %v2169 = vsub.f32 1.0, %v2168
        %v2170 = vmul.f32 %v2167, %v2169
        %v2171 = vadd.f32 %v2167, %v2170
        %vm2172 = vweird.f32 %v2166
        %vm2173 = vweird.f32 %v2167
        %vm2174 = vmor %vm2172, %vm2173
        %v2175 = vsel %vm2174, %v2167, %v2171
        %v2176 = vand.u32 2147483647, %v2166
        %vm2177 = vcmp.eq.f32.partialorder %v2176, 8.507059e+37
        %v2178 = vand.u32 %v2166, 2147483648
        %v2179 = vor.u32 1.1754944e-38, %v2178
        %v2180 = vsel %vm2177, %v2179, %v2175
        %v2181 = vmul.f32 %v2163, %v2180
        %v2183 = vsel %vm950, %v2181, 0
        %2185 = vmatpush.msra.mxu0 0.0
        %2186 = vmatpush.msra.mxu0 0.0
        %2187 = vmatpush.msra.mxu0 0.0
        %2188 = vmatpush.msra.mxu0 0.0
        %2189 = vmatpush.msra.mxu0 0.0
        %2190 = vmatpush.msra.mxu0 0.0
        %2191 = vmatpush.msra.mxu0 0.0
        %2192 = vmatpush.msra.mxu0 0.0
        %2193 = vmatpush.msra.mxu0 0.0
        %2194 = vmatpush.msra.mxu0 0.0
        %2195 = vmatpush.msra.mxu0 0.0
        %2196 = vmatpush.msra.mxu0 0.0
        %2197 = vmatpush.msra.mxu0 0.0
        %2198 = vmatpush.msra.mxu0 0.0
        %2199 = vmatpush.msra.mxu0 0.0
        %2200 = vmatpush.msra.mxu0 %v2128
        %2201 = vmatmul.f32.gmra.mxu0 %v2183
        %v2202 = vpop.f32.mrf.mxu0
        %v2203 = vadd.f32 0.0, %v2202
        %2204 = vdwg.mxu0
        %s2205 = scalar_lea.vmem %s10, 16
        %v2206 = vld [vmem:[%s2205] sm:$0xff]
        %v2208 = vsel %vm950, %v2203, 0
        %2210 = vmatpush.msra.mxu0 0.0
        %2211 = vmatpush.msra.mxu0 0.0
        %2212 = vmatpush.msra.mxu0 0.0
        %2213 = vmatpush.msra.mxu0 0.0
        %2214 = vmatpush.msra.mxu0 0.0
        %2215 = vmatpush.msra.mxu0 0.0
        %2216 = vmatpush.msra.mxu0 0.0
        %2217 = vmatpush.msra.mxu0 0.0
        %2218 = vmatpush.msra.mxu0 0.0
        %2219 = vmatpush.msra.mxu0 0.0
        %2220 = vmatpush.msra.mxu0 0.0
        %2221 = vmatpush.msra.mxu0 0.0
        %2222 = vmatpush.msra.mxu0 0.0
        %2223 = vmatpush.msra.mxu0 0.0
        %2224 = vmatpush.msra.mxu0 0.0
        %2225 = vmatpush.msra.mxu0 %v2206
        %2226 = vmatmul.f32.gmra.mxu0 %v2208
        %v2227 = vpop.f32.mrf.mxu0
        %v2228 = vadd.f32 0.0, %v2227
        %2229 = vdwg.mxu0
        %v2230 = vadd.f32 %v2038, %v2228
        %s2231 = scalar_lea.vmem %s8, 96
        %v2232 = vld [vmem:[%s2231] sm:$0xff]
        %v2233 = vld [vmem:[%s2231 + $0x8] sm:$0xff]
        %v2234 = vld [vmem:[%s2231 + $0x10] sm:$0xff]
        %v2235 = vld [vmem:[%s2231 + $0x18] sm:$0xff]
        %s2236 = scalar_lea.vmem %s9, 3
        %v2237 = vld [vmem:[%s2236] sm:$0x1]
        %v2239 = vperm.slane %v2237, 0
        %2241 = vmatpush.msra.mxu0 0.0
        %2242 = vmatpush.msra.mxu0 0.0
        %2243 = vmatpush.msra.mxu0 0.0
        %2244 = vmatpush.msra.mxu0 0.0
        %2245 = vmatpush.msra.mxu0 0.0
        %2246 = vmatpush.msra.mxu0 0.0
        %2247 = vmatpush.msra.mxu0 0.0
        %2248 = vmatpush.msra.mxu0 0.0
        %2249 = vmatpush.msra.mxu0 0.0
        %2250 = vmatpush.msra.mxu0 0.0
        %2251 = vmatpush.msra.mxu0 0.0
        %2252 = vmatpush.msra.mxu0 0.0
        %2253 = vmatpush.msra.mxu0 %v2235
        %2254 = vmatpush.msra.mxu0 %v2234
        %2255 = vmatpush.msra.mxu0 %v2233
        %2256 = vmatpush.msra.mxu0 %v2232
        %2257 = vmatmul.f32.gmra.mxu0 %v1669
        %v2258 = vpop.f32.mrf.mxu0
        %v2259 = vadd.f32 %v2239, %v2258
        %2260 = vdwg.mxu0
        %s2261 = scalar_lea.vmem %s8, 224
        %v2262 = vld [vmem:[%s2261] sm:$0xff]
        %v2263 = vld [vmem:[%s2261 + $0x8] sm:$0xff]
        %v2264 = vld [vmem:[%s2261 + $0x10] sm:$0xff]
        %v2265 = vld [vmem:[%s2261 + $0x18] sm:$0xff]
        %s2266 = scalar_lea.vmem %s9, 7
        %v2267 = vld [vmem:[%s2266] sm:$0x1]
        %v2269 = vperm.slane %v2267, 0
        %2271 = vmatpush.msra.mxu0 0.0
        %2272 = vmatpush.msra.mxu0 0.0
        %2273 = vmatpush.msra.mxu0 0.0
        %2274 = vmatpush.msra.mxu0 0.0
        %2275 = vmatpush.msra.mxu0 0.0
        %2276 = vmatpush.msra.mxu0 0.0
        %2277 = vmatpush.msra.mxu0 0.0
        %2278 = vmatpush.msra.mxu0 0.0
        %2279 = vmatpush.msra.mxu0 0.0
        %2280 = vmatpush.msra.mxu0 0.0
        %2281 = vmatpush.msra.mxu0 0.0
        %2282 = vmatpush.msra.mxu0 0.0
        %2283 = vmatpush.msra.mxu0 %v2265
        %2284 = vmatpush.msra.mxu0 %v2264
        %2285 = vmatpush.msra.mxu0 %v2263
        %2286 = vmatpush.msra.mxu0 %v2262
        %2287 = vmatmul.f32.gmra.mxu0 %v1669
        %v2288 = vpop.f32.mrf.mxu0
        %v2289 = vadd.f32 %v2269, %v2288
        %2290 = vdwg.mxu0
        %s2291 = scalar_lea.vmem %s8, 352
        %v2292 = vld [vmem:[%s2291] sm:$0xff]
        %v2293 = vld [vmem:[%s2291 + $0x8] sm:$0xff]
        %v2294 = vld [vmem:[%s2291 + $0x10] sm:$0xff]
        %v2295 = vld [vmem:[%s2291 + $0x18] sm:$0xff]
        %s2296 = scalar_lea.vmem %s9, 11
        %v2297 = vld [vmem:[%s2296] sm:$0x1]
        %v2299 = vperm.slane %v2297, 0
        %2301 = vmatpush.msra.mxu0 0.0
        %2302 = vmatpush.msra.mxu0 0.0
        %2303 = vmatpush.msra.mxu0 0.0
        %2304 = vmatpush.msra.mxu0 0.0
        %2305 = vmatpush.msra.mxu0 0.0
        %2306 = vmatpush.msra.mxu0 0.0
        %2307 = vmatpush.msra.mxu0 0.0
        %2308 = vmatpush.msra.mxu0 0.0
        %2309 = vmatpush.msra.mxu0 0.0
        %2310 = vmatpush.msra.mxu0 0.0
        %2311 = vmatpush.msra.mxu0 0.0
        %2312 = vmatpush.msra.mxu0 0.0
        %2313 = vmatpush.msra.mxu0 %v2295
        %2314 = vmatpush.msra.mxu0 %v2294
        %2315 = vmatpush.msra.mxu0 %v2293
        %2316 = vmatpush.msra.mxu0 %v2292
        %2317 = vmatmul.f32.gmra.mxu0 %v1669
        %v2318 = vpop.f32.mrf.mxu0
        %v2319 = vadd.f32 %v2299, %v2318
        %2320 = vdwg.mxu0
        %v2322 = vsel %vm950, %v2259, 0
        %v2325 = vsel %vm950, %v2289, 0
        %2327 = vmatpush.xpose.msra.mxu0 0.0
        %2328 = vmatpush.xpose.msra.mxu0 0.0
        %2329 = vmatpush.xpose.msra.mxu0 0.0
        %2330 = vmatpush.xpose.msra.mxu0 0.0
        %2331 = vmatpush.xpose.msra.mxu0 0.0
        %2332 = vmatpush.xpose.msra.mxu0 0.0
        %2333 = vmatpush.xpose.msra.mxu0 0.0
        %2334 = vmatpush.xpose.msra.mxu0 0.0
        %2335 = vmatpush.xpose.msra.mxu0 0.0
        %2336 = vmatpush.xpose.msra.mxu0 0.0
        %2337 = vmatpush.xpose.msra.mxu0 0.0
        %2338 = vmatpush.xpose.msra.mxu0 0.0
        %2339 = vmatpush.xpose.msra.mxu0 0.0
        %2340 = vmatpush.xpose.msra.mxu0 0.0
        %2341 = vmatpush.xpose.msra.mxu0 0.0
        %2342 = vmatpush.xpose.msra.mxu0 %v2325
        %2343 = vmatmul.f32.gmra.mxu0 %v2322
        %v2344 = vpop.f32.mrf.mxu0
        %v2345 = vadd.f32 0.0, %v2344
        %2346 = vdwg.mxu0
        %v2347 = vmul.f32 %v2345, 0.35355338
        %v2348 = vadd.f32 %v2347, %v787
        %v2349 = vsel %vm950, %v2348, -inf
        %2350 = vmax.xlane.f32.xlu0 %v2349
        %v2351 = vpop.xlane.xlu0 %2350
        %v2352 = vsub.f32 %v2348, %v2351
        %v2353 = vmul.f32 %v2352, 1.442695
        %v2354 = vpow.pop %v2353
        %v2355 = vsel %vm950, %v2354, 0.0
        %2356 = vadd.xlane.f32.xlu0 %v2355
        %v2357 = vpop.xlane.xlu0 %2356
        %v2358 = vrcp.pop %v2357
        %v2359 = vmul.f32 %v2357, %v2358
        %v2360 = vsub.f32 1.0, %v2359
        %v2361 = vmul.f32 %v2358, %v2360
        %v2362 = vadd.f32 %v2358, %v2361
        %vm2363 = vweird.f32 %v2357
        %vm2364 = vweird.f32 %v2358
        %vm2365 = vmor %vm2363, %vm2364
        %v2366 = vsel %vm2365, %v2358, %v2362
        %v2367 = vand.u32 2147483647, %v2357
        %vm2368 = vcmp.eq.f32.partialorder %v2367, 8.507059e+37
        %v2369 = vand.u32 %v2357, 2147483648
        %v2370 = vor.u32 1.1754944e-38, %v2369
        %v2371 = vsel %vm2368, %v2370, %v2366
        %v2372 = vmul.f32 %v2354, %v2371
        %v2374 = vsel %vm950, %v2372, 0
        %2376 = vmatpush.msra.mxu0 0.0
        %2377 = vmatpush.msra.mxu0 0.0
        %2378 = vmatpush.msra.mxu0 0.0
        %2379 = vmatpush.msra.mxu0 0.0
        %2380 = vmatpush.msra.mxu0 0.0
        %2381 = vmatpush.msra.mxu0 0.0
        %2382 = vmatpush.msra.mxu0 0.0
        %2383 = vmatpush.msra.mxu0 0.0
        %2384 = vmatpush.msra.mxu0 0.0
        %2385 = vmatpush.msra.mxu0 0.0
        %2386 = vmatpush.msra.mxu0 0.0
        %2387 = vmatpush.msra.mxu0 0.0
        %2388 = vmatpush.msra.mxu0 0.0
        %2389 = vmatpush.msra.mxu0 0.0
        %2390 = vmatpush.msra.mxu0 0.0
        %2391 = vmatpush.msra.mxu0 %v2319
        %2392 = vmatmul.f32.gmra.mxu0 %v2374
        %v2393 = vpop.f32.mrf.mxu0
        %v2394 = vadd.f32 0.0, %v2393
        %2395 = vdwg.mxu0
        %s2396 = scalar_lea.vmem %s10, 24
        %v2397 = vld [vmem:[%s2396] sm:$0xff]
        %v2399 = vsel %vm950, %v2394, 0
        %2401 = vmatpush.msra.mxu0 0.0
        %2402 = vmatpush.msra.mxu0 0.0
        %2403 = vmatpush.msra.mxu0 0.0
        %2404 = vmatpush.msra.mxu0 0.0
        %2405 = vmatpush.msra.mxu0 0.0
        %2406 = vmatpush.msra.mxu0 0.0
        %2407 = vmatpush.msra.mxu0 0.0
        %2408 = vmatpush.msra.mxu0 0.0
        %2409 = vmatpush.msra.mxu0 0.0
        %2410 = vmatpush.msra.mxu0 0.0
        %2411 = vmatpush.msra.mxu0 0.0
        %2412 = vmatpush.msra.mxu0 0.0
        %2413 = vmatpush.msra.mxu0 0.0
        %2414 = vmatpush.msra.mxu0 0.0
        %2415 = vmatpush.msra.mxu0 0.0
        %2416 = vmatpush.msra.mxu0 %v2397
        %2417 = vmatmul.f32.gmra.mxu0 %v2399
        %v2418 = vpop.f32.mrf.mxu0
        %v2419 = vadd.f32 0.0, %v2418
        %2420 = vdwg.mxu0
        %v2421 = vadd.f32 %v2230, %v2419
        %v2422 = vld [vmem:[%s11] sm:$0x1]
        %v2424 = vperm.slane %v2422, 0
        %v2426 = vadd.f32 %v2421, %v2424
        %v2427 = vadd.f32 %v1627, %v2426
        %v2428 = vsel %vm819, %v2427, 0.0
        %2429 = vadd.xlane.f32.xlu0 %v2428
        %v2430 = vpop.xlane.xlu0 %2429
        %v2431 = vmul.f32 %v2430, %v829
        %v2432 = vsub.f32 %v2427, %v2431
        %v2433 = vmul.f32 %v2432, %v2432
        %v2434 = vsel %vm819, %v2433, 0.0
        %2435 = vadd.xlane.f32.xlu0 %v2434
        %v2436 = vpop.xlane.xlu0 %2435
        %v2437 = vmul.f32 %v2436, %v829
        %v2438 = vadd.f32 %v2437, 1e-05
        %v2439 = vrsqrt.pop %v2438
        %v2440 = vmul.f32 %v2439, %v2438
        %v2441 = vmul.f32 %v2440, %v2439
        %v2442 = vmul.f32 0.5, %v2441
        %v2443 = vsub.f32 1.5, %v2442
        %v2444 = vmul.f32 %v2439, %v2443
        %vm2445 = vweird.f32 %v2438
        %vm2446 = vweird.f32 %v2439
        %vm2447 = vmor %vm2445, %vm2446
        %v2448 = vsel %vm2447, %v2439, %v2444
        %v2449 = vmul.f32 %v2432, %v2448
        %v2450 = vld [vmem:[%s16] sm:$0x1]
        %v2452 = vperm.slane %v2450, 0
        %v2454 = vmul.f32 %v2449, %v2452
        %v2455 = vld [vmem:[%s17] sm:$0x1]
        %v2457 = vperm.slane %v2455, 0
        %v2459 = vadd.f32 %v2454, %v2457
        %v2460 = vld [vmem:[%s20] sm:$0xff]
        %v2461 = vld [vmem:[%s20 + $0x8] sm:$0xff]
        %v2462 = vld [vmem:[%s20 + $0x10] sm:$0xff]
        %v2463 = vld [vmem:[%s20 + $0x18] sm:$0xff]
        %v2464 = vld [vmem:[%s21] sm:$0x1]
        %v2466 = vperm.slane %v2464, 0
        %v2469 = vsel %vm819, %v2459, 0
        %2471 = vmatpush.msra.mxu0 0.0
        %2472 = vmatpush.msra.mxu0 0.0
        %2473 = vmatpush.msra.mxu0 0.0
        %2474 = vmatpush.msra.mxu0 0.0
        %2475 = vmatpush.msra.mxu0 0.0
        %2476 = vmatpush.msra.mxu0 0.0
        %2477 = vmatpush.msra.mxu0 0.0
        %2478 = vmatpush.msra.mxu0 0.0
        %2479 = vmatpush.msra.mxu0 0.0
        %2480 = vmatpush.msra.mxu0 0.0
        %2481 = vmatpush.msra.mxu0 0.0
        %2482 = vmatpush.msra.mxu0 0.0
        %2483 = vmatpush.msra.mxu0 %v2463
        %2484 = vmatpush.msra.mxu0 %v2462
        %2485 = vmatpush.msra.mxu0 %v2461
        %2486 = vmatpush.msra.mxu0 %v2460
        %2487 = vmatmul.f32.gmra.mxu0 %v2469
        %v2488 = vpop.f32.mrf.mxu0
        %v2489 = vadd.f32 %v2466, %v2488
        %2490 = vdwg.mxu0
        %v2491 = vmax.f32 %v2489, 0.0
        %v2492 = vld [vmem:[%s22] sm:$0xff]
        %v2493 = vld [vmem:[%s22 + $0x8] sm:$0xff]
        %v2494 = vld [vmem:[%s22 + $0x10] sm:$0xff]
        %v2495 = vld [vmem:[%s22 + $0x18] sm:$0xff]
        %v2496 = vld [vmem:[%s22 + $0x20] sm:$0xff]
        %v2497 = vld [vmem:[%s22 + $0x28] sm:$0xff]
        %v2498 = vld [vmem:[%s22 + $0x30] sm:$0xff]
        %v2499 = vld [vmem:[%s22 + $0x38] sm:$0xff]
        %v2500 = vld [vmem:[%s23] sm:$0x1]
        %v2502 = vperm.slane %v2500, 0
        %vm2504 = vcmask 523264
        %v2506 = vsel %vm2504, %v2491, 0
        %2508 = vmatpush.msra.mxu0 0.0
        %2509 = vmatpush.msra.mxu0 0.0
        %2510 = vmatpush.msra.mxu0 0.0
        %2511 = vmatpush.msra.mxu0 0.0
        %2512 = vmatpush.msra.mxu0 0.0
        %2513 = vmatpush.msra.mxu0 0.0
        %2514 = vmatpush.msra.mxu0 0.0
        %2515 = vmatpush.msra.mxu0 0.0
        %2516 = vmatpush.msra.mxu0 %v2499
        %2517 = vmatpush.msra.mxu0 %v2498
        %2518 = vmatpush.msra.mxu0 %v2497
        %2519 = vmatpush.msra.mxu0 %v2496
        %2520 = vmatpush.msra.mxu0 %v2495
        %2521 = vmatpush.msra.mxu0 %v2494
        %2522 = vmatpush.msra.mxu0 %v2493
        %2523 = vmatpush.msra.mxu0 %v2492
        %2524 = vmatmul.f32.gmra.mxu0 %v2506
        %v2525 = vpop.f32.mrf.mxu0
        %v2526 = vadd.f32 %v2502, %v2525
        %2527 = vdwg.mxu0
        %v2528 = vadd.f32 %v2427, %v2526
        %v2529 = vsel %vm819, %v2528, 0.0
        %2530 = vadd.xlane.f32.xlu0 %v2529
        %v2531 = vpop.xlane.xlu0 %2530
        %v2532 = vmul.f32 %v2531, %v829
        %v2533 = vsub.f32 %v2528, %v2532
        %v2534 = vmul.f32 %v2533, %v2533
        %v2535 = vsel %vm819, %v2534, 0.0
        %2536 = vadd.xlane.f32.xlu0 %v2535
        %v2537 = vpop.xlane.xlu0 %2536
        %v2538 = vmul.f32 %v2537, %v829
        %v2539 = vadd.f32 %v2538, 1e-05
        %v2540 = vrsqrt.pop %v2539
        %v2541 = vmul.f32 %v2540, %v2539
        %v2542 = vmul.f32 %v2541, %v2540
        %v2543 = vmul.f32 0.5, %v2542
        %v2544 = vsub.f32 1.5, %v2543
        %v2545 = vmul.f32 %v2540, %v2544
        %vm2546 = vweird.f32 %v2539
        %vm2547 = vweird.f32 %v2540
        %vm2548 = vmor %vm2546, %vm2547
        %v2549 = vsel %vm2548, %v2540, %v2545
        %v2550 = vmul.f32 %v2533, %v2549
        %v2551 = vld [vmem:[%s18] sm:$0x1]
        %v2553 = vperm.slane %v2551, 0
        %v2555 = vmul.f32 %v2550, %v2553
        %v2556 = vld [vmem:[%s19] sm:$0x1]
        %v2558 = vperm.slane %v2556, 0
        %v2560 = vadd.f32 %v2555, %v2558
        %v2561 = vld [vmem:[%s24] sm:$0xff]
        %v2562 = vld [vmem:[%s24 + $0x8] sm:$0xff]
        %v2563 = vld [vmem:[%s24 + $0x10] sm:$0xff]
        %v2564 = vld [vmem:[%s24 + $0x18] sm:$0xff]
        %v2565 = vld [vmem:[%s25] sm:$0x1]
        %v2567 = vperm.slane %v2565, 0
        %v2570 = vsel %vm819, %v2560, 0
        %2572 = vmatpush.msra.mxu0 0.0
        %2573 = vmatpush.msra.mxu0 0.0
        %2574 = vmatpush.msra.mxu0 0.0
        %2575 = vmatpush.msra.mxu0 0.0
        %2576 = vmatpush.msra.mxu0 0.0
        %2577 = vmatpush.msra.mxu0 0.0
        %2578 = vmatpush.msra.mxu0 0.0
        %2579 = vmatpush.msra.mxu0 0.0
        %2580 = vmatpush.msra.mxu0 0.0
        %2581 = vmatpush.msra.mxu0 0.0
        %2582 = vmatpush.msra.mxu0 0.0
        %2583 = vmatpush.msra.mxu0 0.0
        %2584 = vmatpush.msra.mxu0 %v2564
        %2585 = vmatpush.msra.mxu0 %v2563
        %2586 = vmatpush.msra.mxu0 %v2562
        %2587 = vmatpush.msra.mxu0 %v2561
        %2588 = vmatmul.f32.gmra.mxu0 %v2570
        %v2589 = vpop.f32.mrf.mxu0
        %v2590 = vadd.f32 %v2567, %v2589
        %2591 = vdwg.mxu0
        %2592 = vst.msk [vmem:[%s782] sm:$0xff] %vm795, %v2590
        %s2593 = sand.u32 %s599, 1
        %s2594 = scalar_lea.sflag [#allocation3], %s2593
        %s2595 = sand.u32 %s599, 1
        %s2596 = smul.addr %s2595, 8
        %s2597 = scalar_lea.vmem [#allocation2], %s2596
        // Predicated region
        $region125: #{model_forward_pallas.1} parent=123 // pred_check
          %p2598 = pneg %p609
        $region126: #{model_forward_pallas.1} parent=123 // pred_check_branch
          %2600 = sbr.rel (%p2598) target = $region128
        $region127: #{model_forward_pallas.1} parent=123 // pred_region
          %2602 = vsyncadd %s2594, 0
          %s2603 = smul.addr %s40, 8
          %s2604 = scalar_lea.hbm %s26, %s2603
          %s2606 = sshll.u32 %s2597, 4
          %s2607 = int_to_ptr.vmem [resolvable:$true] %s2606
          %s2608 = sshll.u32 %s2604, 4
          %s2609 = int_to_ptr.hbm [resolvable:$true] %s2608
          %2611 = dma.vmem_to_hbm [thread:$0]  %s2607, 128, %s2609, %s2594
        $region128: #{model_forward_pallas.1} parent=123 // pred_fallthru
          _
      $region124: #{model_forward_pallas.1} parent=5 // pred_fallthru
        _
      %p2612 = scmp.le.s32.totalorder 2, %s35
      // Predicated region
      $region129: #{model_forward_pallas.1} parent=5 // pred_check
        %p2613 = pneg %p2612
      $region130: #{model_forward_pallas.1} parent=5 // pred_check_branch
        %2615 = sbr.rel (%p2613) target = $region132
      $region131: #{model_forward_pallas.1} parent=5 // pred_region
        %s2616 = ssub.s32 %s35, 2
        // Predicated region
        $region133: #{model_forward_pallas.1} parent=131 // pred_check
          %p2617 = pneg %p615
        $region134: #{model_forward_pallas.1} parent=131 // pred_check_branch
          %2619 = sbr.rel (%p2617) target = $region136
        $region135: #{model_forward_pallas.1} parent=131 // pred_region
          %s2620 = sand.u32 %s600, 1
          %s2621 = scalar_lea.sflag [#allocation3], %s2620
          %s2622 = sand.u32 %s600, 1
          %s2623 = smul.addr %s2622, 8
          %s2624 = scalar_lea.vmem [#allocation2], %s2623
          %2626 = dma.done %s2621, 128
        $region136: #{model_forward_pallas.1} parent=131 // pred_fallthru
          _
      $region132: #{model_forward_pallas.1} parent=5 // pred_fallthru
        _
    $region6: #{model_forward_pallas.1} parent=1 // loop_footer
      %s39 = sadd.s32 1, %s35
    $region7: #{model_forward_pallas.1} parent=1 // loop_footer_branch
      %34 = sbr.rel target = $region3
    $region8: #{model_forward_pallas.1} parent=1 // loop_exit
      _
    %2627 = vsyncpa [#allocation3], 1
    %s2628 = scalar_lea.sflag [#allocation3], 1
    %2629 = vsyncpa %s2628, 1

</llo_original>
